<compile_context>
chip_gen: v7x
topology: tpu7x:2x2x1
jax: 0.10.0
libtpu: 0.0.40
codegen_flags: <defaults>
</compile_context>

<pallas_src>
import functools

import jax
import jax.numpy as jnp
from jax import lax
from jax.experimental import pallas as pl
from jax.experimental.pallas import tpu as pltpu

_LANES = 128
_MAX_ROWS_SINGLE_TILE = 16     # <= 16 sublane rows (2048 batch lanes) in one tile
_ROWS_PER_TILE = 8             # multi-tile: 8-row tiles (layout-legal, megacore-friendly)
_SWEEP_UNROLL_MAX_N = 48       # static unroll of the sweep up to this chain length


def _mps_forward_kernel(n, D, d, R, t_ref, x_ref, o_ref):
    """Per-batch-tile MPS overlap (batch on a full (R, 128) sublane x lane tile).

    t_ref: (n*D*D*d,) f32 SMEM   -- core tensor, flattened (site, l, r, e) row-major
    x_ref: (n, d, R, 128) f32 VMEM -- input tile; batch index = row*128 + lane
    o_ref: (1, R, 128) f32 VMEM  -- overlaps for this batch tile (lane dense)
    """
    DDd = D * D * d

    def x_rows(site):
        xi = x_ref[site]                                 # (d, R, 128)
        return tuple(xi[e] for e in range(d))            # d tiles of (R, 128)

    def load_site_scalars(base):
        # One SMEM scalar read per core element; offsets are Python constants so
        # each load is a single sld at base+const (no per-element address math).
        return tuple(t_ref[base + k] for k in range(DDd))

    def t_at(tvals, l, r, e):
        return tvals[(l * D + r) * d + e]

    def site_matrix(xr, tvals, l, r):
        # M[site][l, r, :] = sum_e x[site, e, :] * T[site, l, r, e]  (pure VPU FMAs)
        m = xr[0] * t_at(tvals, l, r, 0)
        for e in range(1, d):
            m = m + xr[e] * t_at(tvals, l, r, e)
        return m                                          # (R, 128)

    def contract_left(left, site, base):
        # left'[l, :] = sum_r left[r, :] * M[site][r, l, :]
        xr = x_rows(site)
        tvals = load_site_scalars(base)
        out = []
        for l in range(D):
            acc = left[0] * site_matrix(xr, tvals, 0, l)
            for r in range(1, D):
                acc = acc + left[r] * site_matrix(xr, tvals, r, l)
            out.append(acc)
        return tuple(out)

    def contract_right(right, site, base):
        # right'[r, :] = sum_l right[l, :] * M[site][r, l, :]
        xr = x_rows(site)
        tvals = load_site_scalars(base)
        out = []
        for r in range(D):
            acc = right[0] * site_matrix(xr, tvals, r, 0)
            for l in range(1, D):
                acc = acc + right[l] * site_matrix(xr, tvals, r, l)
            out.append(acc)
        return tuple(out)

    # Boundaries: left[r] = M_0[0, r, :], right[l] = M_{n-1}[l, 0, :]
    x0 = x_rows(0)
    t0 = load_site_scalars(0)
    left = tuple(site_matrix(x0, t0, 0, r) for r in range(D))

    xn = x_rows(n - 1)
    tn = load_site_scalars((n - 1) * DDd)
    right = tuple(site_matrix(xn, tn, l, 0) for l in range(D))

    # Inward sweep from both ends.
    if n // 2 - 1 > 0:
        if n <= _SWEEP_UNROLL_MAX_N:
            # Static unroll: all site/base indices are Python constants.
            for i in range(1, n // 2):
                j = n - i - 1
                left = contract_left(left, i, i * DDd)
                right = contract_right(right, j, j * DDd)
        else:
            def body(i, carry):
                lft, rgt = carry
                j = n - i - 1
                return (contract_left(lft, i, i * DDd),
                        contract_right(rgt, j, j * DDd))

            left, right = lax.fori_loop(1, n // 2, body, (left, right), unroll=2)

    if n % 2 == 1:
        m = n // 2
        left = contract_left(left, m, m * DDd)

    # out[b] = sum_k left[k, b] * right[k, b]   (D VPU FMAs, no cross-lane reduce)
    res = left[0] * right[0]
    for k in range(1, D):
        res = res + left[k] * right[k]
    o_ref[...] = res.reshape(1, R, _LANES)


@jax.jit
def mps_forward(x, tensor):
    """MPS.forward: x (B, n, d), tensor (n, D, D, d) -> (B,)"""
    B, n, d = x.shape
    nt, D, D2, dt = tensor.shape
    assert nt == n and D == D2 and dt == d

    x = x.astype(jnp.float32)
    tensor = tensor.astype(jnp.float32)

    # Batch tiling: batch index = row*128 + lane.  Single tile up to 16 rows
    # (block == full array, always layout-legal); larger batches use 8-row tiles
    # (multiple of 8 -> legal (rows, 128) blocks, and >= 2 grid steps for megacore).
    n_rows = -(-B // _LANES)
    if n_rows <= _MAX_ROWS_SINGLE_TILE:
        rows_per_tile = n_rows
        num_tiles = 1
    else:
        rows_per_tile = _ROWS_PER_TILE
        num_tiles = -(-n_rows // rows_per_tile)
    total_rows = num_tiles * rows_per_tile
    B_pad = total_rows * _LANES

    # (B, n, d) -> (n, d, rows, 128).  Padded lanes are zero and flow through the
    # chain as zeros; they are sliced off at the end.
    x_t = jnp.transpose(x, (1, 2, 0))                    # (n, d, B)
    if B_pad != B:
        x_t = jnp.pad(x_t, ((0, 0), (0, 0), (0, B_pad - B)))
    x_t = x_t.reshape(n, d, total_rows, _LANES)

    # Tiny core tensor -> SMEM (resident across all batch tiles).
    # TODO(synk): for large D (core tensor >> a few KiB) this should move to VMEM.
    t_flat = tensor.reshape(-1)                          # (n*D*D*d,)

    kernel = functools.partial(_mps_forward_kernel, n, D, d, rows_per_tile)

    flops = 2 * B_pad * n * D * D * d
    bytes_accessed = x_t.size * 4 + t_flat.size * 4 + B_pad * 4

    out = pl.pallas_call(
        kernel,
        grid=(num_tiles,),
        in_specs=[
            pl.BlockSpec(memory_space=pltpu.MemorySpace.SMEM),  # core tensor (resident)
            pl.BlockSpec((n, d, rows_per_tile, _LANES), lambda b: (0, 0, b, 0)),
        ],
        out_specs=pl.BlockSpec((1, rows_per_tile, _LANES), lambda b: (b, 0, 0)),
        out_shape=jax.ShapeDtypeStruct((num_tiles, rows_per_tile, _LANES), jnp.float32),
        compiler_params=pltpu.CompilerParams(
            dimension_semantics=("parallel",),
        ),
        cost_estimate=pl.CostEstimate(
            flops=flops, transcendentals=0, bytes_accessed=bytes_accessed),
    )(t_flat, x_t)
    return out.reshape(B_pad)[:B]


def mps_forward_ref(x, tensor):
    """Pure-JAX reference mirroring the PyTorch forward exactly."""
    n = x.shape[1]
    mps = jnp.einsum('bne,nlre->bnlr', x, tensor)
    left = mps[:, 0, 0]
    right = mps[:, -1, :, 0]
    for i in range(1, n // 2):
        left = jnp.einsum('br,brl->bl', left, mps[:, i])
        right = jnp.einsum('bl,brl->br', right, mps[:, n - i - 1])
    if n % 2 == 1:
        left = jnp.einsum('br,brl->bl', left, mps[:, n // 2])
    return jnp.einsum('bl,bl->b', left, right)


def _check(key, B, n, D, d, stddev=0.5):
    k_t, k_x = jax.random.split(key)
    tensor = jax.random.normal(k_t, (n, D, D, d), dtype=jnp.float32) * stddev
    x = jax.random.normal(k_x, (B, n, d), dtype=jnp.float32)
    out = jax.block_until_ready(mps_forward(x, tensor))
    ref = mps_forward_ref(x, tensor)
    assert out.shape == (B,), out.shape
    assert jnp.allclose(out, ref, rtol=1e-3, atol=1e-4), (B, n, D, d, out, ref)


if __name__ == "__main__":
    key = jax.random.PRNGKey(0)
    k0, k1, k2, k3, k4 = jax.random.split(key, 5)

    # Small shapes consistent with the module: batch=2, n=8 sites, D=4, d=4.
    _check(k0, B=2, n=8, D=4, d=4)
    # Odd chain length (middle-site branch).
    _check(k1, B=2, n=9, D=4, d=4)
    # Non-multiple-of-128 batch: lane padding inside a single multi-row tile.
    _check(k2, B=300, n=8, D=4, d=4)
    # Large batch: multi-tile grid (>1 parallel step) with padding.
    _check(k3, B=2100, n=8, D=4, d=4)
    # Long chain -> fori_loop sweep path; non-power-of-two D, d.
    _check(k4, B=4, n=60, D=3, d=5, stddev=0.25)

    print("KERNEL_OK")
</pallas_src>

<mosaic_0001>
module attributes {stable_mosaic.version = 11 : i64} {
  func.func @_mps_forward_kernel(%arg0: i32, %arg1: memref<512xf32, #tpu.memory_space<smem>>, %arg2: memref<8x4x1x128xf32, #tpu.memory_space<vmem>>, %arg3: memref<1x1x128xf32, #tpu.memory_space<vmem>>) attributes {dimension_semantics = [#tpu.dimension_semantics<parallel>], iteration_bounds = array<i64: 1>, scalar_prefetch = 0 : i64, scratch_operands = 0 : i64, tpu.core_type = #tpu.core_type<tc>, window_params = [{transform_indices = @transform_0, window_bounds = array<i64: 512>}, {transform_indices = @transform_1, window_bounds = array<i64: 8, 4, 1, 128>}, {transform_indices = @transform_2, window_bounds = array<i64: 1, 1, 128>}]} {
    %c0 = arith.constant 0 : index
    %c0_0 = arith.constant 0 : index
    %c0_1 = arith.constant 0 : index
    %c0_2 = arith.constant 0 : index
    %0 = vector.load %arg2[%c0, %c0_0, %c0_1, %c0_2] : memref<8x4x1x128xf32, #tpu.memory_space<vmem>>, vector<1x4x1x128xf32>
    %1 = vector.shape_cast %0 : vector<1x4x1x128xf32> to vector<4x1x128xf32>
    %2 = vector.extract_strided_slice %1 {offsets = [0, 0, 0], sizes = [1, 1, 128], strides = [1, 1, 1]} : vector<4x1x128xf32> to vector<1x1x128xf32>
    %3 = vector.shape_cast %2 : vector<1x1x128xf32> to vector<1x128xf32>
    %4 = vector.extract_strided_slice %1 {offsets = [1, 0, 0], sizes = [1, 1, 128], strides = [1, 1, 1]} : vector<4x1x128xf32> to vector<1x1x128xf32>
    %5 = vector.shape_cast %4 : vector<1x1x128xf32> to vector<1x128xf32>
    %6 = vector.extract_strided_slice %1 {offsets = [2, 0, 0], sizes = [1, 1, 128], strides = [1, 1, 1]} : vector<4x1x128xf32> to vector<1x1x128xf32>
    %7 = vector.shape_cast %6 : vector<1x1x128xf32> to vector<1x128xf32>
    %8 = vector.extract_strided_slice %1 {offsets = [3, 0, 0], sizes = [1, 1, 128], strides = [1, 1, 1]} : vector<4x1x128xf32> to vector<1x1x128xf32>
    %9 = vector.shape_cast %8 : vector<1x1x128xf32> to vector<1x128xf32>
    %c0_3 = arith.constant 0 : index
    %10 = memref.load %arg1[%c0_3] : memref<512xf32, #tpu.memory_space<smem>>
    %c1 = arith.constant 1 : index
    %11 = memref.load %arg1[%c1] : memref<512xf32, #tpu.memory_space<smem>>
    %c2 = arith.constant 2 : index
    %12 = memref.load %arg1[%c2] : memref<512xf32, #tpu.memory_space<smem>>
    %c3 = arith.constant 3 : index
    %13 = memref.load %arg1[%c3] : memref<512xf32, #tpu.memory_space<smem>>
    %c4 = arith.constant 4 : index
    %14 = memref.load %arg1[%c4] : memref<512xf32, #tpu.memory_space<smem>>
    %c5 = arith.constant 5 : index
    %15 = memref.load %arg1[%c5] : memref<512xf32, #tpu.memory_space<smem>>
    %c6 = arith.constant 6 : index
    %16 = memref.load %arg1[%c6] : memref<512xf32, #tpu.memory_space<smem>>
    %c7 = arith.constant 7 : index
    %17 = memref.load %arg1[%c7] : memref<512xf32, #tpu.memory_space<smem>>
    %c8 = arith.constant 8 : index
    %18 = memref.load %arg1[%c8] : memref<512xf32, #tpu.memory_space<smem>>
    %c9 = arith.constant 9 : index
    %19 = memref.load %arg1[%c9] : memref<512xf32, #tpu.memory_space<smem>>
    %c10 = arith.constant 10 : index
    %20 = memref.load %arg1[%c10] : memref<512xf32, #tpu.memory_space<smem>>
    %c11 = arith.constant 11 : index
    %21 = memref.load %arg1[%c11] : memref<512xf32, #tpu.memory_space<smem>>
    %c12 = arith.constant 12 : index
    %22 = memref.load %arg1[%c12] : memref<512xf32, #tpu.memory_space<smem>>
    %c13 = arith.constant 13 : index
    %23 = memref.load %arg1[%c13] : memref<512xf32, #tpu.memory_space<smem>>
    %c14 = arith.constant 14 : index
    %24 = memref.load %arg1[%c14] : memref<512xf32, #tpu.memory_space<smem>>
    %c15 = arith.constant 15 : index
    %25 = memref.load %arg1[%c15] : memref<512xf32, #tpu.memory_space<smem>>
    %26 = vector.broadcast %10 : f32 to vector<1x128xf32>
    %27 = arith.mulf %3, %26 : vector<1x128xf32>
    %28 = vector.broadcast %11 : f32 to vector<1x128xf32>
    %29 = arith.mulf %5, %28 : vector<1x128xf32>
    %30 = arith.addf %27, %29 : vector<1x128xf32>
    %31 = vector.broadcast %12 : f32 to vector<1x128xf32>
    %32 = arith.mulf %7, %31 : vector<1x128xf32>
    %33 = arith.addf %30, %32 : vector<1x128xf32>
    %34 = vector.broadcast %13 : f32 to vector<1x128xf32>
    %35 = arith.mulf %9, %34 : vector<1x128xf32>
    %36 = arith.addf %33, %35 : vector<1x128xf32>
    %37 = vector.broadcast %14 : f32 to vector<1x128xf32>
    %38 = arith.mulf %3, %37 : vector<1x128xf32>
    %39 = vector.broadcast %15 : f32 to vector<1x128xf32>
    %40 = arith.mulf %5, %39 : vector<1x128xf32>
    %41 = arith.addf %38, %40 : vector<1x128xf32>
    %42 = vector.broadcast %16 : f32 to vector<1x128xf32>
    %43 = arith.mulf %7, %42 : vector<1x128xf32>
    %44 = arith.addf %41, %43 : vector<1x128xf32>
    %45 = vector.broadcast %17 : f32 to vector<1x128xf32>
    %46 = arith.mulf %9, %45 : vector<1x128xf32>
    %47 = arith.addf %44, %46 : vector<1x128xf32>
    %48 = vector.broadcast %18 : f32 to vector<1x128xf32>
    %49 = arith.mulf %3, %48 : vector<1x128xf32>
    %50 = vector.broadcast %19 : f32 to vector<1x128xf32>
    %51 = arith.mulf %5, %50 : vector<1x128xf32>
    %52 = arith.addf %49, %51 : vector<1x128xf32>
    %53 = vector.broadcast %20 : f32 to vector<1x128xf32>
    %54 = arith.mulf %7, %53 : vector<1x128xf32>
    %55 = arith.addf %52, %54 : vector<1x128xf32>
    %56 = vector.broadcast %21 : f32 to vector<1x128xf32>
    %57 = arith.mulf %9, %56 : vector<1x128xf32>
    %58 = arith.addf %55, %57 : vector<1x128xf32>
    %59 = vector.broadcast %22 : f32 to vector<1x128xf32>
    %60 = arith.mulf %3, %59 : vector<1x128xf32>
    %61 = vector.broadcast %23 : f32 to vector<1x128xf32>
    %62 = arith.mulf %5, %61 : vector<1x128xf32>
    %63 = arith.addf %60, %62 : vector<1x128xf32>
    %64 = vector.broadcast %24 : f32 to vector<1x128xf32>
    %65 = arith.mulf %7, %64 : vector<1x128xf32>
    %66 = arith.addf %63, %65 : vector<1x128xf32>
    %67 = vector.broadcast %25 : f32 to vector<1x128xf32>
    %68 = arith.mulf %9, %67 : vector<1x128xf32>
    %69 = arith.addf %66, %68 : vector<1x128xf32>
    %c7_4 = arith.constant 7 : index
    %c0_5 = arith.constant 0 : index
    %c0_6 = arith.constant 0 : index
    %c0_7 = arith.constant 0 : index
    %70 = vector.load %arg2[%c7_4, %c0_5, %c0_6, %c0_7] : memref<8x4x1x128xf32, #tpu.memory_space<vmem>>, vector<1x4x1x128xf32>
    %71 = vector.shape_cast %70 : vector<1x4x1x128xf32> to vector<4x1x128xf32>
    %72 = vector.extract_strided_slice %71 {offsets = [0, 0, 0], sizes = [1, 1, 128], strides = [1, 1, 1]} : vector<4x1x128xf32> to vector<1x1x128xf32>
    %73 = vector.shape_cast %72 : vector<1x1x128xf32> to vector<1x128xf32>
    %74 = vector.extract_strided_slice %71 {offsets = [1, 0, 0], sizes = [1, 1, 128], strides = [1, 1, 1]} : vector<4x1x128xf32> to vector<1x1x128xf32>
    %75 = vector.shape_cast %74 : vector<1x1x128xf32> to vector<1x128xf32>
    %76 = vector.extract_strided_slice %71 {offsets = [2, 0, 0], sizes = [1, 1, 128], strides = [1, 1, 1]} : vector<4x1x128xf32> to vector<1x1x128xf32>
    %77 = vector.shape_cast %76 : vector<1x1x128xf32> to vector<1x128xf32>
    %78 = vector.extract_strided_slice %71 {offsets = [3, 0, 0], sizes = [1, 1, 128], strides = [1, 1, 1]} : vector<4x1x128xf32> to vector<1x1x128xf32>
    %79 = vector.shape_cast %78 : vector<1x1x128xf32> to vector<1x128xf32>
    %c448 = arith.constant 448 : index
    %80 = memref.load %arg1[%c448] : memref<512xf32, #tpu.memory_space<smem>>
    %c449 = arith.constant 449 : index
    %81 = memref.load %arg1[%c449] : memref<512xf32, #tpu.memory_space<smem>>
    %c450 = arith.constant 450 : index
    %82 = memref.load %arg1[%c450] : memref<512xf32, #tpu.memory_space<smem>>
    %c451 = arith.constant 451 : index
    %83 = memref.load %arg1[%c451] : memref<512xf32, #tpu.memory_space<smem>>
    %c464 = arith.constant 464 : index
    %84 = memref.load %arg1[%c464] : memref<512xf32, #tpu.memory_space<smem>>
    %c465 = arith.constant 465 : index
    %85 = memref.load %arg1[%c465] : memref<512xf32, #tpu.memory_space<smem>>
    %c466 = arith.constant 466 : index
    %86 = memref.load %arg1[%c466] : memref<512xf32, #tpu.memory_space<smem>>
    %c467 = arith.constant 467 : index
    %87 = memref.load %arg1[%c467] : memref<512xf32, #tpu.memory_space<smem>>
    %c480 = arith.constant 480 : index
    %88 = memref.load %arg1[%c480] : memref<512xf32, #tpu.memory_space<smem>>
    %c481 = arith.constant 481 : index
    %89 = memref.load %arg1[%c481] : memref<512xf32, #tpu.memory_space<smem>>
    %c482 = arith.constant 482 : index
    %90 = memref.load %arg1[%c482] : memref<512xf32, #tpu.memory_space<smem>>
    %c483 = arith.constant 483 : index
    %91 = memref.load %arg1[%c483] : memref<512xf32, #tpu.memory_space<smem>>
    %c496 = arith.constant 496 : index
    %92 = memref.load %arg1[%c496] : memref<512xf32, #tpu.memory_space<smem>>
    %c497 = arith.constant 497 : index
    %93 = memref.load %arg1[%c497] : memref<512xf32, #tpu.memory_space<smem>>
    %c498 = arith.constant 498 : index
    %94 = memref.load %arg1[%c498] : memref<512xf32, #tpu.memory_space<smem>>
    %c499 = arith.constant 499 : index
    %95 = memref.load %arg1[%c499] : memref<512xf32, #tpu.memory_space<smem>>
    %96 = vector.broadcast %80 : f32 to vector<1x128xf32>
    %97 = arith.mulf %73, %96 : vector<1x128xf32>
    %98 = vector.broadcast %81 : f32 to vector<1x128xf32>
    %99 = arith.mulf %75, %98 : vector<1x128xf32>
    %100 = arith.addf %97, %99 : vector<1x128xf32>
    %101 = vector.broadcast %82 : f32 to vector<1x128xf32>
    %102 = arith.mulf %77, %101 : vector<1x128xf32>
    %103 = arith.addf %100, %102 : vector<1x128xf32>
    %104 = vector.broadcast %83 : f32 to vector<1x128xf32>
    %105 = arith.mulf %79, %104 : vector<1x128xf32>
    %106 = arith.addf %103, %105 : vector<1x128xf32>
    %107 = vector.broadcast %84 : f32 to vector<1x128xf32>
    %108 = arith.mulf %73, %107 : vector<1x128xf32>
    %109 = vector.broadcast %85 : f32 to vector<1x128xf32>
    %110 = arith.mulf %75, %109 : vector<1x128xf32>
    %111 = arith.addf %108, %110 : vector<1x128xf32>
    %112 = vector.broadcast %86 : f32 to vector<1x128xf32>
    %113 = arith.mulf %77, %112 : vector<1x128xf32>
    %114 = arith.addf %111, %113 : vector<1x128xf32>
    %115 = vector.broadcast %87 : f32 to vector<1x128xf32>
    %116 = arith.mulf %79, %115 : vector<1x128xf32>
    %117 = arith.addf %114, %116 : vector<1x128xf32>
    %118 = vector.broadcast %88 : f32 to vector<1x128xf32>
    %119 = arith.mulf %73, %118 : vector<1x128xf32>
    %120 = vector.broadcast %89 : f32 to vector<1x128xf32>
    %121 = arith.mulf %75, %120 : vector<1x128xf32>
    %122 = arith.addf %119, %121 : vector<1x128xf32>
    %123 = vector.broadcast %90 : f32 to vector<1x128xf32>
    %124 = arith.mulf %77, %123 : vector<1x128xf32>
    %125 = arith.addf %122, %124 : vector<1x128xf32>
    %126 = vector.broadcast %91 : f32 to vector<1x128xf32>
    %127 = arith.mulf %79, %126 : vector<1x128xf32>
    %128 = arith.addf %125, %127 : vector<1x128xf32>
    %129 = vector.broadcast %92 : f32 to vector<1x128xf32>
    %130 = arith.mulf %73, %129 : vector<1x128xf32>
    %131 = vector.broadcast %93 : f32 to vector<1x128xf32>
    %132 = arith.mulf %75, %131 : vector<1x128xf32>
    %133 = arith.addf %130, %132 : vector<1x128xf32>
    %134 = vector.broadcast %94 : f32 to vector<1x128xf32>
    %135 = arith.mulf %77, %134 : vector<1x128xf32>
    %136 = arith.addf %133, %135 : vector<1x128xf32>
    %137 = vector.broadcast %95 : f32 to vector<1x128xf32>
    %138 = arith.mulf %79, %137 : vector<1x128xf32>
    %139 = arith.addf %136, %138 : vector<1x128xf32>
    %c1_8 = arith.constant 1 : index
    %c0_9 = arith.constant 0 : index
    %c0_10 = arith.constant 0 : index
    %c0_11 = arith.constant 0 : index
    %140 = vector.load %arg2[%c1_8, %c0_9, %c0_10, %c0_11] : memref<8x4x1x128xf32, #tpu.memory_space<vmem>>, vector<1x4x1x128xf32>
    %141 = vector.shape_cast %140 : vector<1x4x1x128xf32> to vector<4x1x128xf32>
    %142 = vector.extract_strided_slice %141 {offsets = [0, 0, 0], sizes = [1, 1, 128], strides = [1, 1, 1]} : vector<4x1x128xf32> to vector<1x1x128xf32>
    %143 = vector.shape_cast %142 : vector<1x1x128xf32> to vector<1x128xf32>
    %144 = vector.extract_strided_slice %141 {offsets = [1, 0, 0], sizes = [1, 1, 128], strides = [1, 1, 1]} : vector<4x1x128xf32> to vector<1x1x128xf32>
    %145 = vector.shape_cast %144 : vector<1x1x128xf32> to vector<1x128xf32>
    %146 = vector.extract_strided_slice %141 {offsets = [2, 0, 0], sizes = [1, 1, 128], strides = [1, 1, 1]} : vector<4x1x128xf32> to vector<1x1x128xf32>
    %147 = vector.shape_cast %146 : vector<1x1x128xf32> to vector<1x128xf32>
    %148 = vector.extract_strided_slice %141 {offsets = [3, 0, 0], sizes = [1, 1, 128], strides = [1, 1, 1]} : vector<4x1x128xf32> to vector<1x1x128xf32>
    %149 = vector.shape_cast %148 : vector<1x1x128xf32> to vector<1x128xf32>
    %c64 = arith.constant 64 : index
    %150 = memref.load %arg1[%c64] : memref<512xf32, #tpu.memory_space<smem>>
    %c65 = arith.constant 65 : index
    %151 = memref.load %arg1[%c65] : memref<512xf32, #tpu.memory_space<smem>>
    %c66 = arith.constant 66 : index
    %152 = memref.load %arg1[%c66] : memref<512xf32, #tpu.memory_space<smem>>
    %c67 = arith.constant 67 : index
    %153 = memref.load %arg1[%c67] : memref<512xf32, #tpu.memory_space<smem>>
    %c68 = arith.constant 68 : index
    %154 = memref.load %arg1[%c68] : memref<512xf32, #tpu.memory_space<smem>>
    %c69 = arith.constant 69 : index
    %155 = memref.load %arg1[%c69] : memref<512xf32, #tpu.memory_space<smem>>
    %c70 = arith.constant 70 : index
    %156 = memref.load %arg1[%c70] : memref<512xf32, #tpu.memory_space<smem>>
    %c71 = arith.constant 71 : index
    %157 = memref.load %arg1[%c71] : memref<512xf32, #tpu.memory_space<smem>>
    %c72 = arith.constant 72 : index
    %158 = memref.load %arg1[%c72] : memref<512xf32, #tpu.memory_space<smem>>
    %c73 = arith.constant 73 : index
    %159 = memref.load %arg1[%c73] : memref<512xf32, #tpu.memory_space<smem>>
    %c74 = arith.constant 74 : index
    %160 = memref.load %arg1[%c74] : memref<512xf32, #tpu.memory_space<smem>>
    %c75 = arith.constant 75 : index
    %161 = memref.load %arg1[%c75] : memref<512xf32, #tpu.memory_space<smem>>
    %c76 = arith.constant 76 : index
    %162 = memref.load %arg1[%c76] : memref<512xf32, #tpu.memory_space<smem>>
    %c77 = arith.constant 77 : index
    %163 = memref.load %arg1[%c77] : memref<512xf32, #tpu.memory_space<smem>>
    %c78 = arith.constant 78 : index
    %164 = memref.load %arg1[%c78] : memref<512xf32, #tpu.memory_space<smem>>
    %c79 = arith.constant 79 : index
    %165 = memref.load %arg1[%c79] : memref<512xf32, #tpu.memory_space<smem>>
    %c80 = arith.constant 80 : index
    %166 = memref.load %arg1[%c80] : memref<512xf32, #tpu.memory_space<smem>>
    %c81 = arith.constant 81 : index
    %167 = memref.load %arg1[%c81] : memref<512xf32, #tpu.memory_space<smem>>
    %c82 = arith.constant 82 : index
    %168 = memref.load %arg1[%c82] : memref<512xf32, #tpu.memory_space<smem>>
    %c83 = arith.constant 83 : index
    %169 = memref.load %arg1[%c83] : memref<512xf32, #tpu.memory_space<smem>>
    %c84 = arith.constant 84 : index
    %170 = memref.load %arg1[%c84] : memref<512xf32, #tpu.memory_space<smem>>
    %c85 = arith.constant 85 : index
    %171 = memref.load %arg1[%c85] : memref<512xf32, #tpu.memory_space<smem>>
    %c86 = arith.constant 86 : index
    %172 = memref.load %arg1[%c86] : memref<512xf32, #tpu.memory_space<smem>>
    %c87 = arith.constant 87 : index
    %173 = memref.load %arg1[%c87] : memref<512xf32, #tpu.memory_space<smem>>
    %c88 = arith.constant 88 : index
    %174 = memref.load %arg1[%c88] : memref<512xf32, #tpu.memory_space<smem>>
    %c89 = arith.constant 89 : index
    %175 = memref.load %arg1[%c89] : memref<512xf32, #tpu.memory_space<smem>>
    %c90 = arith.constant 90 : index
    %176 = memref.load %arg1[%c90] : memref<512xf32, #tpu.memory_space<smem>>
    %c91 = arith.constant 91 : index
    %177 = memref.load %arg1[%c91] : memref<512xf32, #tpu.memory_space<smem>>
    %c92 = arith.constant 92 : index
    %178 = memref.load %arg1[%c92] : memref<512xf32, #tpu.memory_space<smem>>
    %c93 = arith.constant 93 : index
    %179 = memref.load %arg1[%c93] : memref<512xf32, #tpu.memory_space<smem>>
    %c94 = arith.constant 94 : index
    %180 = memref.load %arg1[%c94] : memref<512xf32, #tpu.memory_space<smem>>
    %c95 = arith.constant 95 : index
    %181 = memref.load %arg1[%c95] : memref<512xf32, #tpu.memory_space<smem>>
    %c96 = arith.constant 96 : index
    %182 = memref.load %arg1[%c96] : memref<512xf32, #tpu.memory_space<smem>>
    %c97 = arith.constant 97 : index
    %183 = memref.load %arg1[%c97] : memref<512xf32, #tpu.memory_space<smem>>
    %c98 = arith.constant 98 : index
    %184 = memref.load %arg1[%c98] : memref<512xf32, #tpu.memory_space<smem>>
    %c99 = arith.constant 99 : index
    %185 = memref.load %arg1[%c99] : memref<512xf32, #tpu.memory_space<smem>>
    %c100 = arith.constant 100 : index
    %186 = memref.load %arg1[%c100] : memref<512xf32, #tpu.memory_space<smem>>
    %c101 = arith.constant 101 : index
    %187 = memref.load %arg1[%c101] : memref<512xf32, #tpu.memory_space<smem>>
    %c102 = arith.constant 102 : index
    %188 = memref.load %arg1[%c102] : memref<512xf32, #tpu.memory_space<smem>>
    %c103 = arith.constant 103 : index
    %189 = memref.load %arg1[%c103] : memref<512xf32, #tpu.memory_space<smem>>
    %c104 = arith.constant 104 : index
    %190 = memref.load %arg1[%c104] : memref<512xf32, #tpu.memory_space<smem>>
    %c105 = arith.constant 105 : index
    %191 = memref.load %arg1[%c105] : memref<512xf32, #tpu.memory_space<smem>>
    %c106 = arith.constant 106 : index
    %192 = memref.load %arg1[%c106] : memref<512xf32, #tpu.memory_space<smem>>
    %c107 = arith.constant 107 : index
    %193 = memref.load %arg1[%c107] : memref<512xf32, #tpu.memory_space<smem>>
    %c108 = arith.constant 108 : index
    %194 = memref.load %arg1[%c108] : memref<512xf32, #tpu.memory_space<smem>>
    %c109 = arith.constant 109 : index
    %195 = memref.load %arg1[%c109] : memref<512xf32, #tpu.memory_space<smem>>
    %c110 = arith.constant 110 : index
    %196 = memref.load %arg1[%c110] : memref<512xf32, #tpu.memory_space<smem>>
    %c111 = arith.constant 111 : index
    %197 = memref.load %arg1[%c111] : memref<512xf32, #tpu.memory_space<smem>>
    %c112 = arith.constant 112 : index
    %198 = memref.load %arg1[%c112] : memref<512xf32, #tpu.memory_space<smem>>
    %c113 = arith.constant 113 : index
    %199 = memref.load %arg1[%c113] : memref<512xf32, #tpu.memory_space<smem>>
    %c114 = arith.constant 114 : index
    %200 = memref.load %arg1[%c114] : memref<512xf32, #tpu.memory_space<smem>>
    %c115 = arith.constant 115 : index
    %201 = memref.load %arg1[%c115] : memref<512xf32, #tpu.memory_space<smem>>
    %c116 = arith.constant 116 : index
    %202 = memref.load %arg1[%c116] : memref<512xf32, #tpu.memory_space<smem>>
    %c117 = arith.constant 117 : index
    %203 = memref.load %arg1[%c117] : memref<512xf32, #tpu.memory_space<smem>>
    %c118 = arith.constant 118 : index
    %204 = memref.load %arg1[%c118] : memref<512xf32, #tpu.memory_space<smem>>
    %c119 = arith.constant 119 : index
    %205 = memref.load %arg1[%c119] : memref<512xf32, #tpu.memory_space<smem>>
    %c120 = arith.constant 120 : index
    %206 = memref.load %arg1[%c120] : memref<512xf32, #tpu.memory_space<smem>>
    %c121 = arith.constant 121 : index
    %207 = memref.load %arg1[%c121] : memref<512xf32, #tpu.memory_space<smem>>
    %c122 = arith.constant 122 : index
    %208 = memref.load %arg1[%c122] : memref<512xf32, #tpu.memory_space<smem>>
    %c123 = arith.constant 123 : index
    %209 = memref.load %arg1[%c123] : memref<512xf32, #tpu.memory_space<smem>>
    %c124 = arith.constant 124 : index
    %210 = memref.load %arg1[%c124] : memref<512xf32, #tpu.memory_space<smem>>
    %c125 = arith.constant 125 : index
    %211 = memref.load %arg1[%c125] : memref<512xf32, #tpu.memory_space<smem>>
    %c126 = arith.constant 126 : index
    %212 = memref.load %arg1[%c126] : memref<512xf32, #tpu.memory_space<smem>>
    %c127 = arith.constant 127 : index
    %213 = memref.load %arg1[%c127] : memref<512xf32, #tpu.memory_space<smem>>
    %214 = vector.broadcast %150 : f32 to vector<1x128xf32>
    %215 = arith.mulf %143, %214 : vector<1x128xf32>
    %216 = vector.broadcast %151 : f32 to vector<1x128xf32>
    %217 = arith.mulf %145, %216 : vector<1x128xf32>
    %218 = arith.addf %215, %217 : vector<1x128xf32>
    %219 = vector.broadcast %152 : f32 to vector<1x128xf32>
    %220 = arith.mulf %147, %219 : vector<1x128xf32>
    %221 = arith.addf %218, %220 : vector<1x128xf32>
    %222 = vector.broadcast %153 : f32 to vector<1x128xf32>
    %223 = arith.mulf %149, %222 : vector<1x128xf32>
    %224 = arith.addf %221, %223 : vector<1x128xf32>
    %225 = arith.mulf %36, %224 : vector<1x128xf32>
    %226 = vector.broadcast %166 : f32 to vector<1x128xf32>
    %227 = arith.mulf %143, %226 : vector<1x128xf32>
    %228 = vector.broadcast %167 : f32 to vector<1x128xf32>
    %229 = arith.mulf %145, %228 : vector<1x128xf32>
    %230 = arith.addf %227, %229 : vector<1x128xf32>
    %231 = vector.broadcast %168 : f32 to vector<1x128xf32>
    %232 = arith.mulf %147, %231 : vector<1x128xf32>
    %233 = arith.addf %230, %232 : vector<1x128xf32>
    %234 = vector.broadcast %169 : f32 to vector<1x128xf32>
    %235 = arith.mulf %149, %234 : vector<1x128xf32>
    %236 = arith.addf %233, %235 : vector<1x128xf32>
    %237 = arith.mulf %47, %236 : vector<1x128xf32>
    %238 = arith.addf %225, %237 : vector<1x128xf32>
    %239 = vector.broadcast %182 : f32 to vector<1x128xf32>
    %240 = arith.mulf %143, %239 : vector<1x128xf32>
    %241 = vector.broadcast %183 : f32 to vector<1x128xf32>
    %242 = arith.mulf %145, %241 : vector<1x128xf32>
    %243 = arith.addf %240, %242 : vector<1x128xf32>
    %244 = vector.broadcast %184 : f32 to vector<1x128xf32>
    %245 = arith.mulf %147, %244 : vector<1x128xf32>
    %246 = arith.addf %243, %245 : vector<1x128xf32>
    %247 = vector.broadcast %185 : f32 to vector<1x128xf32>
    %248 = arith.mulf %149, %247 : vector<1x128xf32>
    %249 = arith.addf %246, %248 : vector<1x128xf32>
    %250 = arith.mulf %58, %249 : vector<1x128xf32>
    %251 = arith.addf %238, %250 : vector<1x128xf32>
    %252 = vector.broadcast %198 : f32 to vector<1x128xf32>
    %253 = arith.mulf %143, %252 : vector<1x128xf32>
    %254 = vector.broadcast %199 : f32 to vector<1x128xf32>
    %255 = arith.mulf %145, %254 : vector<1x128xf32>
    %256 = arith.addf %253, %255 : vector<1x128xf32>
    %257 = vector.broadcast %200 : f32 to vector<1x128xf32>
    %258 = arith.mulf %147, %257 : vector<1x128xf32>
    %259 = arith.addf %256, %258 : vector<1x128xf32>
    %260 = vector.broadcast %201 : f32 to vector<1x128xf32>
    %261 = arith.mulf %149, %260 : vector<1x128xf32>
    %262 = arith.addf %259, %261 : vector<1x128xf32>
    %263 = arith.mulf %69, %262 : vector<1x128xf32>
    %264 = arith.addf %251, %263 : vector<1x128xf32>
    %265 = vector.broadcast %154 : f32 to vector<1x128xf32>
    %266 = arith.mulf %143, %265 : vector<1x128xf32>
    %267 = vector.broadcast %155 : f32 to vector<1x128xf32>
    %268 = arith.mulf %145, %267 : vector<1x128xf32>
    %269 = arith.addf %266, %268 : vector<1x128xf32>
    %270 = vector.broadcast %156 : f32 to vector<1x128xf32>
    %271 = arith.mulf %147, %270 : vector<1x128xf32>
    %272 = arith.addf %269, %271 : vector<1x128xf32>
    %273 = vector.broadcast %157 : f32 to vector<1x128xf32>
    %274 = arith.mulf %149, %273 : vector<1x128xf32>
    %275 = arith.addf %272, %274 : vector<1x128xf32>
    %276 = arith.mulf %36, %275 : vector<1x128xf32>
    %277 = vector.broadcast %170 : f32 to vector<1x128xf32>
    %278 = arith.mulf %143, %277 : vector<1x128xf32>
    %279 = vector.broadcast %171 : f32 to vector<1x128xf32>
    %280 = arith.mulf %145, %279 : vector<1x128xf32>
    %281 = arith.addf %278, %280 : vector<1x128xf32>
    %282 = vector.broadcast %172 : f32 to vector<1x128xf32>
    %283 = arith.mulf %147, %282 : vector<1x128xf32>
    %284 = arith.addf %281, %283 : vector<1x128xf32>
    %285 = vector.broadcast %173 : f32 to vector<1x128xf32>
    %286 = arith.mulf %149, %285 : vector<1x128xf32>
    %287 = arith.addf %284, %286 : vector<1x128xf32>
    %288 = arith.mulf %47, %287 : vector<1x128xf32>
    %289 = arith.addf %276, %288 : vector<1x128xf32>
    %290 = vector.broadcast %186 : f32 to vector<1x128xf32>
    %291 = arith.mulf %143, %290 : vector<1x128xf32>
    %292 = vector.broadcast %187 : f32 to vector<1x128xf32>
    %293 = arith.mulf %145, %292 : vector<1x128xf32>
    %294 = arith.addf %291, %293 : vector<1x128xf32>
    %295 = vector.broadcast %188 : f32 to vector<1x128xf32>
    %296 = arith.mulf %147, %295 : vector<1x128xf32>
    %297 = arith.addf %294, %296 : vector<1x128xf32>
    %298 = vector.broadcast %189 : f32 to vector<1x128xf32>
    %299 = arith.mulf %149, %298 : vector<1x128xf32>
    %300 = arith.addf %297, %299 : vector<1x128xf32>
    %301 = arith.mulf %58, %300 : vector<1x128xf32>
    %302 = arith.addf %289, %301 : vector<1x128xf32>
    %303 = vector.broadcast %202 : f32 to vector<1x128xf32>
    %304 = arith.mulf %143, %303 : vector<1x128xf32>
    %305 = vector.broadcast %203 : f32 to vector<1x128xf32>
    %306 = arith.mulf %145, %305 : vector<1x128xf32>
    %307 = arith.addf %304, %306 : vector<1x128xf32>
    %308 = vector.broadcast %204 : f32 to vector<1x128xf32>
    %309 = arith.mulf %147, %308 : vector<1x128xf32>
    %310 = arith.addf %307, %309 : vector<1x128xf32>
    %311 = vector.broadcast %205 : f32 to vector<1x128xf32>
    %312 = arith.mulf %149, %311 : vector<1x128xf32>
    %313 = arith.addf %310, %312 : vector<1x128xf32>
    %314 = arith.mulf %69, %313 : vector<1x128xf32>
    %315 = arith.addf %302, %314 : vector<1x128xf32>
    %316 = vector.broadcast %158 : f32 to vector<1x128xf32>
    %317 = arith.mulf %143, %316 : vector<1x128xf32>
    %318 = vector.broadcast %159 : f32 to vector<1x128xf32>
    %319 = arith.mulf %145, %318 : vector<1x128xf32>
    %320 = arith.addf %317, %319 : vector<1x128xf32>
    %321 = vector.broadcast %160 : f32 to vector<1x128xf32>
    %322 = arith.mulf %147, %321 : vector<1x128xf32>
    %323 = arith.addf %320, %322 : vector<1x128xf32>
    %324 = vector.broadcast %161 : f32 to vector<1x128xf32>
    %325 = arith.mulf %149, %324 : vector<1x128xf32>
    %326 = arith.addf %323, %325 : vector<1x128xf32>
    %327 = arith.mulf %36, %326 : vector<1x128xf32>
    %328 = vector.broadcast %174 : f32 to vector<1x128xf32>
    %329 = arith.mulf %143, %328 : vector<1x128xf32>
    %330 = vector.broadcast %175 : f32 to vector<1x128xf32>
    %331 = arith.mulf %145, %330 : vector<1x128xf32>
    %332 = arith.addf %329, %331 : vector<1x128xf32>
    %333 = vector.broadcast %176 : f32 to vector<1x128xf32>
    %334 = arith.mulf %147, %333 : vector<1x128xf32>
    %335 = arith.addf %332, %334 : vector<1x128xf32>
    %336 = vector.broadcast %177 : f32 to vector<1x128xf32>
    %337 = arith.mulf %149, %336 : vector<1x128xf32>
    %338 = arith.addf %335, %337 : vector<1x128xf32>
    %339 = arith.mulf %47, %338 : vector<1x128xf32>
    %340 = arith.addf %327, %339 : vector<1x128xf32>
    %341 = vector.broadcast %190 : f32 to vector<1x128xf32>
    %342 = arith.mulf %143, %341 : vector<1x128xf32>
    %343 = vector.broadcast %191 : f32 to vector<1x128xf32>
    %344 = arith.mulf %145, %343 : vector<1x128xf32>
    %345 = arith.addf %342, %344 : vector<1x128xf32>
    %346 = vector.broadcast %192 : f32 to vector<1x128xf32>
    %347 = arith.mulf %147, %346 : vector<1x128xf32>
    %348 = arith.addf %345, %347 : vector<1x128xf32>
    %349 = vector.broadcast %193 : f32 to vector<1x128xf32>
    %350 = arith.mulf %149, %349 : vector<1x128xf32>
    %351 = arith.addf %348, %350 : vector<1x128xf32>
    %352 = arith.mulf %58, %351 : vector<1x128xf32>
    %353 = arith.addf %340, %352 : vector<1x128xf32>
    %354 = vector.broadcast %206 : f32 to vector<1x128xf32>
    %355 = arith.mulf %143, %354 : vector<1x128xf32>
    %356 = vector.broadcast %207 : f32 to vector<1x128xf32>
    %357 = arith.mulf %145, %356 : vector<1x128xf32>
    %358 = arith.addf %355, %357 : vector<1x128xf32>
    %359 = vector.broadcast %208 : f32 to vector<1x128xf32>
    %360 = arith.mulf %147, %359 : vector<1x128xf32>
    %361 = arith.addf %358, %360 : vector<1x128xf32>
    %362 = vector.broadcast %209 : f32 to vector<1x128xf32>
    %363 = arith.mulf %149, %362 : vector<1x128xf32>
    %364 = arith.addf %361, %363 : vector<1x128xf32>
    %365 = arith.mulf %69, %364 : vector<1x128xf32>
    %366 = arith.addf %353, %365 : vector<1x128xf32>
    %367 = vector.broadcast %162 : f32 to vector<1x128xf32>
    %368 = arith.mulf %143, %367 : vector<1x128xf32>
    %369 = vector.broadcast %163 : f32 to vector<1x128xf32>
    %370 = arith.mulf %145, %369 : vector<1x128xf32>
    %371 = arith.addf %368, %370 : vector<1x128xf32>
    %372 = vector.broadcast %164 : f32 to vector<1x128xf32>
    %373 = arith.mulf %147, %372 : vector<1x128xf32>
    %374 = arith.addf %371, %373 : vector<1x128xf32>
    %375 = vector.broadcast %165 : f32 to vector<1x128xf32>
    %376 = arith.mulf %149, %375 : vector<1x128xf32>
    %377 = arith.addf %374, %376 : vector<1x128xf32>
    %378 = arith.mulf %36, %377 : vector<1x128xf32>
    %379 = vector.broadcast %178 : f32 to vector<1x128xf32>
    %380 = arith.mulf %143, %379 : vector<1x128xf32>
    %381 = vector.broadcast %179 : f32 to vector<1x128xf32>
    %382 = arith.mulf %145, %381 : vector<1x128xf32>
    %383 = arith.addf %380, %382 : vector<1x128xf32>
    %384 = vector.broadcast %180 : f32 to vector<1x128xf32>
    %385 = arith.mulf %147, %384 : vector<1x128xf32>
    %386 = arith.addf %383, %385 : vector<1x128xf32>
    %387 = vector.broadcast %181 : f32 to vector<1x128xf32>
    %388 = arith.mulf %149, %387 : vector<1x128xf32>
    %389 = arith.addf %386, %388 : vector<1x128xf32>
    %390 = arith.mulf %47, %389 : vector<1x128xf32>
    %391 = arith.addf %378, %390 : vector<1x128xf32>
    %392 = vector.broadcast %194 : f32 to vector<1x128xf32>
    %393 = arith.mulf %143, %392 : vector<1x128xf32>
    %394 = vector.broadcast %195 : f32 to vector<1x128xf32>
    %395 = arith.mulf %145, %394 : vector<1x128xf32>
    %396 = arith.addf %393, %395 : vector<1x128xf32>
    %397 = vector.broadcast %196 : f32 to vector<1x128xf32>
    %398 = arith.mulf %147, %397 : vector<1x128xf32>
    %399 = arith.addf %396, %398 : vector<1x128xf32>
    %400 = vector.broadcast %197 : f32 to vector<1x128xf32>
    %401 = arith.mulf %149, %400 : vector<1x128xf32>
    %402 = arith.addf %399, %401 : vector<1x128xf32>
    %403 = arith.mulf %58, %402 : vector<1x128xf32>
    %404 = arith.addf %391, %403 : vector<1x128xf32>
    %405 = vector.broadcast %210 : f32 to vector<1x128xf32>
    %406 = arith.mulf %143, %405 : vector<1x128xf32>
    %407 = vector.broadcast %211 : f32 to vector<1x128xf32>
    %408 = arith.mulf %145, %407 : vector<1x128xf32>
    %409 = arith.addf %406, %408 : vector<1x128xf32>
    %410 = vector.broadcast %212 : f32 to vector<1x128xf32>
    %411 = arith.mulf %147, %410 : vector<1x128xf32>
    %412 = arith.addf %409, %411 : vector<1x128xf32>
    %413 = vector.broadcast %213 : f32 to vector<1x128xf32>
    %414 = arith.mulf %149, %413 : vector<1x128xf32>
    %415 = arith.addf %412, %414 : vector<1x128xf32>
    %416 = arith.mulf %69, %415 : vector<1x128xf32>
    %417 = arith.addf %404, %416 : vector<1x128xf32>
    %c6_12 = arith.constant 6 : index
    %c0_13 = arith.constant 0 : index
    %c0_14 = arith.constant 0 : index
    %c0_15 = arith.constant 0 : index
    %418 = vector.load %arg2[%c6_12, %c0_13, %c0_14, %c0_15] : memref<8x4x1x128xf32, #tpu.memory_space<vmem>>, vector<1x4x1x128xf32>
    %419 = vector.shape_cast %418 : vector<1x4x1x128xf32> to vector<4x1x128xf32>
    %420 = vector.extract_strided_slice %419 {offsets = [0, 0, 0], sizes = [1, 1, 128], strides = [1, 1, 1]} : vector<4x1x128xf32> to vector<1x1x128xf32>
    %421 = vector.shape_cast %420 : vector<1x1x128xf32> to vector<1x128xf32>
    %422 = vector.extract_strided_slice %419 {offsets = [1, 0, 0], sizes = [1, 1, 128], strides = [1, 1, 1]} : vector<4x1x128xf32> to vector<1x1x128xf32>
    %423 = vector.shape_cast %422 : vector<1x1x128xf32> to vector<1x128xf32>
    %424 = vector.extract_strided_slice %419 {offsets = [2, 0, 0], sizes = [1, 1, 128], strides = [1, 1, 1]} : vector<4x1x128xf32> to vector<1x1x128xf32>
    %425 = vector.shape_cast %424 : vector<1x1x128xf32> to vector<1x128xf32>
    %426 = vector.extract_strided_slice %419 {offsets = [3, 0, 0], sizes = [1, 1, 128], strides = [1, 1, 1]} : vector<4x1x128xf32> to vector<1x1x128xf32>
    %427 = vector.shape_cast %426 : vector<1x1x128xf32> to vector<1x128xf32>
    %c384 = arith.constant 384 : index
    %428 = memref.load %arg1[%c384] : memref<512xf32, #tpu.memory_space<smem>>
    %c385 = arith.constant 385 : index
    %429 = memref.load %arg1[%c385] : memref<512xf32, #tpu.memory_space<smem>>
    %c386 = arith.constant 386 : index
    %430 = memref.load %arg1[%c386] : memref<512xf32, #tpu.memory_space<smem>>
    %c387 = arith.constant 387 : index
    %431 = memref.load %arg1[%c387] : memref<512xf32, #tpu.memory_space<smem>>
    %c388 = arith.constant 388 : index
    %432 = memref.load %arg1[%c388] : memref<512xf32, #tpu.memory_space<smem>>
    %c389 = arith.constant 389 : index
    %433 = memref.load %arg1[%c389] : memref<512xf32, #tpu.memory_space<smem>>
    %c390 = arith.constant 390 : index
    %434 = memref.load %arg1[%c390] : memref<512xf32, #tpu.memory_space<smem>>
    %c391 = arith.constant 391 : index
    %435 = memref.load %arg1[%c391] : memref<512xf32, #tpu.memory_space<smem>>
    %c392 = arith.constant 392 : index
    %436 = memref.load %arg1[%c392] : memref<512xf32, #tpu.memory_space<smem>>
    %c393 = arith.constant 393 : index
    %437 = memref.load %arg1[%c393] : memref<512xf32, #tpu.memory_space<smem>>
    %c394 = arith.constant 394 : index
    %438 = memref.load %arg1[%c394] : memref<512xf32, #tpu.memory_space<smem>>
    %c395 = arith.constant 395 : index
    %439 = memref.load %arg1[%c395] : memref<512xf32, #tpu.memory_space<smem>>
    %c396 = arith.constant 396 : index
    %440 = memref.load %arg1[%c396] : memref<512xf32, #tpu.memory_space<smem>>
    %c397 = arith.constant 397 : index
    %441 = memref.load %arg1[%c397] : memref<512xf32, #tpu.memory_space<smem>>
    %c398 = arith.constant 398 : index
    %442 = memref.load %arg1[%c398] : memref<512xf32, #tpu.memory_space<smem>>
    %c399 = arith.constant 399 : index
    %443 = memref.load %arg1[%c399] : memref<512xf32, #tpu.memory_space<smem>>
    %c400 = arith.constant 400 : index
    %444 = memref.load %arg1[%c400] : memref<512xf32, #tpu.memory_space<smem>>
    %c401 = arith.constant 401 : index
    %445 = memref.load %arg1[%c401] : memref<512xf32, #tpu.memory_space<smem>>
    %c402 = arith.constant 402 : index
    %446 = memref.load %arg1[%c402] : memref<512xf32, #tpu.memory_space<smem>>
    %c403 = arith.constant 403 : index
    %447 = memref.load %arg1[%c403] : memref<512xf32, #tpu.memory_space<smem>>
    %c404 = arith.constant 404 : index
    %448 = memref.load %arg1[%c404] : memref<512xf32, #tpu.memory_space<smem>>
    %c405 = arith.constant 405 : index
    %449 = memref.load %arg1[%c405] : memref<512xf32, #tpu.memory_space<smem>>
    %c406 = arith.constant 406 : index
    %450 = memref.load %arg1[%c406] : memref<512xf32, #tpu.memory_space<smem>>
    %c407 = arith.constant 407 : index
    %451 = memref.load %arg1[%c407] : memref<512xf32, #tpu.memory_space<smem>>
    %c408 = arith.constant 408 : index
    %452 = memref.load %arg1[%c408] : memref<512xf32, #tpu.memory_space<smem>>
    %c409 = arith.constant 409 : index
    %453 = memref.load %arg1[%c409] : memref<512xf32, #tpu.memory_space<smem>>
    %c410 = arith.constant 410 : index
    %454 = memref.load %arg1[%c410] : memref<512xf32, #tpu.memory_space<smem>>
    %c411 = arith.constant 411 : index
    %455 = memref.load %arg1[%c411] : memref<512xf32, #tpu.memory_space<smem>>
    %c412 = arith.constant 412 : index
    %456 = memref.load %arg1[%c412] : memref<512xf32, #tpu.memory_space<smem>>
    %c413 = arith.constant 413 : index
    %457 = memref.load %arg1[%c413] : memref<512xf32, #tpu.memory_space<smem>>
    %c414 = arith.constant 414 : index
    %458 = memref.load %arg1[%c414] : memref<512xf32, #tpu.memory_space<smem>>
    %c415 = arith.constant 415 : index
    %459 = memref.load %arg1[%c415] : memref<512xf32, #tpu.memory_space<smem>>
    %c416 = arith.constant 416 : index
    %460 = memref.load %arg1[%c416] : memref<512xf32, #tpu.memory_space<smem>>
    %c417 = arith.constant 417 : index
    %461 = memref.load %arg1[%c417] : memref<512xf32, #tpu.memory_space<smem>>
    %c418 = arith.constant 418 : index
    %462 = memref.load %arg1[%c418] : memref<512xf32, #tpu.memory_space<smem>>
    %c419 = arith.constant 419 : index
    %463 = memref.load %arg1[%c419] : memref<512xf32, #tpu.memory_space<smem>>
    %c420 = arith.constant 420 : index
    %464 = memref.load %arg1[%c420] : memref<512xf32, #tpu.memory_space<smem>>
    %c421 = arith.constant 421 : index
    %465 = memref.load %arg1[%c421] : memref<512xf32, #tpu.memory_space<smem>>
    %c422 = arith.constant 422 : index
    %466 = memref.load %arg1[%c422] : memref<512xf32, #tpu.memory_space<smem>>
    %c423 = arith.constant 423 : index
    %467 = memref.load %arg1[%c423] : memref<512xf32, #tpu.memory_space<smem>>
    %c424 = arith.constant 424 : index
    %468 = memref.load %arg1[%c424] : memref<512xf32, #tpu.memory_space<smem>>
    %c425 = arith.constant 425 : index
    %469 = memref.load %arg1[%c425] : memref<512xf32, #tpu.memory_space<smem>>
    %c426 = arith.constant 426 : index
    %470 = memref.load %arg1[%c426] : memref<512xf32, #tpu.memory_space<smem>>
    %c427 = arith.constant 427 : index
    %471 = memref.load %arg1[%c427] : memref<512xf32, #tpu.memory_space<smem>>
    %c428 = arith.constant 428 : index
    %472 = memref.load %arg1[%c428] : memref<512xf32, #tpu.memory_space<smem>>
    %c429 = arith.constant 429 : index
    %473 = memref.load %arg1[%c429] : memref<512xf32, #tpu.memory_space<smem>>
    %c430 = arith.constant 430 : index
    %474 = memref.load %arg1[%c430] : memref<512xf32, #tpu.memory_space<smem>>
    %c431 = arith.constant 431 : index
    %475 = memref.load %arg1[%c431] : memref<512xf32, #tpu.memory_space<smem>>
    %c432 = arith.constant 432 : index
    %476 = memref.load %arg1[%c432] : memref<512xf32, #tpu.memory_space<smem>>
    %c433 = arith.constant 433 : index
    %477 = memref.load %arg1[%c433] : memref<512xf32, #tpu.memory_space<smem>>
    %c434 = arith.constant 434 : index
    %478 = memref.load %arg1[%c434] : memref<512xf32, #tpu.memory_space<smem>>
    %c435 = arith.constant 435 : index
    %479 = memref.load %arg1[%c435] : memref<512xf32, #tpu.memory_space<smem>>
    %c436 = arith.constant 436 : index
    %480 = memref.load %arg1[%c436] : memref<512xf32, #tpu.memory_space<smem>>
    %c437 = arith.constant 437 : index
    %481 = memref.load %arg1[%c437] : memref<512xf32, #tpu.memory_space<smem>>
    %c438 = arith.constant 438 : index
    %482 = memref.load %arg1[%c438] : memref<512xf32, #tpu.memory_space<smem>>
    %c439 = arith.constant 439 : index
    %483 = memref.load %arg1[%c439] : memref<512xf32, #tpu.memory_space<smem>>
    %c440 = arith.constant 440 : index
    %484 = memref.load %arg1[%c440] : memref<512xf32, #tpu.memory_space<smem>>
    %c441 = arith.constant 441 : index
    %485 = memref.load %arg1[%c441] : memref<512xf32, #tpu.memory_space<smem>>
    %c442 = arith.constant 442 : index
    %486 = memref.load %arg1[%c442] : memref<512xf32, #tpu.memory_space<smem>>
    %c443 = arith.constant 443 : index
    %487 = memref.load %arg1[%c443] : memref<512xf32, #tpu.memory_space<smem>>
    %c444 = arith.constant 444 : index
    %488 = memref.load %arg1[%c444] : memref<512xf32, #tpu.memory_space<smem>>
    %c445 = arith.constant 445 : index
    %489 = memref.load %arg1[%c445] : memref<512xf32, #tpu.memory_space<smem>>
    %c446 = arith.constant 446 : index
    %490 = memref.load %arg1[%c446] : memref<512xf32, #tpu.memory_space<smem>>
    %c447 = arith.constant 447 : index
    %491 = memref.load %arg1[%c447] : memref<512xf32, #tpu.memory_space<smem>>
    %492 = vector.broadcast %428 : f32 to vector<1x128xf32>
    %493 = arith.mulf %421, %492 : vector<1x128xf32>
    %494 = vector.broadcast %429 : f32 to vector<1x128xf32>
    %495 = arith.mulf %423, %494 : vector<1x128xf32>
    %496 = arith.addf %493, %495 : vector<1x128xf32>
    %497 = vector.broadcast %430 : f32 to vector<1x128xf32>
    %498 = arith.mulf %425, %497 : vector<1x128xf32>
    %499 = arith.addf %496, %498 : vector<1x128xf32>
    %500 = vector.broadcast %431 : f32 to vector<1x128xf32>
    %501 = arith.mulf %427, %500 : vector<1x128xf32>
    %502 = arith.addf %499, %501 : vector<1x128xf32>
    %503 = arith.mulf %106, %502 : vector<1x128xf32>
    %504 = vector.broadcast %432 : f32 to vector<1x128xf32>
    %505 = arith.mulf %421, %504 : vector<1x128xf32>
    %506 = vector.broadcast %433 : f32 to vector<1x128xf32>
    %507 = arith.mulf %423, %506 : vector<1x128xf32>
    %508 = arith.addf %505, %507 : vector<1x128xf32>
    %509 = vector.broadcast %434 : f32 to vector<1x128xf32>
    %510 = arith.mulf %425, %509 : vector<1x128xf32>
    %511 = arith.addf %508, %510 : vector<1x128xf32>
    %512 = vector.broadcast %435 : f32 to vector<1x128xf32>
    %513 = arith.mulf %427, %512 : vector<1x128xf32>
    %514 = arith.addf %511, %513 : vector<1x128xf32>
    %515 = arith.mulf %117, %514 : vector<1x128xf32>
    %516 = arith.addf %503, %515 : vector<1x128xf32>
    %517 = vector.broadcast %436 : f32 to vector<1x128xf32>
    %518 = arith.mulf %421, %517 : vector<1x128xf32>
    %519 = vector.broadcast %437 : f32 to vector<1x128xf32>
    %520 = arith.mulf %423, %519 : vector<1x128xf32>
    %521 = arith.addf %518, %520 : vector<1x128xf32>
    %522 = vector.broadcast %438 : f32 to vector<1x128xf32>
    %523 = arith.mulf %425, %522 : vector<1x128xf32>
    %524 = arith.addf %521, %523 : vector<1x128xf32>
    %525 = vector.broadcast %439 : f32 to vector<1x128xf32>
    %526 = arith.mulf %427, %525 : vector<1x128xf32>
    %527 = arith.addf %524, %526 : vector<1x128xf32>
    %528 = arith.mulf %128, %527 : vector<1x128xf32>
    %529 = arith.addf %516, %528 : vector<1x128xf32>
    %530 = vector.broadcast %440 : f32 to vector<1x128xf32>
    %531 = arith.mulf %421, %530 : vector<1x128xf32>
    %532 = vector.broadcast %441 : f32 to vector<1x128xf32>
    %533 = arith.mulf %423, %532 : vector<1x128xf32>
    %534 = arith.addf %531, %533 : vector<1x128xf32>
    %535 = vector.broadcast %442 : f32 to vector<1x128xf32>
    %536 = arith.mulf %425, %535 : vector<1x128xf32>
    %537 = arith.addf %534, %536 : vector<1x128xf32>
    %538 = vector.broadcast %443 : f32 to vector<1x128xf32>
    %539 = arith.mulf %427, %538 : vector<1x128xf32>
    %540 = arith.addf %537, %539 : vector<1x128xf32>
    %541 = arith.mulf %139, %540 : vector<1x128xf32>
    %542 = arith.addf %529, %541 : vector<1x128xf32>
    %543 = vector.broadcast %444 : f32 to vector<1x128xf32>
    %544 = arith.mulf %421, %543 : vector<1x128xf32>
    %545 = vector.broadcast %445 : f32 to vector<1x128xf32>
    %546 = arith.mulf %423, %545 : vector<1x128xf32>
    %547 = arith.addf %544, %546 : vector<1x128xf32>
    %548 = vector.broadcast %446 : f32 to vector<1x128xf32>
    %549 = arith.mulf %425, %548 : vector<1x128xf32>
    %550 = arith.addf %547, %549 : vector<1x128xf32>
    %551 = vector.broadcast %447 : f32 to vector<1x128xf32>
    %552 = arith.mulf %427, %551 : vector<1x128xf32>
    %553 = arith.addf %550, %552 : vector<1x128xf32>
    %554 = arith.mulf %106, %553 : vector<1x128xf32>
    %555 = vector.broadcast %448 : f32 to vector<1x128xf32>
    %556 = arith.mulf %421, %555 : vector<1x128xf32>
    %557 = vector.broadcast %449 : f32 to vector<1x128xf32>
    %558 = arith.mulf %423, %557 : vector<1x128xf32>
    %559 = arith.addf %556, %558 : vector<1x128xf32>
    %560 = vector.broadcast %450 : f32 to vector<1x128xf32>
    %561 = arith.mulf %425, %560 : vector<1x128xf32>
    %562 = arith.addf %559, %561 : vector<1x128xf32>
    %563 = vector.broadcast %451 : f32 to vector<1x128xf32>
    %564 = arith.mulf %427, %563 : vector<1x128xf32>
    %565 = arith.addf %562, %564 : vector<1x128xf32>
    %566 = arith.mulf %117, %565 : vector<1x128xf32>
    %567 = arith.addf %554, %566 : vector<1x128xf32>
    %568 = vector.broadcast %452 : f32 to vector<1x128xf32>
    %569 = arith.mulf %421, %568 : vector<1x128xf32>
    %570 = vector.broadcast %453 : f32 to vector<1x128xf32>
    %571 = arith.mulf %423, %570 : vector<1x128xf32>
    %572 = arith.addf %569, %571 : vector<1x128xf32>
    %573 = vector.broadcast %454 : f32 to vector<1x128xf32>
    %574 = arith.mulf %425, %573 : vector<1x128xf32>
    %575 = arith.addf %572, %574 : vector<1x128xf32>
    %576 = vector.broadcast %455 : f32 to vector<1x128xf32>
    %577 = arith.mulf %427, %576 : vector<1x128xf32>
    %578 = arith.addf %575, %577 : vector<1x128xf32>
    %579 = arith.mulf %128, %578 : vector<1x128xf32>
    %580 = arith.addf %567, %579 : vector<1x128xf32>
    %581 = vector.broadcast %456 : f32 to vector<1x128xf32>
    %582 = arith.mulf %421, %581 : vector<1x128xf32>
    %583 = vector.broadcast %457 : f32 to vector<1x128xf32>
    %584 = arith.mulf %423, %583 : vector<1x128xf32>
    %585 = arith.addf %582, %584 : vector<1x128xf32>
    %586 = vector.broadcast %458 : f32 to vector<1x128xf32>
    %587 = arith.mulf %425, %586 : vector<1x128xf32>
    %588 = arith.addf %585, %587 : vector<1x128xf32>
    %589 = vector.broadcast %459 : f32 to vector<1x128xf32>
    %590 = arith.mulf %427, %589 : vector<1x128xf32>
    %591 = arith.addf %588, %590 : vector<1x128xf32>
    %592 = arith.mulf %139, %591 : vector<1x128xf32>
    %593 = arith.addf %580, %592 : vector<1x128xf32>
    %594 = vector.broadcast %460 : f32 to vector<1x128xf32>
    %595 = arith.mulf %421, %594 : vector<1x128xf32>
    %596 = vector.broadcast %461 : f32 to vector<1x128xf32>
    %597 = arith.mulf %423, %596 : vector<1x128xf32>
    %598 = arith.addf %595, %597 : vector<1x128xf32>
    %599 = vector.broadcast %462 : f32 to vector<1x128xf32>
    %600 = arith.mulf %425, %599 : vector<1x128xf32>
    %601 = arith.addf %598, %600 : vector<1x128xf32>
    %602 = vector.broadcast %463 : f32 to vector<1x128xf32>
    %603 = arith.mulf %427, %602 : vector<1x128xf32>
    %604 = arith.addf %601, %603 : vector<1x128xf32>
    %605 = arith.mulf %106, %604 : vector<1x128xf32>
    %606 = vector.broadcast %464 : f32 to vector<1x128xf32>
    %607 = arith.mulf %421, %606 : vector<1x128xf32>
    %608 = vector.broadcast %465 : f32 to vector<1x128xf32>
    %609 = arith.mulf %423, %608 : vector<1x128xf32>
    %610 = arith.addf %607, %609 : vector<1x128xf32>
    %611 = vector.broadcast %466 : f32 to vector<1x128xf32>
    %612 = arith.mulf %425, %611 : vector<1x128xf32>
    %613 = arith.addf %610, %612 : vector<1x128xf32>
    %614 = vector.broadcast %467 : f32 to vector<1x128xf32>
    %615 = arith.mulf %427, %614 : vector<1x128xf32>
    %616 = arith.addf %613, %615 : vector<1x128xf32>
    %617 = arith.mulf %117, %616 : vector<1x128xf32>
    %618 = arith.addf %605, %617 : vector<1x128xf32>
    %619 = vector.broadcast %468 : f32 to vector<1x128xf32>
    %620 = arith.mulf %421, %619 : vector<1x128xf32>
    %621 = vector.broadcast %469 : f32 to vector<1x128xf32>
    %622 = arith.mulf %423, %621 : vector<1x128xf32>
    %623 = arith.addf %620, %622 : vector<1x128xf32>
    %624 = vector.broadcast %470 : f32 to vector<1x128xf32>
    %625 = arith.mulf %425, %624 : vector<1x128xf32>
    %626 = arith.addf %623, %625 : vector<1x128xf32>
    %627 = vector.broadcast %471 : f32 to vector<1x128xf32>
    %628 = arith.mulf %427, %627 : vector<1x128xf32>
    %629 = arith.addf %626, %628 : vector<1x128xf32>
    %630 = arith.mulf %128, %629 : vector<1x128xf32>
    %631 = arith.addf %618, %630 : vector<1x128xf32>
    %632 = vector.broadcast %472 : f32 to vector<1x128xf32>
    %633 = arith.mulf %421, %632 : vector<1x128xf32>
    %634 = vector.broadcast %473 : f32 to vector<1x128xf32>
    %635 = arith.mulf %423, %634 : vector<1x128xf32>
    %636 = arith.addf %633, %635 : vector<1x128xf32>
    %637 = vector.broadcast %474 : f32 to vector<1x128xf32>
    %638 = arith.mulf %425, %637 : vector<1x128xf32>
    %639 = arith.addf %636, %638 : vector<1x128xf32>
    %640 = vector.broadcast %475 : f32 to vector<1x128xf32>
    %641 = arith.mulf %427, %640 : vector<1x128xf32>
    %642 = arith.addf %639, %641 : vector<1x128xf32>
    %643 = arith.mulf %139, %642 : vector<1x128xf32>
    %644 = arith.addf %631, %643 : vector<1x128xf32>
    %645 = vector.broadcast %476 : f32 to vector<1x128xf32>
    %646 = arith.mulf %421, %645 : vector<1x128xf32>
    %647 = vector.broadcast %477 : f32 to vector<1x128xf32>
    %648 = arith.mulf %423, %647 : vector<1x128xf32>
    %649 = arith.addf %646, %648 : vector<1x128xf32>
    %650 = vector.broadcast %478 : f32 to vector<1x128xf32>
    %651 = arith.mulf %425, %650 : vector<1x128xf32>
    %652 = arith.addf %649, %651 : vector<1x128xf32>
    %653 = vector.broadcast %479 : f32 to vector<1x128xf32>
    %654 = arith.mulf %427, %653 : vector<1x128xf32>
    %655 = arith.addf %652, %654 : vector<1x128xf32>
    %656 = arith.mulf %106, %655 : vector<1x128xf32>
    %657 = vector.broadcast %480 : f32 to vector<1x128xf32>
    %658 = arith.mulf %421, %657 : vector<1x128xf32>
    %659 = vector.broadcast %481 : f32 to vector<1x128xf32>
    %660 = arith.mulf %423, %659 : vector<1x128xf32>
    %661 = arith.addf %658, %660 : vector<1x128xf32>
    %662 = vector.broadcast %482 : f32 to vector<1x128xf32>
    %663 = arith.mulf %425, %662 : vector<1x128xf32>
    %664 = arith.addf %661, %663 : vector<1x128xf32>
    %665 = vector.broadcast %483 : f32 to vector<1x128xf32>
    %666 = arith.mulf %427, %665 : vector<1x128xf32>
    %667 = arith.addf %664, %666 : vector<1x128xf32>
    %668 = arith.mulf %117, %667 : vector<1x128xf32>
    %669 = arith.addf %656, %668 : vector<1x128xf32>
    %670 = vector.broadcast %484 : f32 to vector<1x128xf32>
    %671 = arith.mulf %421, %670 : vector<1x128xf32>
    %672 = vector.broadcast %485 : f32 to vector<1x128xf32>
    %673 = arith.mulf %423, %672 : vector<1x128xf32>
    %674 = arith.addf %671, %673 : vector<1x128xf32>
    %675 = vector.broadcast %486 : f32 to vector<1x128xf32>
    %676 = arith.mulf %425, %675 : vector<1x128xf32>
    %677 = arith.addf %674, %676 : vector<1x128xf32>
    %678 = vector.broadcast %487 : f32 to vector<1x128xf32>
    %679 = arith.mulf %427, %678 : vector<1x128xf32>
    %680 = arith.addf %677, %679 : vector<1x128xf32>
    %681 = arith.mulf %128, %680 : vector<1x128xf32>
    %682 = arith.addf %669, %681 : vector<1x128xf32>
    %683 = vector.broadcast %488 : f32 to vector<1x128xf32>
    %684 = arith.mulf %421, %683 : vector<1x128xf32>
    %685 = vector.broadcast %489 : f32 to vector<1x128xf32>
    %686 = arith.mulf %423, %685 : vector<1x128xf32>
    %687 = arith.addf %684, %686 : vector<1x128xf32>
    %688 = vector.broadcast %490 : f32 to vector<1x128xf32>
    %689 = arith.mulf %425, %688 : vector<1x128xf32>
    %690 = arith.addf %687, %689 : vector<1x128xf32>
    %691 = vector.broadcast %491 : f32 to vector<1x128xf32>
    %692 = arith.mulf %427, %691 : vector<1x128xf32>
    %693 = arith.addf %690, %692 : vector<1x128xf32>
    %694 = arith.mulf %139, %693 : vector<1x128xf32>
    %695 = arith.addf %682, %694 : vector<1x128xf32>
    %c2_16 = arith.constant 2 : index
    %c0_17 = arith.constant 0 : index
    %c0_18 = arith.constant 0 : index
    %c0_19 = arith.constant 0 : index
    %696 = vector.load %arg2[%c2_16, %c0_17, %c0_18, %c0_19] : memref<8x4x1x128xf32, #tpu.memory_space<vmem>>, vector<1x4x1x128xf32>
    %697 = vector.shape_cast %696 : vector<1x4x1x128xf32> to vector<4x1x128xf32>
    %698 = vector.extract_strided_slice %697 {offsets = [0, 0, 0], sizes = [1, 1, 128], strides = [1, 1, 1]} : vector<4x1x128xf32> to vector<1x1x128xf32>
    %699 = vector.shape_cast %698 : vector<1x1x128xf32> to vector<1x128xf32>
    %700 = vector.extract_strided_slice %697 {offsets = [1, 0, 0], sizes = [1, 1, 128], strides = [1, 1, 1]} : vector<4x1x128xf32> to vector<1x1x128xf32>
    %701 = vector.shape_cast %700 : vector<1x1x128xf32> to vector<1x128xf32>
    %702 = vector.extract_strided_slice %697 {offsets = [2, 0, 0], sizes = [1, 1, 128], strides = [1, 1, 1]} : vector<4x1x128xf32> to vector<1x1x128xf32>
    %703 = vector.shape_cast %702 : vector<1x1x128xf32> to vector<1x128xf32>
    %704 = vector.extract_strided_slice %697 {offsets = [3, 0, 0], sizes = [1, 1, 128], strides = [1, 1, 1]} : vector<4x1x128xf32> to vector<1x1x128xf32>
    %705 = vector.shape_cast %704 : vector<1x1x128xf32> to vector<1x128xf32>
    %c128 = arith.constant 128 : index
    %706 = memref.load %arg1[%c128] : memref<512xf32, #tpu.memory_space<smem>>
    %c129 = arith.constant 129 : index
    %707 = memref.load %arg1[%c129] : memref<512xf32, #tpu.memory_space<smem>>
    %c130 = arith.constant 130 : index
    %708 = memref.load %arg1[%c130] : memref<512xf32, #tpu.memory_space<smem>>
    %c131 = arith.constant 131 : index
    %709 = memref.load %arg1[%c131] : memref<512xf32, #tpu.memory_space<smem>>
    %c132 = arith.constant 132 : index
    %710 = memref.load %arg1[%c132] : memref<512xf32, #tpu.memory_space<smem>>
    %c133 = arith.constant 133 : index
    %711 = memref.load %arg1[%c133] : memref<512xf32, #tpu.memory_space<smem>>
    %c134 = arith.constant 134 : index
    %712 = memref.load %arg1[%c134] : memref<512xf32, #tpu.memory_space<smem>>
    %c135 = arith.constant 135 : index
    %713 = memref.load %arg1[%c135] : memref<512xf32, #tpu.memory_space<smem>>
    %c136 = arith.constant 136 : index
    %714 = memref.load %arg1[%c136] : memref<512xf32, #tpu.memory_space<smem>>
    %c137 = arith.constant 137 : index
    %715 = memref.load %arg1[%c137] : memref<512xf32, #tpu.memory_space<smem>>
    %c138 = arith.constant 138 : index
    %716 = memref.load %arg1[%c138] : memref<512xf32, #tpu.memory_space<smem>>
    %c139 = arith.constant 139 : index
    %717 = memref.load %arg1[%c139] : memref<512xf32, #tpu.memory_space<smem>>
    %c140 = arith.constant 140 : index
    %718 = memref.load %arg1[%c140] : memref<512xf32, #tpu.memory_space<smem>>
    %c141 = arith.constant 141 : index
    %719 = memref.load %arg1[%c141] : memref<512xf32, #tpu.memory_space<smem>>
    %c142 = arith.constant 142 : index
    %720 = memref.load %arg1[%c142] : memref<512xf32, #tpu.memory_space<smem>>
    %c143 = arith.constant 143 : index
    %721 = memref.load %arg1[%c143] : memref<512xf32, #tpu.memory_space<smem>>
    %c144 = arith.constant 144 : index
    %722 = memref.load %arg1[%c144] : memref<512xf32, #tpu.memory_space<smem>>
    %c145 = arith.constant 145 : index
    %723 = memref.load %arg1[%c145] : memref<512xf32, #tpu.memory_space<smem>>
    %c146 = arith.constant 146 : index
    %724 = memref.load %arg1[%c146] : memref<512xf32, #tpu.memory_space<smem>>
    %c147 = arith.constant 147 : index
    %725 = memref.load %arg1[%c147] : memref<512xf32, #tpu.memory_space<smem>>
    %c148 = arith.constant 148 : index
    %726 = memref.load %arg1[%c148] : memref<512xf32, #tpu.memory_space<smem>>
    %c149 = arith.constant 149 : index
    %727 = memref.load %arg1[%c149] : memref<512xf32, #tpu.memory_space<smem>>
    %c150 = arith.constant 150 : index
    %728 = memref.load %arg1[%c150] : memref<512xf32, #tpu.memory_space<smem>>
    %c151 = arith.constant 151 : index
    %729 = memref.load %arg1[%c151] : memref<512xf32, #tpu.memory_space<smem>>
    %c152 = arith.constant 152 : index
    %730 = memref.load %arg1[%c152] : memref<512xf32, #tpu.memory_space<smem>>
    %c153 = arith.constant 153 : index
    %731 = memref.load %arg1[%c153] : memref<512xf32, #tpu.memory_space<smem>>
    %c154 = arith.constant 154 : index
    %732 = memref.load %arg1[%c154] : memref<512xf32, #tpu.memory_space<smem>>
    %c155 = arith.constant 155 : index
    %733 = memref.load %arg1[%c155] : memref<512xf32, #tpu.memory_space<smem>>
    %c156 = arith.constant 156 : index
    %734 = memref.load %arg1[%c156] : memref<512xf32, #tpu.memory_space<smem>>
    %c157 = arith.constant 157 : index
    %735 = memref.load %arg1[%c157] : memref<512xf32, #tpu.memory_space<smem>>
    %c158 = arith.constant 158 : index
    %736 = memref.load %arg1[%c158] : memref<512xf32, #tpu.memory_space<smem>>
    %c159 = arith.constant 159 : index
    %737 = memref.load %arg1[%c159] : memref<512xf32, #tpu.memory_space<smem>>
    %c160 = arith.constant 160 : index
    %738 = memref.load %arg1[%c160] : memref<512xf32, #tpu.memory_space<smem>>
    %c161 = arith.constant 161 : index
    %739 = memref.load %arg1[%c161] : memref<512xf32, #tpu.memory_space<smem>>
    %c162 = arith.constant 162 : index
    %740 = memref.load %arg1[%c162] : memref<512xf32, #tpu.memory_space<smem>>
    %c163 = arith.constant 163 : index
    %741 = memref.load %arg1[%c163] : memref<512xf32, #tpu.memory_space<smem>>
    %c164 = arith.constant 164 : index
    %742 = memref.load %arg1[%c164] : memref<512xf32, #tpu.memory_space<smem>>
    %c165 = arith.constant 165 : index
    %743 = memref.load %arg1[%c165] : memref<512xf32, #tpu.memory_space<smem>>
    %c166 = arith.constant 166 : index
    %744 = memref.load %arg1[%c166] : memref<512xf32, #tpu.memory_space<smem>>
    %c167 = arith.constant 167 : index
    %745 = memref.load %arg1[%c167] : memref<512xf32, #tpu.memory_space<smem>>
    %c168 = arith.constant 168 : index
    %746 = memref.load %arg1[%c168] : memref<512xf32, #tpu.memory_space<smem>>
    %c169 = arith.constant 169 : index
    %747 = memref.load %arg1[%c169] : memref<512xf32, #tpu.memory_space<smem>>
    %c170 = arith.constant 170 : index
    %748 = memref.load %arg1[%c170] : memref<512xf32, #tpu.memory_space<smem>>
    %c171 = arith.constant 171 : index
    %749 = memref.load %arg1[%c171] : memref<512xf32, #tpu.memory_space<smem>>
    %c172 = arith.constant 172 : index
    %750 = memref.load %arg1[%c172] : memref<512xf32, #tpu.memory_space<smem>>
    %c173 = arith.constant 173 : index
    %751 = memref.load %arg1[%c173] : memref<512xf32, #tpu.memory_space<smem>>
    %c174 = arith.constant 174 : index
    %752 = memref.load %arg1[%c174] : memref<512xf32, #tpu.memory_space<smem>>
    %c175 = arith.constant 175 : index
    %753 = memref.load %arg1[%c175] : memref<512xf32, #tpu.memory_space<smem>>
    %c176 = arith.constant 176 : index
    %754 = memref.load %arg1[%c176] : memref<512xf32, #tpu.memory_space<smem>>
    %c177 = arith.constant 177 : index
    %755 = memref.load %arg1[%c177] : memref<512xf32, #tpu.memory_space<smem>>
    %c178 = arith.constant 178 : index
    %756 = memref.load %arg1[%c178] : memref<512xf32, #tpu.memory_space<smem>>
    %c179 = arith.constant 179 : index
    %757 = memref.load %arg1[%c179] : memref<512xf32, #tpu.memory_space<smem>>
    %c180 = arith.constant 180 : index
    %758 = memref.load %arg1[%c180] : memref<512xf32, #tpu.memory_space<smem>>
    %c181 = arith.constant 181 : index
    %759 = memref.load %arg1[%c181] : memref<512xf32, #tpu.memory_space<smem>>
    %c182 = arith.constant 182 : index
    %760 = memref.load %arg1[%c182] : memref<512xf32, #tpu.memory_space<smem>>
    %c183 = arith.constant 183 : index
    %761 = memref.load %arg1[%c183] : memref<512xf32, #tpu.memory_space<smem>>
    %c184 = arith.constant 184 : index
    %762 = memref.load %arg1[%c184] : memref<512xf32, #tpu.memory_space<smem>>
    %c185 = arith.constant 185 : index
    %763 = memref.load %arg1[%c185] : memref<512xf32, #tpu.memory_space<smem>>
    %c186 = arith.constant 186 : index
    %764 = memref.load %arg1[%c186] : memref<512xf32, #tpu.memory_space<smem>>
    %c187 = arith.constant 187 : index
    %765 = memref.load %arg1[%c187] : memref<512xf32, #tpu.memory_space<smem>>
    %c188 = arith.constant 188 : index
    %766 = memref.load %arg1[%c188] : memref<512xf32, #tpu.memory_space<smem>>
    %c189 = arith.constant 189 : index
    %767 = memref.load %arg1[%c189] : memref<512xf32, #tpu.memory_space<smem>>
    %c190 = arith.constant 190 : index
    %768 = memref.load %arg1[%c190] : memref<512xf32, #tpu.memory_space<smem>>
    %c191 = arith.constant 191 : index
    %769 = memref.load %arg1[%c191] : memref<512xf32, #tpu.memory_space<smem>>
    %770 = vector.broadcast %706 : f32 to vector<1x128xf32>
    %771 = arith.mulf %699, %770 : vector<1x128xf32>
    %772 = vector.broadcast %707 : f32 to vector<1x128xf32>
    %773 = arith.mulf %701, %772 : vector<1x128xf32>
    %774 = arith.addf %771, %773 : vector<1x128xf32>
    %775 = vector.broadcast %708 : f32 to vector<1x128xf32>
    %776 = arith.mulf %703, %775 : vector<1x128xf32>
    %777 = arith.addf %774, %776 : vector<1x128xf32>
    %778 = vector.broadcast %709 : f32 to vector<1x128xf32>
    %779 = arith.mulf %705, %778 : vector<1x128xf32>
    %780 = arith.addf %777, %779 : vector<1x128xf32>
    %781 = arith.mulf %264, %780 : vector<1x128xf32>
    %782 = vector.broadcast %722 : f32 to vector<1x128xf32>
    %783 = arith.mulf %699, %782 : vector<1x128xf32>
    %784 = vector.broadcast %723 : f32 to vector<1x128xf32>
    %785 = arith.mulf %701, %784 : vector<1x128xf32>
    %786 = arith.addf %783, %785 : vector<1x128xf32>
    %787 = vector.broadcast %724 : f32 to vector<1x128xf32>
    %788 = arith.mulf %703, %787 : vector<1x128xf32>
    %789 = arith.addf %786, %788 : vector<1x128xf32>
    %790 = vector.broadcast %725 : f32 to vector<1x128xf32>
    %791 = arith.mulf %705, %790 : vector<1x128xf32>
    %792 = arith.addf %789, %791 : vector<1x128xf32>
    %793 = arith.mulf %315, %792 : vector<1x128xf32>
    %794 = arith.addf %781, %793 : vector<1x128xf32>
    %795 = vector.broadcast %738 : f32 to vector<1x128xf32>
    %796 = arith.mulf %699, %795 : vector<1x128xf32>
    %797 = vector.broadcast %739 : f32 to vector<1x128xf32>
    %798 = arith.mulf %701, %797 : vector<1x128xf32>
    %799 = arith.addf %796, %798 : vector<1x128xf32>
    %800 = vector.broadcast %740 : f32 to vector<1x128xf32>
    %801 = arith.mulf %703, %800 : vector<1x128xf32>
    %802 = arith.addf %799, %801 : vector<1x128xf32>
    %803 = vector.broadcast %741 : f32 to vector<1x128xf32>
    %804 = arith.mulf %705, %803 : vector<1x128xf32>
    %805 = arith.addf %802, %804 : vector<1x128xf32>
    %806 = arith.mulf %366, %805 : vector<1x128xf32>
    %807 = arith.addf %794, %806 : vector<1x128xf32>
    %808 = vector.broadcast %754 : f32 to vector<1x128xf32>
    %809 = arith.mulf %699, %808 : vector<1x128xf32>
    %810 = vector.broadcast %755 : f32 to vector<1x128xf32>
    %811 = arith.mulf %701, %810 : vector<1x128xf32>
    %812 = arith.addf %809, %811 : vector<1x128xf32>
    %813 = vector.broadcast %756 : f32 to vector<1x128xf32>
    %814 = arith.mulf %703, %813 : vector<1x128xf32>
    %815 = arith.addf %812, %814 : vector<1x128xf32>
    %816 = vector.broadcast %757 : f32 to vector<1x128xf32>
    %817 = arith.mulf %705, %816 : vector<1x128xf32>
    %818 = arith.addf %815, %817 : vector<1x128xf32>
    %819 = arith.mulf %417, %818 : vector<1x128xf32>
    %820 = arith.addf %807, %819 : vector<1x128xf32>
    %821 = vector.broadcast %710 : f32 to vector<1x128xf32>
    %822 = arith.mulf %699, %821 : vector<1x128xf32>
    %823 = vector.broadcast %711 : f32 to vector<1x128xf32>
    %824 = arith.mulf %701, %823 : vector<1x128xf32>
    %825 = arith.addf %822, %824 : vector<1x128xf32>
    %826 = vector.broadcast %712 : f32 to vector<1x128xf32>
    %827 = arith.mulf %703, %826 : vector<1x128xf32>
    %828 = arith.addf %825, %827 : vector<1x128xf32>
    %829 = vector.broadcast %713 : f32 to vector<1x128xf32>
    %830 = arith.mulf %705, %829 : vector<1x128xf32>
    %831 = arith.addf %828, %830 : vector<1x128xf32>
    %832 = arith.mulf %264, %831 : vector<1x128xf32>
    %833 = vector.broadcast %726 : f32 to vector<1x128xf32>
    %834 = arith.mulf %699, %833 : vector<1x128xf32>
    %835 = vector.broadcast %727 : f32 to vector<1x128xf32>
    %836 = arith.mulf %701, %835 : vector<1x128xf32>
    %837 = arith.addf %834, %836 : vector<1x128xf32>
    %838 = vector.broadcast %728 : f32 to vector<1x128xf32>
    %839 = arith.mulf %703, %838 : vector<1x128xf32>
    %840 = arith.addf %837, %839 : vector<1x128xf32>
    %841 = vector.broadcast %729 : f32 to vector<1x128xf32>
    %842 = arith.mulf %705, %841 : vector<1x128xf32>
    %843 = arith.addf %840, %842 : vector<1x128xf32>
    %844 = arith.mulf %315, %843 : vector<1x128xf32>
    %845 = arith.addf %832, %844 : vector<1x128xf32>
    %846 = vector.broadcast %742 : f32 to vector<1x128xf32>
    %847 = arith.mulf %699, %846 : vector<1x128xf32>
    %848 = vector.broadcast %743 : f32 to vector<1x128xf32>
    %849 = arith.mulf %701, %848 : vector<1x128xf32>
    %850 = arith.addf %847, %849 : vector<1x128xf32>
    %851 = vector.broadcast %744 : f32 to vector<1x128xf32>
    %852 = arith.mulf %703, %851 : vector<1x128xf32>
    %853 = arith.addf %850, %852 : vector<1x128xf32>
    %854 = vector.broadcast %745 : f32 to vector<1x128xf32>
    %855 = arith.mulf %705, %854 : vector<1x128xf32>
    %856 = arith.addf %853, %855 : vector<1x128xf32>
    %857 = arith.mulf %366, %856 : vector<1x128xf32>
    %858 = arith.addf %845, %857 : vector<1x128xf32>
    %859 = vector.broadcast %758 : f32 to vector<1x128xf32>
    %860 = arith.mulf %699, %859 : vector<1x128xf32>
    %861 = vector.broadcast %759 : f32 to vector<1x128xf32>
    %862 = arith.mulf %701, %861 : vector<1x128xf32>
    %863 = arith.addf %860, %862 : vector<1x128xf32>
    %864 = vector.broadcast %760 : f32 to vector<1x128xf32>
    %865 = arith.mulf %703, %864 : vector<1x128xf32>
    %866 = arith.addf %863, %865 : vector<1x128xf32>
    %867 = vector.broadcast %761 : f32 to vector<1x128xf32>
    %868 = arith.mulf %705, %867 : vector<1x128xf32>
    %869 = arith.addf %866, %868 : vector<1x128xf32>
    %870 = arith.mulf %417, %869 : vector<1x128xf32>
    %871 = arith.addf %858, %870 : vector<1x128xf32>
    %872 = vector.broadcast %714 : f32 to vector<1x128xf32>
    %873 = arith.mulf %699, %872 : vector<1x128xf32>
    %874 = vector.broadcast %715 : f32 to vector<1x128xf32>
    %875 = arith.mulf %701, %874 : vector<1x128xf32>
    %876 = arith.addf %873, %875 : vector<1x128xf32>
    %877 = vector.broadcast %716 : f32 to vector<1x128xf32>
    %878 = arith.mulf %703, %877 : vector<1x128xf32>
    %879 = arith.addf %876, %878 : vector<1x128xf32>
    %880 = vector.broadcast %717 : f32 to vector<1x128xf32>
    %881 = arith.mulf %705, %880 : vector<1x128xf32>
    %882 = arith.addf %879, %881 : vector<1x128xf32>
    %883 = arith.mulf %264, %882 : vector<1x128xf32>
    %884 = vector.broadcast %730 : f32 to vector<1x128xf32>
    %885 = arith.mulf %699, %884 : vector<1x128xf32>
    %886 = vector.broadcast %731 : f32 to vector<1x128xf32>
    %887 = arith.mulf %701, %886 : vector<1x128xf32>
    %888 = arith.addf %885, %887 : vector<1x128xf32>
    %889 = vector.broadcast %732 : f32 to vector<1x128xf32>
    %890 = arith.mulf %703, %889 : vector<1x128xf32>
    %891 = arith.addf %888, %890 : vector<1x128xf32>
    %892 = vector.broadcast %733 : f32 to vector<1x128xf32>
    %893 = arith.mulf %705, %892 : vector<1x128xf32>
    %894 = arith.addf %891, %893 : vector<1x128xf32>
    %895 = arith.mulf %315, %894 : vector<1x128xf32>
    %896 = arith.addf %883, %895 : vector<1x128xf32>
    %897 = vector.broadcast %746 : f32 to vector<1x128xf32>
    %898 = arith.mulf %699, %897 : vector<1x128xf32>
    %899 = vector.broadcast %747 : f32 to vector<1x128xf32>
    %900 = arith.mulf %701, %899 : vector<1x128xf32>
    %901 = arith.addf %898, %900 : vector<1x128xf32>
    %902 = vector.broadcast %748 : f32 to vector<1x128xf32>
    %903 = arith.mulf %703, %902 : vector<1x128xf32>
    %904 = arith.addf %901, %903 : vector<1x128xf32>
    %905 = vector.broadcast %749 : f32 to vector<1x128xf32>
    %906 = arith.mulf %705, %905 : vector<1x128xf32>
    %907 = arith.addf %904, %906 : vector<1x128xf32>
    %908 = arith.mulf %366, %907 : vector<1x128xf32>
    %909 = arith.addf %896, %908 : vector<1x128xf32>
    %910 = vector.broadcast %762 : f32 to vector<1x128xf32>
    %911 = arith.mulf %699, %910 : vector<1x128xf32>
    %912 = vector.broadcast %763 : f32 to vector<1x128xf32>
    %913 = arith.mulf %701, %912 : vector<1x128xf32>
    %914 = arith.addf %911, %913 : vector<1x128xf32>
    %915 = vector.broadcast %764 : f32 to vector<1x128xf32>
    %916 = arith.mulf %703, %915 : vector<1x128xf32>
    %917 = arith.addf %914, %916 : vector<1x128xf32>
    %918 = vector.broadcast %765 : f32 to vector<1x128xf32>
    %919 = arith.mulf %705, %918 : vector<1x128xf32>
    %920 = arith.addf %917, %919 : vector<1x128xf32>
    %921 = arith.mulf %417, %920 : vector<1x128xf32>
    %922 = arith.addf %909, %921 : vector<1x128xf32>
    %923 = vector.broadcast %718 : f32 to vector<1x128xf32>
    %924 = arith.mulf %699, %923 : vector<1x128xf32>
    %925 = vector.broadcast %719 : f32 to vector<1x128xf32>
    %926 = arith.mulf %701, %925 : vector<1x128xf32>
    %927 = arith.addf %924, %926 : vector<1x128xf32>
    %928 = vector.broadcast %720 : f32 to vector<1x128xf32>
    %929 = arith.mulf %703, %928 : vector<1x128xf32>
    %930 = arith.addf %927, %929 : vector<1x128xf32>
    %931 = vector.broadcast %721 : f32 to vector<1x128xf32>
    %932 = arith.mulf %705, %931 : vector<1x128xf32>
    %933 = arith.addf %930, %932 : vector<1x128xf32>
    %934 = arith.mulf %264, %933 : vector<1x128xf32>
    %935 = vector.broadcast %734 : f32 to vector<1x128xf32>
    %936 = arith.mulf %699, %935 : vector<1x128xf32>
    %937 = vector.broadcast %735 : f32 to vector<1x128xf32>
    %938 = arith.mulf %701, %937 : vector<1x128xf32>
    %939 = arith.addf %936, %938 : vector<1x128xf32>
    %940 = vector.broadcast %736 : f32 to vector<1x128xf32>
    %941 = arith.mulf %703, %940 : vector<1x128xf32>
    %942 = arith.addf %939, %941 : vector<1x128xf32>
    %943 = vector.broadcast %737 : f32 to vector<1x128xf32>
    %944 = arith.mulf %705, %943 : vector<1x128xf32>
    %945 = arith.addf %942, %944 : vector<1x128xf32>
    %946 = arith.mulf %315, %945 : vector<1x128xf32>
    %947 = arith.addf %934, %946 : vector<1x128xf32>
    %948 = vector.broadcast %750 : f32 to vector<1x128xf32>
    %949 = arith.mulf %699, %948 : vector<1x128xf32>
    %950 = vector.broadcast %751 : f32 to vector<1x128xf32>
    %951 = arith.mulf %701, %950 : vector<1x128xf32>
    %952 = arith.addf %949, %951 : vector<1x128xf32>
    %953 = vector.broadcast %752 : f32 to vector<1x128xf32>
    %954 = arith.mulf %703, %953 : vector<1x128xf32>
    %955 = arith.addf %952, %954 : vector<1x128xf32>
    %956 = vector.broadcast %753 : f32 to vector<1x128xf32>
    %957 = arith.mulf %705, %956 : vector<1x128xf32>
    %958 = arith.addf %955, %957 : vector<1x128xf32>
    %959 = arith.mulf %366, %958 : vector<1x128xf32>
    %960 = arith.addf %947, %959 : vector<1x128xf32>
    %961 = vector.broadcast %766 : f32 to vector<1x128xf32>
    %962 = arith.mulf %699, %961 : vector<1x128xf32>
    %963 = vector.broadcast %767 : f32 to vector<1x128xf32>
    %964 = arith.mulf %701, %963 : vector<1x128xf32>
    %965 = arith.addf %962, %964 : vector<1x128xf32>
    %966 = vector.broadcast %768 : f32 to vector<1x128xf32>
    %967 = arith.mulf %703, %966 : vector<1x128xf32>
    %968 = arith.addf %965, %967 : vector<1x128xf32>
    %969 = vector.broadcast %769 : f32 to vector<1x128xf32>
    %970 = arith.mulf %705, %969 : vector<1x128xf32>
    %971 = arith.addf %968, %970 : vector<1x128xf32>
    %972 = arith.mulf %417, %971 : vector<1x128xf32>
    %973 = arith.addf %960, %972 : vector<1x128xf32>
    %c5_20 = arith.constant 5 : index
    %c0_21 = arith.constant 0 : index
    %c0_22 = arith.constant 0 : index
    %c0_23 = arith.constant 0 : index
    %974 = vector.load %arg2[%c5_20, %c0_21, %c0_22, %c0_23] : memref<8x4x1x128xf32, #tpu.memory_space<vmem>>, vector<1x4x1x128xf32>
    %975 = vector.shape_cast %974 : vector<1x4x1x128xf32> to vector<4x1x128xf32>
    %976 = vector.extract_strided_slice %975 {offsets = [0, 0, 0], sizes = [1, 1, 128], strides = [1, 1, 1]} : vector<4x1x128xf32> to vector<1x1x128xf32>
    %977 = vector.shape_cast %976 : vector<1x1x128xf32> to vector<1x128xf32>
    %978 = vector.extract_strided_slice %975 {offsets = [1, 0, 0], sizes = [1, 1, 128], strides = [1, 1, 1]} : vector<4x1x128xf32> to vector<1x1x128xf32>
    %979 = vector.shape_cast %978 : vector<1x1x128xf32> to vector<1x128xf32>
    %980 = vector.extract_strided_slice %975 {offsets = [2, 0, 0], sizes = [1, 1, 128], strides = [1, 1, 1]} : vector<4x1x128xf32> to vector<1x1x128xf32>
    %981 = vector.shape_cast %980 : vector<1x1x128xf32> to vector<1x128xf32>
    %982 = vector.extract_strided_slice %975 {offsets = [3, 0, 0], sizes = [1, 1, 128], strides = [1, 1, 1]} : vector<4x1x128xf32> to vector<1x1x128xf32>
    %983 = vector.shape_cast %982 : vector<1x1x128xf32> to vector<1x128xf32>
    %c320 = arith.constant 320 : index
    %984 = memref.load %arg1[%c320] : memref<512xf32, #tpu.memory_space<smem>>
    %c321 = arith.constant 321 : index
    %985 = memref.load %arg1[%c321] : memref<512xf32, #tpu.memory_space<smem>>
    %c322 = arith.constant 322 : index
    %986 = memref.load %arg1[%c322] : memref<512xf32, #tpu.memory_space<smem>>
    %c323 = arith.constant 323 : index
    %987 = memref.load %arg1[%c323] : memref<512xf32, #tpu.memory_space<smem>>
    %c324 = arith.constant 324 : index
    %988 = memref.load %arg1[%c324] : memref<512xf32, #tpu.memory_space<smem>>
    %c325 = arith.constant 325 : index
    %989 = memref.load %arg1[%c325] : memref<512xf32, #tpu.memory_space<smem>>
    %c326 = arith.constant 326 : index
    %990 = memref.load %arg1[%c326] : memref<512xf32, #tpu.memory_space<smem>>
    %c327 = arith.constant 327 : index
    %991 = memref.load %arg1[%c327] : memref<512xf32, #tpu.memory_space<smem>>
    %c328 = arith.constant 328 : index
    %992 = memref.load %arg1[%c328] : memref<512xf32, #tpu.memory_space<smem>>
    %c329 = arith.constant 329 : index
    %993 = memref.load %arg1[%c329] : memref<512xf32, #tpu.memory_space<smem>>
    %c330 = arith.constant 330 : index
    %994 = memref.load %arg1[%c330] : memref<512xf32, #tpu.memory_space<smem>>
    %c331 = arith.constant 331 : index
    %995 = memref.load %arg1[%c331] : memref<512xf32, #tpu.memory_space<smem>>
    %c332 = arith.constant 332 : index
    %996 = memref.load %arg1[%c332] : memref<512xf32, #tpu.memory_space<smem>>
    %c333 = arith.constant 333 : index
    %997 = memref.load %arg1[%c333] : memref<512xf32, #tpu.memory_space<smem>>
    %c334 = arith.constant 334 : index
    %998 = memref.load %arg1[%c334] : memref<512xf32, #tpu.memory_space<smem>>
    %c335 = arith.constant 335 : index
    %999 = memref.load %arg1[%c335] : memref<512xf32, #tpu.memory_space<smem>>
    %c336 = arith.constant 336 : index
    %1000 = memref.load %arg1[%c336] : memref<512xf32, #tpu.memory_space<smem>>
    %c337 = arith.constant 337 : index
    %1001 = memref.load %arg1[%c337] : memref<512xf32, #tpu.memory_space<smem>>
    %c338 = arith.constant 338 : index
    %1002 = memref.load %arg1[%c338] : memref<512xf32, #tpu.memory_space<smem>>
    %c339 = arith.constant 339 : index
    %1003 = memref.load %arg1[%c339] : memref<512xf32, #tpu.memory_space<smem>>
    %c340 = arith.constant 340 : index
    %1004 = memref.load %arg1[%c340] : memref<512xf32, #tpu.memory_space<smem>>
    %c341 = arith.constant 341 : index
    %1005 = memref.load %arg1[%c341] : memref<512xf32, #tpu.memory_space<smem>>
    %c342 = arith.constant 342 : index
    %1006 = memref.load %arg1[%c342] : memref<512xf32, #tpu.memory_space<smem>>
    %c343 = arith.constant 343 : index
    %1007 = memref.load %arg1[%c343] : memref<512xf32, #tpu.memory_space<smem>>
    %c344 = arith.constant 344 : index
    %1008 = memref.load %arg1[%c344] : memref<512xf32, #tpu.memory_space<smem>>
    %c345 = arith.constant 345 : index
    %1009 = memref.load %arg1[%c345] : memref<512xf32, #tpu.memory_space<smem>>
    %c346 = arith.constant 346 : index
    %1010 = memref.load %arg1[%c346] : memref<512xf32, #tpu.memory_space<smem>>
    %c347 = arith.constant 347 : index
    %1011 = memref.load %arg1[%c347] : memref<512xf32, #tpu.memory_space<smem>>
    %c348 = arith.constant 348 : index
    %1012 = memref.load %arg1[%c348] : memref<512xf32, #tpu.memory_space<smem>>
    %c349 = arith.constant 349 : index
    %1013 = memref.load %arg1[%c349] : memref<512xf32, #tpu.memory_space<smem>>
    %c350 = arith.constant 350 : index
    %1014 = memref.load %arg1[%c350] : memref<512xf32, #tpu.memory_space<smem>>
    %c351 = arith.constant 351 : index
    %1015 = memref.load %arg1[%c351] : memref<512xf32, #tpu.memory_space<smem>>
    %c352 = arith.constant 352 : index
    %1016 = memref.load %arg1[%c352] : memref<512xf32, #tpu.memory_space<smem>>
    %c353 = arith.constant 353 : index
    %1017 = memref.load %arg1[%c353] : memref<512xf32, #tpu.memory_space<smem>>
    %c354 = arith.constant 354 : index
    %1018 = memref.load %arg1[%c354] : memref<512xf32, #tpu.memory_space<smem>>
    %c355 = arith.constant 355 : index
    %1019 = memref.load %arg1[%c355] : memref<512xf32, #tpu.memory_space<smem>>
    %c356 = arith.constant 356 : index
    %1020 = memref.load %arg1[%c356] : memref<512xf32, #tpu.memory_space<smem>>
    %c357 = arith.constant 357 : index
    %1021 = memref.load %arg1[%c357] : memref<512xf32, #tpu.memory_space<smem>>
    %c358 = arith.constant 358 : index
    %1022 = memref.load %arg1[%c358] : memref<512xf32, #tpu.memory_space<smem>>
    %c359 = arith.constant 359 : index
    %1023 = memref.load %arg1[%c359] : memref<512xf32, #tpu.memory_space<smem>>
    %c360 = arith.constant 360 : index
    %1024 = memref.load %arg1[%c360] : memref<512xf32, #tpu.memory_space<smem>>
    %c361 = arith.constant 361 : index
    %1025 = memref.load %arg1[%c361] : memref<512xf32, #tpu.memory_space<smem>>
    %c362 = arith.constant 362 : index
    %1026 = memref.load %arg1[%c362] : memref<512xf32, #tpu.memory_space<smem>>
    %c363 = arith.constant 363 : index
    %1027 = memref.load %arg1[%c363] : memref<512xf32, #tpu.memory_space<smem>>
    %c364 = arith.constant 364 : index
    %1028 = memref.load %arg1[%c364] : memref<512xf32, #tpu.memory_space<smem>>
    %c365 = arith.constant 365 : index
    %1029 = memref.load %arg1[%c365] : memref<512xf32, #tpu.memory_space<smem>>
    %c366 = arith.constant 366 : index
    %1030 = memref.load %arg1[%c366] : memref<512xf32, #tpu.memory_space<smem>>
    %c367 = arith.constant 367 : index
    %1031 = memref.load %arg1[%c367] : memref<512xf32, #tpu.memory_space<smem>>
    %c368 = arith.constant 368 : index
    %1032 = memref.load %arg1[%c368] : memref<512xf32, #tpu.memory_space<smem>>
    %c369 = arith.constant 369 : index
    %1033 = memref.load %arg1[%c369] : memref<512xf32, #tpu.memory_space<smem>>
    %c370 = arith.constant 370 : index
    %1034 = memref.load %arg1[%c370] : memref<512xf32, #tpu.memory_space<smem>>
    %c371 = arith.constant 371 : index
    %1035 = memref.load %arg1[%c371] : memref<512xf32, #tpu.memory_space<smem>>
    %c372 = arith.constant 372 : index
    %1036 = memref.load %arg1[%c372] : memref<512xf32, #tpu.memory_space<smem>>
    %c373 = arith.constant 373 : index
    %1037 = memref.load %arg1[%c373] : memref<512xf32, #tpu.memory_space<smem>>
    %c374 = arith.constant 374 : index
    %1038 = memref.load %arg1[%c374] : memref<512xf32, #tpu.memory_space<smem>>
    %c375 = arith.constant 375 : index
    %1039 = memref.load %arg1[%c375] : memref<512xf32, #tpu.memory_space<smem>>
    %c376 = arith.constant 376 : index
    %1040 = memref.load %arg1[%c376] : memref<512xf32, #tpu.memory_space<smem>>
    %c377 = arith.constant 377 : index
    %1041 = memref.load %arg1[%c377] : memref<512xf32, #tpu.memory_space<smem>>
    %c378 = arith.constant 378 : index
    %1042 = memref.load %arg1[%c378] : memref<512xf32, #tpu.memory_space<smem>>
    %c379 = arith.constant 379 : index
    %1043 = memref.load %arg1[%c379] : memref<512xf32, #tpu.memory_space<smem>>
    %c380 = arith.constant 380 : index
    %1044 = memref.load %arg1[%c380] : memref<512xf32, #tpu.memory_space<smem>>
    %c381 = arith.constant 381 : index
    %1045 = memref.load %arg1[%c381] : memref<512xf32, #tpu.memory_space<smem>>
    %c382 = arith.constant 382 : index
    %1046 = memref.load %arg1[%c382] : memref<512xf32, #tpu.memory_space<smem>>
    %c383 = arith.constant 383 : index
    %1047 = memref.load %arg1[%c383] : memref<512xf32, #tpu.memory_space<smem>>
    %1048 = vector.broadcast %984 : f32 to vector<1x128xf32>
    %1049 = arith.mulf %977, %1048 : vector<1x128xf32>
    %1050 = vector.broadcast %985 : f32 to vector<1x128xf32>
    %1051 = arith.mulf %979, %1050 : vector<1x128xf32>
    %1052 = arith.addf %1049, %1051 : vector<1x128xf32>
    %1053 = vector.broadcast %986 : f32 to vector<1x128xf32>
    %1054 = arith.mulf %981, %1053 : vector<1x128xf32>
    %1055 = arith.addf %1052, %1054 : vector<1x128xf32>
    %1056 = vector.broadcast %987 : f32 to vector<1x128xf32>
    %1057 = arith.mulf %983, %1056 : vector<1x128xf32>
    %1058 = arith.addf %1055, %1057 : vector<1x128xf32>
    %1059 = arith.mulf %542, %1058 : vector<1x128xf32>
    %1060 = vector.broadcast %988 : f32 to vector<1x128xf32>
    %1061 = arith.mulf %977, %1060 : vector<1x128xf32>
    %1062 = vector.broadcast %989 : f32 to vector<1x128xf32>
    %1063 = arith.mulf %979, %1062 : vector<1x128xf32>
    %1064 = arith.addf %1061, %1063 : vector<1x128xf32>
    %1065 = vector.broadcast %990 : f32 to vector<1x128xf32>
    %1066 = arith.mulf %981, %1065 : vector<1x128xf32>
    %1067 = arith.addf %1064, %1066 : vector<1x128xf32>
    %1068 = vector.broadcast %991 : f32 to vector<1x128xf32>
    %1069 = arith.mulf %983, %1068 : vector<1x128xf32>
    %1070 = arith.addf %1067, %1069 : vector<1x128xf32>
    %1071 = arith.mulf %593, %1070 : vector<1x128xf32>
    %1072 = arith.addf %1059, %1071 : vector<1x128xf32>
    %1073 = vector.broadcast %992 : f32 to vector<1x128xf32>
    %1074 = arith.mulf %977, %1073 : vector<1x128xf32>
    %1075 = vector.broadcast %993 : f32 to vector<1x128xf32>
    %1076 = arith.mulf %979, %1075 : vector<1x128xf32>
    %1077 = arith.addf %1074, %1076 : vector<1x128xf32>
    %1078 = vector.broadcast %994 : f32 to vector<1x128xf32>
    %1079 = arith.mulf %981, %1078 : vector<1x128xf32>
    %1080 = arith.addf %1077, %1079 : vector<1x128xf32>
    %1081 = vector.broadcast %995 : f32 to vector<1x128xf32>
    %1082 = arith.mulf %983, %1081 : vector<1x128xf32>
    %1083 = arith.addf %1080, %1082 : vector<1x128xf32>
    %1084 = arith.mulf %644, %1083 : vector<1x128xf32>
    %1085 = arith.addf %1072, %1084 : vector<1x128xf32>
    %1086 = vector.broadcast %996 : f32 to vector<1x128xf32>
    %1087 = arith.mulf %977, %1086 : vector<1x128xf32>
    %1088 = vector.broadcast %997 : f32 to vector<1x128xf32>
    %1089 = arith.mulf %979, %1088 : vector<1x128xf32>
    %1090 = arith.addf %1087, %1089 : vector<1x128xf32>
    %1091 = vector.broadcast %998 : f32 to vector<1x128xf32>
    %1092 = arith.mulf %981, %1091 : vector<1x128xf32>
    %1093 = arith.addf %1090, %1092 : vector<1x128xf32>
    %1094 = vector.broadcast %999 : f32 to vector<1x128xf32>
    %1095 = arith.mulf %983, %1094 : vector<1x128xf32>
    %1096 = arith.addf %1093, %1095 : vector<1x128xf32>
    %1097 = arith.mulf %695, %1096 : vector<1x128xf32>
    %1098 = arith.addf %1085, %1097 : vector<1x128xf32>
    %1099 = vector.broadcast %1000 : f32 to vector<1x128xf32>
    %1100 = arith.mulf %977, %1099 : vector<1x128xf32>
    %1101 = vector.broadcast %1001 : f32 to vector<1x128xf32>
    %1102 = arith.mulf %979, %1101 : vector<1x128xf32>
    %1103 = arith.addf %1100, %1102 : vector<1x128xf32>
    %1104 = vector.broadcast %1002 : f32 to vector<1x128xf32>
    %1105 = arith.mulf %981, %1104 : vector<1x128xf32>
    %1106 = arith.addf %1103, %1105 : vector<1x128xf32>
    %1107 = vector.broadcast %1003 : f32 to vector<1x128xf32>
    %1108 = arith.mulf %983, %1107 : vector<1x128xf32>
    %1109 = arith.addf %1106, %1108 : vector<1x128xf32>
    %1110 = arith.mulf %542, %1109 : vector<1x128xf32>
    %1111 = vector.broadcast %1004 : f32 to vector<1x128xf32>
    %1112 = arith.mulf %977, %1111 : vector<1x128xf32>
    %1113 = vector.broadcast %1005 : f32 to vector<1x128xf32>
    %1114 = arith.mulf %979, %1113 : vector<1x128xf32>
    %1115 = arith.addf %1112, %1114 : vector<1x128xf32>
    %1116 = vector.broadcast %1006 : f32 to vector<1x128xf32>
    %1117 = arith.mulf %981, %1116 : vector<1x128xf32>
    %1118 = arith.addf %1115, %1117 : vector<1x128xf32>
    %1119 = vector.broadcast %1007 : f32 to vector<1x128xf32>
    %1120 = arith.mulf %983, %1119 : vector<1x128xf32>
    %1121 = arith.addf %1118, %1120 : vector<1x128xf32>
    %1122 = arith.mulf %593, %1121 : vector<1x128xf32>
    %1123 = arith.addf %1110, %1122 : vector<1x128xf32>
    %1124 = vector.broadcast %1008 : f32 to vector<1x128xf32>
    %1125 = arith.mulf %977, %1124 : vector<1x128xf32>
    %1126 = vector.broadcast %1009 : f32 to vector<1x128xf32>
    %1127 = arith.mulf %979, %1126 : vector<1x128xf32>
    %1128 = arith.addf %1125, %1127 : vector<1x128xf32>
    %1129 = vector.broadcast %1010 : f32 to vector<1x128xf32>
    %1130 = arith.mulf %981, %1129 : vector<1x128xf32>
    %1131 = arith.addf %1128, %1130 : vector<1x128xf32>
    %1132 = vector.broadcast %1011 : f32 to vector<1x128xf32>
    %1133 = arith.mulf %983, %1132 : vector<1x128xf32>
    %1134 = arith.addf %1131, %1133 : vector<1x128xf32>
    %1135 = arith.mulf %644, %1134 : vector<1x128xf32>
    %1136 = arith.addf %1123, %1135 : vector<1x128xf32>
    %1137 = vector.broadcast %1012 : f32 to vector<1x128xf32>
    %1138 = arith.mulf %977, %1137 : vector<1x128xf32>
    %1139 = vector.broadcast %1013 : f32 to vector<1x128xf32>
    %1140 = arith.mulf %979, %1139 : vector<1x128xf32>
    %1141 = arith.addf %1138, %1140 : vector<1x128xf32>
    %1142 = vector.broadcast %1014 : f32 to vector<1x128xf32>
    %1143 = arith.mulf %981, %1142 : vector<1x128xf32>
    %1144 = arith.addf %1141, %1143 : vector<1x128xf32>
    %1145 = vector.broadcast %1015 : f32 to vector<1x128xf32>
    %1146 = arith.mulf %983, %1145 : vector<1x128xf32>
    %1147 = arith.addf %1144, %1146 : vector<1x128xf32>
    %1148 = arith.mulf %695, %1147 : vector<1x128xf32>
    %1149 = arith.addf %1136, %1148 : vector<1x128xf32>
    %1150 = vector.broadcast %1016 : f32 to vector<1x128xf32>
    %1151 = arith.mulf %977, %1150 : vector<1x128xf32>
    %1152 = vector.broadcast %1017 : f32 to vector<1x128xf32>
    %1153 = arith.mulf %979, %1152 : vector<1x128xf32>
    %1154 = arith.addf %1151, %1153 : vector<1x128xf32>
    %1155 = vector.broadcast %1018 : f32 to vector<1x128xf32>
    %1156 = arith.mulf %981, %1155 : vector<1x128xf32>
    %1157 = arith.addf %1154, %1156 : vector<1x128xf32>
    %1158 = vector.broadcast %1019 : f32 to vector<1x128xf32>
    %1159 = arith.mulf %983, %1158 : vector<1x128xf32>
    %1160 = arith.addf %1157, %1159 : vector<1x128xf32>
    %1161 = arith.mulf %542, %1160 : vector<1x128xf32>
    %1162 = vector.broadcast %1020 : f32 to vector<1x128xf32>
    %1163 = arith.mulf %977, %1162 : vector<1x128xf32>
    %1164 = vector.broadcast %1021 : f32 to vector<1x128xf32>
    %1165 = arith.mulf %979, %1164 : vector<1x128xf32>
    %1166 = arith.addf %1163, %1165 : vector<1x128xf32>
    %1167 = vector.broadcast %1022 : f32 to vector<1x128xf32>
    %1168 = arith.mulf %981, %1167 : vector<1x128xf32>
    %1169 = arith.addf %1166, %1168 : vector<1x128xf32>
    %1170 = vector.broadcast %1023 : f32 to vector<1x128xf32>
    %1171 = arith.mulf %983, %1170 : vector<1x128xf32>
    %1172 = arith.addf %1169, %1171 : vector<1x128xf32>
    %1173 = arith.mulf %593, %1172 : vector<1x128xf32>
    %1174 = arith.addf %1161, %1173 : vector<1x128xf32>
    %1175 = vector.broadcast %1024 : f32 to vector<1x128xf32>
    %1176 = arith.mulf %977, %1175 : vector<1x128xf32>
    %1177 = vector.broadcast %1025 : f32 to vector<1x128xf32>
    %1178 = arith.mulf %979, %1177 : vector<1x128xf32>
    %1179 = arith.addf %1176, %1178 : vector<1x128xf32>
    %1180 = vector.broadcast %1026 : f32 to vector<1x128xf32>
    %1181 = arith.mulf %981, %1180 : vector<1x128xf32>
    %1182 = arith.addf %1179, %1181 : vector<1x128xf32>
    %1183 = vector.broadcast %1027 : f32 to vector<1x128xf32>
    %1184 = arith.mulf %983, %1183 : vector<1x128xf32>
    %1185 = arith.addf %1182, %1184 : vector<1x128xf32>
    %1186 = arith.mulf %644, %1185 : vector<1x128xf32>
    %1187 = arith.addf %1174, %1186 : vector<1x128xf32>
    %1188 = vector.broadcast %1028 : f32 to vector<1x128xf32>
    %1189 = arith.mulf %977, %1188 : vector<1x128xf32>
    %1190 = vector.broadcast %1029 : f32 to vector<1x128xf32>
    %1191 = arith.mulf %979, %1190 : vector<1x128xf32>
    %1192 = arith.addf %1189, %1191 : vector<1x128xf32>
    %1193 = vector.broadcast %1030 : f32 to vector<1x128xf32>
    %1194 = arith.mulf %981, %1193 : vector<1x128xf32>
    %1195 = arith.addf %1192, %1194 : vector<1x128xf32>
    %1196 = vector.broadcast %1031 : f32 to vector<1x128xf32>
    %1197 = arith.mulf %983, %1196 : vector<1x128xf32>
    %1198 = arith.addf %1195, %1197 : vector<1x128xf32>
    %1199 = arith.mulf %695, %1198 : vector<1x128xf32>
    %1200 = arith.addf %1187, %1199 : vector<1x128xf32>
    %1201 = vector.broadcast %1032 : f32 to vector<1x128xf32>
    %1202 = arith.mulf %977, %1201 : vector<1x128xf32>
    %1203 = vector.broadcast %1033 : f32 to vector<1x128xf32>
    %1204 = arith.mulf %979, %1203 : vector<1x128xf32>
    %1205 = arith.addf %1202, %1204 : vector<1x128xf32>
    %1206 = vector.broadcast %1034 : f32 to vector<1x128xf32>
    %1207 = arith.mulf %981, %1206 : vector<1x128xf32>
    %1208 = arith.addf %1205, %1207 : vector<1x128xf32>
    %1209 = vector.broadcast %1035 : f32 to vector<1x128xf32>
    %1210 = arith.mulf %983, %1209 : vector<1x128xf32>
    %1211 = arith.addf %1208, %1210 : vector<1x128xf32>
    %1212 = arith.mulf %542, %1211 : vector<1x128xf32>
    %1213 = vector.broadcast %1036 : f32 to vector<1x128xf32>
    %1214 = arith.mulf %977, %1213 : vector<1x128xf32>
    %1215 = vector.broadcast %1037 : f32 to vector<1x128xf32>
    %1216 = arith.mulf %979, %1215 : vector<1x128xf32>
    %1217 = arith.addf %1214, %1216 : vector<1x128xf32>
    %1218 = vector.broadcast %1038 : f32 to vector<1x128xf32>
    %1219 = arith.mulf %981, %1218 : vector<1x128xf32>
    %1220 = arith.addf %1217, %1219 : vector<1x128xf32>
    %1221 = vector.broadcast %1039 : f32 to vector<1x128xf32>
    %1222 = arith.mulf %983, %1221 : vector<1x128xf32>
    %1223 = arith.addf %1220, %1222 : vector<1x128xf32>
    %1224 = arith.mulf %593, %1223 : vector<1x128xf32>
    %1225 = arith.addf %1212, %1224 : vector<1x128xf32>
    %1226 = vector.broadcast %1040 : f32 to vector<1x128xf32>
    %1227 = arith.mulf %977, %1226 : vector<1x128xf32>
    %1228 = vector.broadcast %1041 : f32 to vector<1x128xf32>
    %1229 = arith.mulf %979, %1228 : vector<1x128xf32>
    %1230 = arith.addf %1227, %1229 : vector<1x128xf32>
    %1231 = vector.broadcast %1042 : f32 to vector<1x128xf32>
    %1232 = arith.mulf %981, %1231 : vector<1x128xf32>
    %1233 = arith.addf %1230, %1232 : vector<1x128xf32>
    %1234 = vector.broadcast %1043 : f32 to vector<1x128xf32>
    %1235 = arith.mulf %983, %1234 : vector<1x128xf32>
    %1236 = arith.addf %1233, %1235 : vector<1x128xf32>
    %1237 = arith.mulf %644, %1236 : vector<1x128xf32>
    %1238 = arith.addf %1225, %1237 : vector<1x128xf32>
    %1239 = vector.broadcast %1044 : f32 to vector<1x128xf32>
    %1240 = arith.mulf %977, %1239 : vector<1x128xf32>
    %1241 = vector.broadcast %1045 : f32 to vector<1x128xf32>
    %1242 = arith.mulf %979, %1241 : vector<1x128xf32>
    %1243 = arith.addf %1240, %1242 : vector<1x128xf32>
    %1244 = vector.broadcast %1046 : f32 to vector<1x128xf32>
    %1245 = arith.mulf %981, %1244 : vector<1x128xf32>
    %1246 = arith.addf %1243, %1245 : vector<1x128xf32>
    %1247 = vector.broadcast %1047 : f32 to vector<1x128xf32>
    %1248 = arith.mulf %983, %1247 : vector<1x128xf32>
    %1249 = arith.addf %1246, %1248 : vector<1x128xf32>
    %1250 = arith.mulf %695, %1249 : vector<1x128xf32>
    %1251 = arith.addf %1238, %1250 : vector<1x128xf32>
    %c3_24 = arith.constant 3 : index
    %c0_25 = arith.constant 0 : index
    %c0_26 = arith.constant 0 : index
    %c0_27 = arith.constant 0 : index
    %1252 = vector.load %arg2[%c3_24, %c0_25, %c0_26, %c0_27] : memref<8x4x1x128xf32, #tpu.memory_space<vmem>>, vector<1x4x1x128xf32>
    %1253 = vector.shape_cast %1252 : vector<1x4x1x128xf32> to vector<4x1x128xf32>
    %1254 = vector.extract_strided_slice %1253 {offsets = [0, 0, 0], sizes = [1, 1, 128], strides = [1, 1, 1]} : vector<4x1x128xf32> to vector<1x1x128xf32>
    %1255 = vector.shape_cast %1254 : vector<1x1x128xf32> to vector<1x128xf32>
    %1256 = vector.extract_strided_slice %1253 {offsets = [1, 0, 0], sizes = [1, 1, 128], strides = [1, 1, 1]} : vector<4x1x128xf32> to vector<1x1x128xf32>
    %1257 = vector.shape_cast %1256 : vector<1x1x128xf32> to vector<1x128xf32>
    %1258 = vector.extract_strided_slice %1253 {offsets = [2, 0, 0], sizes = [1, 1, 128], strides = [1, 1, 1]} : vector<4x1x128xf32> to vector<1x1x128xf32>
    %1259 = vector.shape_cast %1258 : vector<1x1x128xf32> to vector<1x128xf32>
    %1260 = vector.extract_strided_slice %1253 {offsets = [3, 0, 0], sizes = [1, 1, 128], strides = [1, 1, 1]} : vector<4x1x128xf32> to vector<1x1x128xf32>
    %1261 = vector.shape_cast %1260 : vector<1x1x128xf32> to vector<1x128xf32>
    %c192 = arith.constant 192 : index
    %1262 = memref.load %arg1[%c192] : memref<512xf32, #tpu.memory_space<smem>>
    %c193 = arith.constant 193 : index
    %1263 = memref.load %arg1[%c193] : memref<512xf32, #tpu.memory_space<smem>>
    %c194 = arith.constant 194 : index
    %1264 = memref.load %arg1[%c194] : memref<512xf32, #tpu.memory_space<smem>>
    %c195 = arith.constant 195 : index
    %1265 = memref.load %arg1[%c195] : memref<512xf32, #tpu.memory_space<smem>>
    %c196 = arith.constant 196 : index
    %1266 = memref.load %arg1[%c196] : memref<512xf32, #tpu.memory_space<smem>>
    %c197 = arith.constant 197 : index
    %1267 = memref.load %arg1[%c197] : memref<512xf32, #tpu.memory_space<smem>>
    %c198 = arith.constant 198 : index
    %1268 = memref.load %arg1[%c198] : memref<512xf32, #tpu.memory_space<smem>>
    %c199 = arith.constant 199 : index
    %1269 = memref.load %arg1[%c199] : memref<512xf32, #tpu.memory_space<smem>>
    %c200 = arith.constant 200 : index
    %1270 = memref.load %arg1[%c200] : memref<512xf32, #tpu.memory_space<smem>>
    %c201 = arith.constant 201 : index
    %1271 = memref.load %arg1[%c201] : memref<512xf32, #tpu.memory_space<smem>>
    %c202 = arith.constant 202 : index
    %1272 = memref.load %arg1[%c202] : memref<512xf32, #tpu.memory_space<smem>>
    %c203 = arith.constant 203 : index
    %1273 = memref.load %arg1[%c203] : memref<512xf32, #tpu.memory_space<smem>>
    %c204 = arith.constant 204 : index
    %1274 = memref.load %arg1[%c204] : memref<512xf32, #tpu.memory_space<smem>>
    %c205 = arith.constant 205 : index
    %1275 = memref.load %arg1[%c205] : memref<512xf32, #tpu.memory_space<smem>>
    %c206 = arith.constant 206 : index
    %1276 = memref.load %arg1[%c206] : memref<512xf32, #tpu.memory_space<smem>>
    %c207 = arith.constant 207 : index
    %1277 = memref.load %arg1[%c207] : memref<512xf32, #tpu.memory_space<smem>>
    %c208 = arith.constant 208 : index
    %1278 = memref.load %arg1[%c208] : memref<512xf32, #tpu.memory_space<smem>>
    %c209 = arith.constant 209 : index
    %1279 = memref.load %arg1[%c209] : memref<512xf32, #tpu.memory_space<smem>>
    %c210 = arith.constant 210 : index
    %1280 = memref.load %arg1[%c210] : memref<512xf32, #tpu.memory_space<smem>>
    %c211 = arith.constant 211 : index
    %1281 = memref.load %arg1[%c211] : memref<512xf32, #tpu.memory_space<smem>>
    %c212 = arith.constant 212 : index
    %1282 = memref.load %arg1[%c212] : memref<512xf32, #tpu.memory_space<smem>>
    %c213 = arith.constant 213 : index
    %1283 = memref.load %arg1[%c213] : memref<512xf32, #tpu.memory_space<smem>>
    %c214 = arith.constant 214 : index
    %1284 = memref.load %arg1[%c214] : memref<512xf32, #tpu.memory_space<smem>>
    %c215 = arith.constant 215 : index
    %1285 = memref.load %arg1[%c215] : memref<512xf32, #tpu.memory_space<smem>>
    %c216 = arith.constant 216 : index
    %1286 = memref.load %arg1[%c216] : memref<512xf32, #tpu.memory_space<smem>>
    %c217 = arith.constant 217 : index
    %1287 = memref.load %arg1[%c217] : memref<512xf32, #tpu.memory_space<smem>>
    %c218 = arith.constant 218 : index
    %1288 = memref.load %arg1[%c218] : memref<512xf32, #tpu.memory_space<smem>>
    %c219 = arith.constant 219 : index
    %1289 = memref.load %arg1[%c219] : memref<512xf32, #tpu.memory_space<smem>>
    %c220 = arith.constant 220 : index
    %1290 = memref.load %arg1[%c220] : memref<512xf32, #tpu.memory_space<smem>>
    %c221 = arith.constant 221 : index
    %1291 = memref.load %arg1[%c221] : memref<512xf32, #tpu.memory_space<smem>>
    %c222 = arith.constant 222 : index
    %1292 = memref.load %arg1[%c222] : memref<512xf32, #tpu.memory_space<smem>>
    %c223 = arith.constant 223 : index
    %1293 = memref.load %arg1[%c223] : memref<512xf32, #tpu.memory_space<smem>>
    %c224 = arith.constant 224 : index
    %1294 = memref.load %arg1[%c224] : memref<512xf32, #tpu.memory_space<smem>>
    %c225 = arith.constant 225 : index
    %1295 = memref.load %arg1[%c225] : memref<512xf32, #tpu.memory_space<smem>>
    %c226 = arith.constant 226 : index
    %1296 = memref.load %arg1[%c226] : memref<512xf32, #tpu.memory_space<smem>>
    %c227 = arith.constant 227 : index
    %1297 = memref.load %arg1[%c227] : memref<512xf32, #tpu.memory_space<smem>>
    %c228 = arith.constant 228 : index
    %1298 = memref.load %arg1[%c228] : memref<512xf32, #tpu.memory_space<smem>>
    %c229 = arith.constant 229 : index
    %1299 = memref.load %arg1[%c229] : memref<512xf32, #tpu.memory_space<smem>>
    %c230 = arith.constant 230 : index
    %1300 = memref.load %arg1[%c230] : memref<512xf32, #tpu.memory_space<smem>>
    %c231 = arith.constant 231 : index
    %1301 = memref.load %arg1[%c231] : memref<512xf32, #tpu.memory_space<smem>>
    %c232 = arith.constant 232 : index
    %1302 = memref.load %arg1[%c232] : memref<512xf32, #tpu.memory_space<smem>>
    %c233 = arith.constant 233 : index
    %1303 = memref.load %arg1[%c233] : memref<512xf32, #tpu.memory_space<smem>>
    %c234 = arith.constant 234 : index
    %1304 = memref.load %arg1[%c234] : memref<512xf32, #tpu.memory_space<smem>>
    %c235 = arith.constant 235 : index
    %1305 = memref.load %arg1[%c235] : memref<512xf32, #tpu.memory_space<smem>>
    %c236 = arith.constant 236 : index
    %1306 = memref.load %arg1[%c236] : memref<512xf32, #tpu.memory_space<smem>>
    %c237 = arith.constant 237 : index
    %1307 = memref.load %arg1[%c237] : memref<512xf32, #tpu.memory_space<smem>>
    %c238 = arith.constant 238 : index
    %1308 = memref.load %arg1[%c238] : memref<512xf32, #tpu.memory_space<smem>>
    %c239 = arith.constant 239 : index
    %1309 = memref.load %arg1[%c239] : memref<512xf32, #tpu.memory_space<smem>>
    %c240 = arith.constant 240 : index
    %1310 = memref.load %arg1[%c240] : memref<512xf32, #tpu.memory_space<smem>>
    %c241 = arith.constant 241 : index
    %1311 = memref.load %arg1[%c241] : memref<512xf32, #tpu.memory_space<smem>>
    %c242 = arith.constant 242 : index
    %1312 = memref.load %arg1[%c242] : memref<512xf32, #tpu.memory_space<smem>>
    %c243 = arith.constant 243 : index
    %1313 = memref.load %arg1[%c243] : memref<512xf32, #tpu.memory_space<smem>>
    %c244 = arith.constant 244 : index
    %1314 = memref.load %arg1[%c244] : memref<512xf32, #tpu.memory_space<smem>>
    %c245 = arith.constant 245 : index
    %1315 = memref.load %arg1[%c245] : memref<512xf32, #tpu.memory_space<smem>>
    %c246 = arith.constant 246 : index
    %1316 = memref.load %arg1[%c246] : memref<512xf32, #tpu.memory_space<smem>>
    %c247 = arith.constant 247 : index
    %1317 = memref.load %arg1[%c247] : memref<512xf32, #tpu.memory_space<smem>>
    %c248 = arith.constant 248 : index
    %1318 = memref.load %arg1[%c248] : memref<512xf32, #tpu.memory_space<smem>>
    %c249 = arith.constant 249 : index
    %1319 = memref.load %arg1[%c249] : memref<512xf32, #tpu.memory_space<smem>>
    %c250 = arith.constant 250 : index
    %1320 = memref.load %arg1[%c250] : memref<512xf32, #tpu.memory_space<smem>>
    %c251 = arith.constant 251 : index
    %1321 = memref.load %arg1[%c251] : memref<512xf32, #tpu.memory_space<smem>>
    %c252 = arith.constant 252 : index
    %1322 = memref.load %arg1[%c252] : memref<512xf32, #tpu.memory_space<smem>>
    %c253 = arith.constant 253 : index
    %1323 = memref.load %arg1[%c253] : memref<512xf32, #tpu.memory_space<smem>>
    %c254 = arith.constant 254 : index
    %1324 = memref.load %arg1[%c254] : memref<512xf32, #tpu.memory_space<smem>>
    %c255 = arith.constant 255 : index
    %1325 = memref.load %arg1[%c255] : memref<512xf32, #tpu.memory_space<smem>>
    %1326 = vector.broadcast %1262 : f32 to vector<1x128xf32>
    %1327 = arith.mulf %1255, %1326 : vector<1x128xf32>
    %1328 = vector.broadcast %1263 : f32 to vector<1x128xf32>
    %1329 = arith.mulf %1257, %1328 : vector<1x128xf32>
    %1330 = arith.addf %1327, %1329 : vector<1x128xf32>
    %1331 = vector.broadcast %1264 : f32 to vector<1x128xf32>
    %1332 = arith.mulf %1259, %1331 : vector<1x128xf32>
    %1333 = arith.addf %1330, %1332 : vector<1x128xf32>
    %1334 = vector.broadcast %1265 : f32 to vector<1x128xf32>
    %1335 = arith.mulf %1261, %1334 : vector<1x128xf32>
    %1336 = arith.addf %1333, %1335 : vector<1x128xf32>
    %1337 = arith.mulf %820, %1336 : vector<1x128xf32>
    %1338 = vector.broadcast %1278 : f32 to vector<1x128xf32>
    %1339 = arith.mulf %1255, %1338 : vector<1x128xf32>
    %1340 = vector.broadcast %1279 : f32 to vector<1x128xf32>
    %1341 = arith.mulf %1257, %1340 : vector<1x128xf32>
    %1342 = arith.addf %1339, %1341 : vector<1x128xf32>
    %1343 = vector.broadcast %1280 : f32 to vector<1x128xf32>
    %1344 = arith.mulf %1259, %1343 : vector<1x128xf32>
    %1345 = arith.addf %1342, %1344 : vector<1x128xf32>
    %1346 = vector.broadcast %1281 : f32 to vector<1x128xf32>
    %1347 = arith.mulf %1261, %1346 : vector<1x128xf32>
    %1348 = arith.addf %1345, %1347 : vector<1x128xf32>
    %1349 = arith.mulf %871, %1348 : vector<1x128xf32>
    %1350 = arith.addf %1337, %1349 : vector<1x128xf32>
    %1351 = vector.broadcast %1294 : f32 to vector<1x128xf32>
    %1352 = arith.mulf %1255, %1351 : vector<1x128xf32>
    %1353 = vector.broadcast %1295 : f32 to vector<1x128xf32>
    %1354 = arith.mulf %1257, %1353 : vector<1x128xf32>
    %1355 = arith.addf %1352, %1354 : vector<1x128xf32>
    %1356 = vector.broadcast %1296 : f32 to vector<1x128xf32>
    %1357 = arith.mulf %1259, %1356 : vector<1x128xf32>
    %1358 = arith.addf %1355, %1357 : vector<1x128xf32>
    %1359 = vector.broadcast %1297 : f32 to vector<1x128xf32>
    %1360 = arith.mulf %1261, %1359 : vector<1x128xf32>
    %1361 = arith.addf %1358, %1360 : vector<1x128xf32>
    %1362 = arith.mulf %922, %1361 : vector<1x128xf32>
    %1363 = arith.addf %1350, %1362 : vector<1x128xf32>
    %1364 = vector.broadcast %1310 : f32 to vector<1x128xf32>
    %1365 = arith.mulf %1255, %1364 : vector<1x128xf32>
    %1366 = vector.broadcast %1311 : f32 to vector<1x128xf32>
    %1367 = arith.mulf %1257, %1366 : vector<1x128xf32>
    %1368 = arith.addf %1365, %1367 : vector<1x128xf32>
    %1369 = vector.broadcast %1312 : f32 to vector<1x128xf32>
    %1370 = arith.mulf %1259, %1369 : vector<1x128xf32>
    %1371 = arith.addf %1368, %1370 : vector<1x128xf32>
    %1372 = vector.broadcast %1313 : f32 to vector<1x128xf32>
    %1373 = arith.mulf %1261, %1372 : vector<1x128xf32>
    %1374 = arith.addf %1371, %1373 : vector<1x128xf32>
    %1375 = arith.mulf %973, %1374 : vector<1x128xf32>
    %1376 = arith.addf %1363, %1375 : vector<1x128xf32>
    %1377 = vector.broadcast %1266 : f32 to vector<1x128xf32>
    %1378 = arith.mulf %1255, %1377 : vector<1x128xf32>
    %1379 = vector.broadcast %1267 : f32 to vector<1x128xf32>
    %1380 = arith.mulf %1257, %1379 : vector<1x128xf32>
    %1381 = arith.addf %1378, %1380 : vector<1x128xf32>
    %1382 = vector.broadcast %1268 : f32 to vector<1x128xf32>
    %1383 = arith.mulf %1259, %1382 : vector<1x128xf32>
    %1384 = arith.addf %1381, %1383 : vector<1x128xf32>
    %1385 = vector.broadcast %1269 : f32 to vector<1x128xf32>
    %1386 = arith.mulf %1261, %1385 : vector<1x128xf32>
    %1387 = arith.addf %1384, %1386 : vector<1x128xf32>
    %1388 = arith.mulf %820, %1387 : vector<1x128xf32>
    %1389 = vector.broadcast %1282 : f32 to vector<1x128xf32>
    %1390 = arith.mulf %1255, %1389 : vector<1x128xf32>
    %1391 = vector.broadcast %1283 : f32 to vector<1x128xf32>
    %1392 = arith.mulf %1257, %1391 : vector<1x128xf32>
    %1393 = arith.addf %1390, %1392 : vector<1x128xf32>
    %1394 = vector.broadcast %1284 : f32 to vector<1x128xf32>
    %1395 = arith.mulf %1259, %1394 : vector<1x128xf32>
    %1396 = arith.addf %1393, %1395 : vector<1x128xf32>
    %1397 = vector.broadcast %1285 : f32 to vector<1x128xf32>
    %1398 = arith.mulf %1261, %1397 : vector<1x128xf32>
    %1399 = arith.addf %1396, %1398 : vector<1x128xf32>
    %1400 = arith.mulf %871, %1399 : vector<1x128xf32>
    %1401 = arith.addf %1388, %1400 : vector<1x128xf32>
    %1402 = vector.broadcast %1298 : f32 to vector<1x128xf32>
    %1403 = arith.mulf %1255, %1402 : vector<1x128xf32>
    %1404 = vector.broadcast %1299 : f32 to vector<1x128xf32>
    %1405 = arith.mulf %1257, %1404 : vector<1x128xf32>
    %1406 = arith.addf %1403, %1405 : vector<1x128xf32>
    %1407 = vector.broadcast %1300 : f32 to vector<1x128xf32>
    %1408 = arith.mulf %1259, %1407 : vector<1x128xf32>
    %1409 = arith.addf %1406, %1408 : vector<1x128xf32>
    %1410 = vector.broadcast %1301 : f32 to vector<1x128xf32>
    %1411 = arith.mulf %1261, %1410 : vector<1x128xf32>
    %1412 = arith.addf %1409, %1411 : vector<1x128xf32>
    %1413 = arith.mulf %922, %1412 : vector<1x128xf32>
    %1414 = arith.addf %1401, %1413 : vector<1x128xf32>
    %1415 = vector.broadcast %1314 : f32 to vector<1x128xf32>
    %1416 = arith.mulf %1255, %1415 : vector<1x128xf32>
    %1417 = vector.broadcast %1315 : f32 to vector<1x128xf32>
    %1418 = arith.mulf %1257, %1417 : vector<1x128xf32>
    %1419 = arith.addf %1416, %1418 : vector<1x128xf32>
    %1420 = vector.broadcast %1316 : f32 to vector<1x128xf32>
    %1421 = arith.mulf %1259, %1420 : vector<1x128xf32>
    %1422 = arith.addf %1419, %1421 : vector<1x128xf32>
    %1423 = vector.broadcast %1317 : f32 to vector<1x128xf32>
    %1424 = arith.mulf %1261, %1423 : vector<1x128xf32>
    %1425 = arith.addf %1422, %1424 : vector<1x128xf32>
    %1426 = arith.mulf %973, %1425 : vector<1x128xf32>
    %1427 = arith.addf %1414, %1426 : vector<1x128xf32>
    %1428 = vector.broadcast %1270 : f32 to vector<1x128xf32>
    %1429 = arith.mulf %1255, %1428 : vector<1x128xf32>
    %1430 = vector.broadcast %1271 : f32 to vector<1x128xf32>
    %1431 = arith.mulf %1257, %1430 : vector<1x128xf32>
    %1432 = arith.addf %1429, %1431 : vector<1x128xf32>
    %1433 = vector.broadcast %1272 : f32 to vector<1x128xf32>
    %1434 = arith.mulf %1259, %1433 : vector<1x128xf32>
    %1435 = arith.addf %1432, %1434 : vector<1x128xf32>
    %1436 = vector.broadcast %1273 : f32 to vector<1x128xf32>
    %1437 = arith.mulf %1261, %1436 : vector<1x128xf32>
    %1438 = arith.addf %1435, %1437 : vector<1x128xf32>
    %1439 = arith.mulf %820, %1438 : vector<1x128xf32>
    %1440 = vector.broadcast %1286 : f32 to vector<1x128xf32>
    %1441 = arith.mulf %1255, %1440 : vector<1x128xf32>
    %1442 = vector.broadcast %1287 : f32 to vector<1x128xf32>
    %1443 = arith.mulf %1257, %1442 : vector<1x128xf32>
    %1444 = arith.addf %1441, %1443 : vector<1x128xf32>
    %1445 = vector.broadcast %1288 : f32 to vector<1x128xf32>
    %1446 = arith.mulf %1259, %1445 : vector<1x128xf32>
    %1447 = arith.addf %1444, %1446 : vector<1x128xf32>
    %1448 = vector.broadcast %1289 : f32 to vector<1x128xf32>
    %1449 = arith.mulf %1261, %1448 : vector<1x128xf32>
    %1450 = arith.addf %1447, %1449 : vector<1x128xf32>
    %1451 = arith.mulf %871, %1450 : vector<1x128xf32>
    %1452 = arith.addf %1439, %1451 : vector<1x128xf32>
    %1453 = vector.broadcast %1302 : f32 to vector<1x128xf32>
    %1454 = arith.mulf %1255, %1453 : vector<1x128xf32>
    %1455 = vector.broadcast %1303 : f32 to vector<1x128xf32>
    %1456 = arith.mulf %1257, %1455 : vector<1x128xf32>
    %1457 = arith.addf %1454, %1456 : vector<1x128xf32>
    %1458 = vector.broadcast %1304 : f32 to vector<1x128xf32>
    %1459 = arith.mulf %1259, %1458 : vector<1x128xf32>
    %1460 = arith.addf %1457, %1459 : vector<1x128xf32>
    %1461 = vector.broadcast %1305 : f32 to vector<1x128xf32>
    %1462 = arith.mulf %1261, %1461 : vector<1x128xf32>
    %1463 = arith.addf %1460, %1462 : vector<1x128xf32>
    %1464 = arith.mulf %922, %1463 : vector<1x128xf32>
    %1465 = arith.addf %1452, %1464 : vector<1x128xf32>
    %1466 = vector.broadcast %1318 : f32 to vector<1x128xf32>
    %1467 = arith.mulf %1255, %1466 : vector<1x128xf32>
    %1468 = vector.broadcast %1319 : f32 to vector<1x128xf32>
    %1469 = arith.mulf %1257, %1468 : vector<1x128xf32>
    %1470 = arith.addf %1467, %1469 : vector<1x128xf32>
    %1471 = vector.broadcast %1320 : f32 to vector<1x128xf32>
    %1472 = arith.mulf %1259, %1471 : vector<1x128xf32>
    %1473 = arith.addf %1470, %1472 : vector<1x128xf32>
    %1474 = vector.broadcast %1321 : f32 to vector<1x128xf32>
    %1475 = arith.mulf %1261, %1474 : vector<1x128xf32>
    %1476 = arith.addf %1473, %1475 : vector<1x128xf32>
    %1477 = arith.mulf %973, %1476 : vector<1x128xf32>
    %1478 = arith.addf %1465, %1477 : vector<1x128xf32>
    %1479 = vector.broadcast %1274 : f32 to vector<1x128xf32>
    %1480 = arith.mulf %1255, %1479 : vector<1x128xf32>
    %1481 = vector.broadcast %1275 : f32 to vector<1x128xf32>
    %1482 = arith.mulf %1257, %1481 : vector<1x128xf32>
    %1483 = arith.addf %1480, %1482 : vector<1x128xf32>
    %1484 = vector.broadcast %1276 : f32 to vector<1x128xf32>
    %1485 = arith.mulf %1259, %1484 : vector<1x128xf32>
    %1486 = arith.addf %1483, %1485 : vector<1x128xf32>
    %1487 = vector.broadcast %1277 : f32 to vector<1x128xf32>
    %1488 = arith.mulf %1261, %1487 : vector<1x128xf32>
    %1489 = arith.addf %1486, %1488 : vector<1x128xf32>
    %1490 = arith.mulf %820, %1489 : vector<1x128xf32>
    %1491 = vector.broadcast %1290 : f32 to vector<1x128xf32>
    %1492 = arith.mulf %1255, %1491 : vector<1x128xf32>
    %1493 = vector.broadcast %1291 : f32 to vector<1x128xf32>
    %1494 = arith.mulf %1257, %1493 : vector<1x128xf32>
    %1495 = arith.addf %1492, %1494 : vector<1x128xf32>
    %1496 = vector.broadcast %1292 : f32 to vector<1x128xf32>
    %1497 = arith.mulf %1259, %1496 : vector<1x128xf32>
    %1498 = arith.addf %1495, %1497 : vector<1x128xf32>
    %1499 = vector.broadcast %1293 : f32 to vector<1x128xf32>
    %1500 = arith.mulf %1261, %1499 : vector<1x128xf32>
    %1501 = arith.addf %1498, %1500 : vector<1x128xf32>
    %1502 = arith.mulf %871, %1501 : vector<1x128xf32>
    %1503 = arith.addf %1490, %1502 : vector<1x128xf32>
    %1504 = vector.broadcast %1306 : f32 to vector<1x128xf32>
    %1505 = arith.mulf %1255, %1504 : vector<1x128xf32>
    %1506 = vector.broadcast %1307 : f32 to vector<1x128xf32>
    %1507 = arith.mulf %1257, %1506 : vector<1x128xf32>
    %1508 = arith.addf %1505, %1507 : vector<1x128xf32>
    %1509 = vector.broadcast %1308 : f32 to vector<1x128xf32>
    %1510 = arith.mulf %1259, %1509 : vector<1x128xf32>
    %1511 = arith.addf %1508, %1510 : vector<1x128xf32>
    %1512 = vector.broadcast %1309 : f32 to vector<1x128xf32>
    %1513 = arith.mulf %1261, %1512 : vector<1x128xf32>
    %1514 = arith.addf %1511, %1513 : vector<1x128xf32>
    %1515 = arith.mulf %922, %1514 : vector<1x128xf32>
    %1516 = arith.addf %1503, %1515 : vector<1x128xf32>
    %1517 = vector.broadcast %1322 : f32 to vector<1x128xf32>
    %1518 = arith.mulf %1255, %1517 : vector<1x128xf32>
    %1519 = vector.broadcast %1323 : f32 to vector<1x128xf32>
    %1520 = arith.mulf %1257, %1519 : vector<1x128xf32>
    %1521 = arith.addf %1518, %1520 : vector<1x128xf32>
    %1522 = vector.broadcast %1324 : f32 to vector<1x128xf32>
    %1523 = arith.mulf %1259, %1522 : vector<1x128xf32>
    %1524 = arith.addf %1521, %1523 : vector<1x128xf32>
    %1525 = vector.broadcast %1325 : f32 to vector<1x128xf32>
    %1526 = arith.mulf %1261, %1525 : vector<1x128xf32>
    %1527 = arith.addf %1524, %1526 : vector<1x128xf32>
    %1528 = arith.mulf %973, %1527 : vector<1x128xf32>
    %1529 = arith.addf %1516, %1528 : vector<1x128xf32>
    %c4_28 = arith.constant 4 : index
    %c0_29 = arith.constant 0 : index
    %c0_30 = arith.constant 0 : index
    %c0_31 = arith.constant 0 : index
    %1530 = vector.load %arg2[%c4_28, %c0_29, %c0_30, %c0_31] : memref<8x4x1x128xf32, #tpu.memory_space<vmem>>, vector<1x4x1x128xf32>
    %1531 = vector.shape_cast %1530 : vector<1x4x1x128xf32> to vector<4x1x128xf32>
    %1532 = vector.extract_strided_slice %1531 {offsets = [0, 0, 0], sizes = [1, 1, 128], strides = [1, 1, 1]} : vector<4x1x128xf32> to vector<1x1x128xf32>
    %1533 = vector.shape_cast %1532 : vector<1x1x128xf32> to vector<1x128xf32>
    %1534 = vector.extract_strided_slice %1531 {offsets = [1, 0, 0], sizes = [1, 1, 128], strides = [1, 1, 1]} : vector<4x1x128xf32> to vector<1x1x128xf32>
    %1535 = vector.shape_cast %1534 : vector<1x1x128xf32> to vector<1x128xf32>
    %1536 = vector.extract_strided_slice %1531 {offsets = [2, 0, 0], sizes = [1, 1, 128], strides = [1, 1, 1]} : vector<4x1x128xf32> to vector<1x1x128xf32>
    %1537 = vector.shape_cast %1536 : vector<1x1x128xf32> to vector<1x128xf32>
    %1538 = vector.extract_strided_slice %1531 {offsets = [3, 0, 0], sizes = [1, 1, 128], strides = [1, 1, 1]} : vector<4x1x128xf32> to vector<1x1x128xf32>
    %1539 = vector.shape_cast %1538 : vector<1x1x128xf32> to vector<1x128xf32>
    %c256 = arith.constant 256 : index
    %1540 = memref.load %arg1[%c256] : memref<512xf32, #tpu.memory_space<smem>>
    %c257 = arith.constant 257 : index
    %1541 = memref.load %arg1[%c257] : memref<512xf32, #tpu.memory_space<smem>>
    %c258 = arith.constant 258 : index
    %1542 = memref.load %arg1[%c258] : memref<512xf32, #tpu.memory_space<smem>>
    %c259 = arith.constant 259 : index
    %1543 = memref.load %arg1[%c259] : memref<512xf32, #tpu.memory_space<smem>>
    %c260 = arith.constant 260 : index
    %1544 = memref.load %arg1[%c260] : memref<512xf32, #tpu.memory_space<smem>>
    %c261 = arith.constant 261 : index
    %1545 = memref.load %arg1[%c261] : memref<512xf32, #tpu.memory_space<smem>>
    %c262 = arith.constant 262 : index
    %1546 = memref.load %arg1[%c262] : memref<512xf32, #tpu.memory_space<smem>>
    %c263 = arith.constant 263 : index
    %1547 = memref.load %arg1[%c263] : memref<512xf32, #tpu.memory_space<smem>>
    %c264 = arith.constant 264 : index
    %1548 = memref.load %arg1[%c264] : memref<512xf32, #tpu.memory_space<smem>>
    %c265 = arith.constant 265 : index
    %1549 = memref.load %arg1[%c265] : memref<512xf32, #tpu.memory_space<smem>>
    %c266 = arith.constant 266 : index
    %1550 = memref.load %arg1[%c266] : memref<512xf32, #tpu.memory_space<smem>>
    %c267 = arith.constant 267 : index
    %1551 = memref.load %arg1[%c267] : memref<512xf32, #tpu.memory_space<smem>>
    %c268 = arith.constant 268 : index
    %1552 = memref.load %arg1[%c268] : memref<512xf32, #tpu.memory_space<smem>>
    %c269 = arith.constant 269 : index
    %1553 = memref.load %arg1[%c269] : memref<512xf32, #tpu.memory_space<smem>>
    %c270 = arith.constant 270 : index
    %1554 = memref.load %arg1[%c270] : memref<512xf32, #tpu.memory_space<smem>>
    %c271 = arith.constant 271 : index
    %1555 = memref.load %arg1[%c271] : memref<512xf32, #tpu.memory_space<smem>>
    %c272 = arith.constant 272 : index
    %1556 = memref.load %arg1[%c272] : memref<512xf32, #tpu.memory_space<smem>>
    %c273 = arith.constant 273 : index
    %1557 = memref.load %arg1[%c273] : memref<512xf32, #tpu.memory_space<smem>>
    %c274 = arith.constant 274 : index
    %1558 = memref.load %arg1[%c274] : memref<512xf32, #tpu.memory_space<smem>>
    %c275 = arith.constant 275 : index
    %1559 = memref.load %arg1[%c275] : memref<512xf32, #tpu.memory_space<smem>>
    %c276 = arith.constant 276 : index
    %1560 = memref.load %arg1[%c276] : memref<512xf32, #tpu.memory_space<smem>>
    %c277 = arith.constant 277 : index
    %1561 = memref.load %arg1[%c277] : memref<512xf32, #tpu.memory_space<smem>>
    %c278 = arith.constant 278 : index
    %1562 = memref.load %arg1[%c278] : memref<512xf32, #tpu.memory_space<smem>>
    %c279 = arith.constant 279 : index
    %1563 = memref.load %arg1[%c279] : memref<512xf32, #tpu.memory_space<smem>>
    %c280 = arith.constant 280 : index
    %1564 = memref.load %arg1[%c280] : memref<512xf32, #tpu.memory_space<smem>>
    %c281 = arith.constant 281 : index
    %1565 = memref.load %arg1[%c281] : memref<512xf32, #tpu.memory_space<smem>>
    %c282 = arith.constant 282 : index
    %1566 = memref.load %arg1[%c282] : memref<512xf32, #tpu.memory_space<smem>>
    %c283 = arith.constant 283 : index
    %1567 = memref.load %arg1[%c283] : memref<512xf32, #tpu.memory_space<smem>>
    %c284 = arith.constant 284 : index
    %1568 = memref.load %arg1[%c284] : memref<512xf32, #tpu.memory_space<smem>>
    %c285 = arith.constant 285 : index
    %1569 = memref.load %arg1[%c285] : memref<512xf32, #tpu.memory_space<smem>>
    %c286 = arith.constant 286 : index
    %1570 = memref.load %arg1[%c286] : memref<512xf32, #tpu.memory_space<smem>>
    %c287 = arith.constant 287 : index
    %1571 = memref.load %arg1[%c287] : memref<512xf32, #tpu.memory_space<smem>>
    %c288 = arith.constant 288 : index
    %1572 = memref.load %arg1[%c288] : memref<512xf32, #tpu.memory_space<smem>>
    %c289 = arith.constant 289 : index
    %1573 = memref.load %arg1[%c289] : memref<512xf32, #tpu.memory_space<smem>>
    %c290 = arith.constant 290 : index
    %1574 = memref.load %arg1[%c290] : memref<512xf32, #tpu.memory_space<smem>>
    %c291 = arith.constant 291 : index
    %1575 = memref.load %arg1[%c291] : memref<512xf32, #tpu.memory_space<smem>>
    %c292 = arith.constant 292 : index
    %1576 = memref.load %arg1[%c292] : memref<512xf32, #tpu.memory_space<smem>>
    %c293 = arith.constant 293 : index
    %1577 = memref.load %arg1[%c293] : memref<512xf32, #tpu.memory_space<smem>>
    %c294 = arith.constant 294 : index
    %1578 = memref.load %arg1[%c294] : memref<512xf32, #tpu.memory_space<smem>>
    %c295 = arith.constant 295 : index
    %1579 = memref.load %arg1[%c295] : memref<512xf32, #tpu.memory_space<smem>>
    %c296 = arith.constant 296 : index
    %1580 = memref.load %arg1[%c296] : memref<512xf32, #tpu.memory_space<smem>>
    %c297 = arith.constant 297 : index
    %1581 = memref.load %arg1[%c297] : memref<512xf32, #tpu.memory_space<smem>>
    %c298 = arith.constant 298 : index
    %1582 = memref.load %arg1[%c298] : memref<512xf32, #tpu.memory_space<smem>>
    %c299 = arith.constant 299 : index
    %1583 = memref.load %arg1[%c299] : memref<512xf32, #tpu.memory_space<smem>>
    %c300 = arith.constant 300 : index
    %1584 = memref.load %arg1[%c300] : memref<512xf32, #tpu.memory_space<smem>>
    %c301 = arith.constant 301 : index
    %1585 = memref.load %arg1[%c301] : memref<512xf32, #tpu.memory_space<smem>>
    %c302 = arith.constant 302 : index
    %1586 = memref.load %arg1[%c302] : memref<512xf32, #tpu.memory_space<smem>>
    %c303 = arith.constant 303 : index
    %1587 = memref.load %arg1[%c303] : memref<512xf32, #tpu.memory_space<smem>>
    %c304 = arith.constant 304 : index
    %1588 = memref.load %arg1[%c304] : memref<512xf32, #tpu.memory_space<smem>>
    %c305 = arith.constant 305 : index
    %1589 = memref.load %arg1[%c305] : memref<512xf32, #tpu.memory_space<smem>>
    %c306 = arith.constant 306 : index
    %1590 = memref.load %arg1[%c306] : memref<512xf32, #tpu.memory_space<smem>>
    %c307 = arith.constant 307 : index
    %1591 = memref.load %arg1[%c307] : memref<512xf32, #tpu.memory_space<smem>>
    %c308 = arith.constant 308 : index
    %1592 = memref.load %arg1[%c308] : memref<512xf32, #tpu.memory_space<smem>>
    %c309 = arith.constant 309 : index
    %1593 = memref.load %arg1[%c309] : memref<512xf32, #tpu.memory_space<smem>>
    %c310 = arith.constant 310 : index
    %1594 = memref.load %arg1[%c310] : memref<512xf32, #tpu.memory_space<smem>>
    %c311 = arith.constant 311 : index
    %1595 = memref.load %arg1[%c311] : memref<512xf32, #tpu.memory_space<smem>>
    %c312 = arith.constant 312 : index
    %1596 = memref.load %arg1[%c312] : memref<512xf32, #tpu.memory_space<smem>>
    %c313 = arith.constant 313 : index
    %1597 = memref.load %arg1[%c313] : memref<512xf32, #tpu.memory_space<smem>>
    %c314 = arith.constant 314 : index
    %1598 = memref.load %arg1[%c314] : memref<512xf32, #tpu.memory_space<smem>>
    %c315 = arith.constant 315 : index
    %1599 = memref.load %arg1[%c315] : memref<512xf32, #tpu.memory_space<smem>>
    %c316 = arith.constant 316 : index
    %1600 = memref.load %arg1[%c316] : memref<512xf32, #tpu.memory_space<smem>>
    %c317 = arith.constant 317 : index
    %1601 = memref.load %arg1[%c317] : memref<512xf32, #tpu.memory_space<smem>>
    %c318 = arith.constant 318 : index
    %1602 = memref.load %arg1[%c318] : memref<512xf32, #tpu.memory_space<smem>>
    %c319 = arith.constant 319 : index
    %1603 = memref.load %arg1[%c319] : memref<512xf32, #tpu.memory_space<smem>>
    %1604 = vector.broadcast %1540 : f32 to vector<1x128xf32>
    %1605 = arith.mulf %1533, %1604 : vector<1x128xf32>
    %1606 = vector.broadcast %1541 : f32 to vector<1x128xf32>
    %1607 = arith.mulf %1535, %1606 : vector<1x128xf32>
    %1608 = arith.addf %1605, %1607 : vector<1x128xf32>
    %1609 = vector.broadcast %1542 : f32 to vector<1x128xf32>
    %1610 = arith.mulf %1537, %1609 : vector<1x128xf32>
    %1611 = arith.addf %1608, %1610 : vector<1x128xf32>
    %1612 = vector.broadcast %1543 : f32 to vector<1x128xf32>
    %1613 = arith.mulf %1539, %1612 : vector<1x128xf32>
    %1614 = arith.addf %1611, %1613 : vector<1x128xf32>
    %1615 = arith.mulf %1098, %1614 : vector<1x128xf32>
    %1616 = vector.broadcast %1544 : f32 to vector<1x128xf32>
    %1617 = arith.mulf %1533, %1616 : vector<1x128xf32>
    %1618 = vector.broadcast %1545 : f32 to vector<1x128xf32>
    %1619 = arith.mulf %1535, %1618 : vector<1x128xf32>
    %1620 = arith.addf %1617, %1619 : vector<1x128xf32>
    %1621 = vector.broadcast %1546 : f32 to vector<1x128xf32>
    %1622 = arith.mulf %1537, %1621 : vector<1x128xf32>
    %1623 = arith.addf %1620, %1622 : vector<1x128xf32>
    %1624 = vector.broadcast %1547 : f32 to vector<1x128xf32>
    %1625 = arith.mulf %1539, %1624 : vector<1x128xf32>
    %1626 = arith.addf %1623, %1625 : vector<1x128xf32>
    %1627 = arith.mulf %1149, %1626 : vector<1x128xf32>
    %1628 = arith.addf %1615, %1627 : vector<1x128xf32>
    %1629 = vector.broadcast %1548 : f32 to vector<1x128xf32>
    %1630 = arith.mulf %1533, %1629 : vector<1x128xf32>
    %1631 = vector.broadcast %1549 : f32 to vector<1x128xf32>
    %1632 = arith.mulf %1535, %1631 : vector<1x128xf32>
    %1633 = arith.addf %1630, %1632 : vector<1x128xf32>
    %1634 = vector.broadcast %1550 : f32 to vector<1x128xf32>
    %1635 = arith.mulf %1537, %1634 : vector<1x128xf32>
    %1636 = arith.addf %1633, %1635 : vector<1x128xf32>
    %1637 = vector.broadcast %1551 : f32 to vector<1x128xf32>
    %1638 = arith.mulf %1539, %1637 : vector<1x128xf32>
    %1639 = arith.addf %1636, %1638 : vector<1x128xf32>
    %1640 = arith.mulf %1200, %1639 : vector<1x128xf32>
    %1641 = arith.addf %1628, %1640 : vector<1x128xf32>
    %1642 = vector.broadcast %1552 : f32 to vector<1x128xf32>
    %1643 = arith.mulf %1533, %1642 : vector<1x128xf32>
    %1644 = vector.broadcast %1553 : f32 to vector<1x128xf32>
    %1645 = arith.mulf %1535, %1644 : vector<1x128xf32>
    %1646 = arith.addf %1643, %1645 : vector<1x128xf32>
    %1647 = vector.broadcast %1554 : f32 to vector<1x128xf32>
    %1648 = arith.mulf %1537, %1647 : vector<1x128xf32>
    %1649 = arith.addf %1646, %1648 : vector<1x128xf32>
    %1650 = vector.broadcast %1555 : f32 to vector<1x128xf32>
    %1651 = arith.mulf %1539, %1650 : vector<1x128xf32>
    %1652 = arith.addf %1649, %1651 : vector<1x128xf32>
    %1653 = arith.mulf %1251, %1652 : vector<1x128xf32>
    %1654 = arith.addf %1641, %1653 : vector<1x128xf32>
    %1655 = vector.broadcast %1556 : f32 to vector<1x128xf32>
    %1656 = arith.mulf %1533, %1655 : vector<1x128xf32>
    %1657 = vector.broadcast %1557 : f32 to vector<1x128xf32>
    %1658 = arith.mulf %1535, %1657 : vector<1x128xf32>
    %1659 = arith.addf %1656, %1658 : vector<1x128xf32>
    %1660 = vector.broadcast %1558 : f32 to vector<1x128xf32>
    %1661 = arith.mulf %1537, %1660 : vector<1x128xf32>
    %1662 = arith.addf %1659, %1661 : vector<1x128xf32>
    %1663 = vector.broadcast %1559 : f32 to vector<1x128xf32>
    %1664 = arith.mulf %1539, %1663 : vector<1x128xf32>
    %1665 = arith.addf %1662, %1664 : vector<1x128xf32>
    %1666 = arith.mulf %1098, %1665 : vector<1x128xf32>
    %1667 = vector.broadcast %1560 : f32 to vector<1x128xf32>
    %1668 = arith.mulf %1533, %1667 : vector<1x128xf32>
    %1669 = vector.broadcast %1561 : f32 to vector<1x128xf32>
    %1670 = arith.mulf %1535, %1669 : vector<1x128xf32>
    %1671 = arith.addf %1668, %1670 : vector<1x128xf32>
    %1672 = vector.broadcast %1562 : f32 to vector<1x128xf32>
    %1673 = arith.mulf %1537, %1672 : vector<1x128xf32>
    %1674 = arith.addf %1671, %1673 : vector<1x128xf32>
    %1675 = vector.broadcast %1563 : f32 to vector<1x128xf32>
    %1676 = arith.mulf %1539, %1675 : vector<1x128xf32>
    %1677 = arith.addf %1674, %1676 : vector<1x128xf32>
    %1678 = arith.mulf %1149, %1677 : vector<1x128xf32>
    %1679 = arith.addf %1666, %1678 : vector<1x128xf32>
    %1680 = vector.broadcast %1564 : f32 to vector<1x128xf32>
    %1681 = arith.mulf %1533, %1680 : vector<1x128xf32>
    %1682 = vector.broadcast %1565 : f32 to vector<1x128xf32>
    %1683 = arith.mulf %1535, %1682 : vector<1x128xf32>
    %1684 = arith.addf %1681, %1683 : vector<1x128xf32>
    %1685 = vector.broadcast %1566 : f32 to vector<1x128xf32>
    %1686 = arith.mulf %1537, %1685 : vector<1x128xf32>
    %1687 = arith.addf %1684, %1686 : vector<1x128xf32>
    %1688 = vector.broadcast %1567 : f32 to vector<1x128xf32>
    %1689 = arith.mulf %1539, %1688 : vector<1x128xf32>
    %1690 = arith.addf %1687, %1689 : vector<1x128xf32>
    %1691 = arith.mulf %1200, %1690 : vector<1x128xf32>
    %1692 = arith.addf %1679, %1691 : vector<1x128xf32>
    %1693 = vector.broadcast %1568 : f32 to vector<1x128xf32>
    %1694 = arith.mulf %1533, %1693 : vector<1x128xf32>
    %1695 = vector.broadcast %1569 : f32 to vector<1x128xf32>
    %1696 = arith.mulf %1535, %1695 : vector<1x128xf32>
    %1697 = arith.addf %1694, %1696 : vector<1x128xf32>
    %1698 = vector.broadcast %1570 : f32 to vector<1x128xf32>
    %1699 = arith.mulf %1537, %1698 : vector<1x128xf32>
    %1700 = arith.addf %1697, %1699 : vector<1x128xf32>
    %1701 = vector.broadcast %1571 : f32 to vector<1x128xf32>
    %1702 = arith.mulf %1539, %1701 : vector<1x128xf32>
    %1703 = arith.addf %1700, %1702 : vector<1x128xf32>
    %1704 = arith.mulf %1251, %1703 : vector<1x128xf32>
    %1705 = arith.addf %1692, %1704 : vector<1x128xf32>
    %1706 = vector.broadcast %1572 : f32 to vector<1x128xf32>
    %1707 = arith.mulf %1533, %1706 : vector<1x128xf32>
    %1708 = vector.broadcast %1573 : f32 to vector<1x128xf32>
    %1709 = arith.mulf %1535, %1708 : vector<1x128xf32>
    %1710 = arith.addf %1707, %1709 : vector<1x128xf32>
    %1711 = vector.broadcast %1574 : f32 to vector<1x128xf32>
    %1712 = arith.mulf %1537, %1711 : vector<1x128xf32>
    %1713 = arith.addf %1710, %1712 : vector<1x128xf32>
    %1714 = vector.broadcast %1575 : f32 to vector<1x128xf32>
    %1715 = arith.mulf %1539, %1714 : vector<1x128xf32>
    %1716 = arith.addf %1713, %1715 : vector<1x128xf32>
    %1717 = arith.mulf %1098, %1716 : vector<1x128xf32>
    %1718 = vector.broadcast %1576 : f32 to vector<1x128xf32>
    %1719 = arith.mulf %1533, %1718 : vector<1x128xf32>
    %1720 = vector.broadcast %1577 : f32 to vector<1x128xf32>
    %1721 = arith.mulf %1535, %1720 : vector<1x128xf32>
    %1722 = arith.addf %1719, %1721 : vector<1x128xf32>
    %1723 = vector.broadcast %1578 : f32 to vector<1x128xf32>
    %1724 = arith.mulf %1537, %1723 : vector<1x128xf32>
    %1725 = arith.addf %1722, %1724 : vector<1x128xf32>
    %1726 = vector.broadcast %1579 : f32 to vector<1x128xf32>
    %1727 = arith.mulf %1539, %1726 : vector<1x128xf32>
    %1728 = arith.addf %1725, %1727 : vector<1x128xf32>
    %1729 = arith.mulf %1149, %1728 : vector<1x128xf32>
    %1730 = arith.addf %1717, %1729 : vector<1x128xf32>
    %1731 = vector.broadcast %1580 : f32 to vector<1x128xf32>
    %1732 = arith.mulf %1533, %1731 : vector<1x128xf32>
    %1733 = vector.broadcast %1581 : f32 to vector<1x128xf32>
    %1734 = arith.mulf %1535, %1733 : vector<1x128xf32>
    %1735 = arith.addf %1732, %1734 : vector<1x128xf32>
    %1736 = vector.broadcast %1582 : f32 to vector<1x128xf32>
    %1737 = arith.mulf %1537, %1736 : vector<1x128xf32>
    %1738 = arith.addf %1735, %1737 : vector<1x128xf32>
    %1739 = vector.broadcast %1583 : f32 to vector<1x128xf32>
    %1740 = arith.mulf %1539, %1739 : vector<1x128xf32>
    %1741 = arith.addf %1738, %1740 : vector<1x128xf32>
    %1742 = arith.mulf %1200, %1741 : vector<1x128xf32>
    %1743 = arith.addf %1730, %1742 : vector<1x128xf32>
    %1744 = vector.broadcast %1584 : f32 to vector<1x128xf32>
    %1745 = arith.mulf %1533, %1744 : vector<1x128xf32>
    %1746 = vector.broadcast %1585 : f32 to vector<1x128xf32>
    %1747 = arith.mulf %1535, %1746 : vector<1x128xf32>
    %1748 = arith.addf %1745, %1747 : vector<1x128xf32>
    %1749 = vector.broadcast %1586 : f32 to vector<1x128xf32>
    %1750 = arith.mulf %1537, %1749 : vector<1x128xf32>
    %1751 = arith.addf %1748, %1750 : vector<1x128xf32>
    %1752 = vector.broadcast %1587 : f32 to vector<1x128xf32>
    %1753 = arith.mulf %1539, %1752 : vector<1x128xf32>
    %1754 = arith.addf %1751, %1753 : vector<1x128xf32>
    %1755 = arith.mulf %1251, %1754 : vector<1x128xf32>
    %1756 = arith.addf %1743, %1755 : vector<1x128xf32>
    %1757 = vector.broadcast %1588 : f32 to vector<1x128xf32>
    %1758 = arith.mulf %1533, %1757 : vector<1x128xf32>
    %1759 = vector.broadcast %1589 : f32 to vector<1x128xf32>
    %1760 = arith.mulf %1535, %1759 : vector<1x128xf32>
    %1761 = arith.addf %1758, %1760 : vector<1x128xf32>
    %1762 = vector.broadcast %1590 : f32 to vector<1x128xf32>
    %1763 = arith.mulf %1537, %1762 : vector<1x128xf32>
    %1764 = arith.addf %1761, %1763 : vector<1x128xf32>
    %1765 = vector.broadcast %1591 : f32 to vector<1x128xf32>
    %1766 = arith.mulf %1539, %1765 : vector<1x128xf32>
    %1767 = arith.addf %1764, %1766 : vector<1x128xf32>
    %1768 = arith.mulf %1098, %1767 : vector<1x128xf32>
    %1769 = vector.broadcast %1592 : f32 to vector<1x128xf32>
    %1770 = arith.mulf %1533, %1769 : vector<1x128xf32>
    %1771 = vector.broadcast %1593 : f32 to vector<1x128xf32>
    %1772 = arith.mulf %1535, %1771 : vector<1x128xf32>
    %1773 = arith.addf %1770, %1772 : vector<1x128xf32>
    %1774 = vector.broadcast %1594 : f32 to vector<1x128xf32>
    %1775 = arith.mulf %1537, %1774 : vector<1x128xf32>
    %1776 = arith.addf %1773, %1775 : vector<1x128xf32>
    %1777 = vector.broadcast %1595 : f32 to vector<1x128xf32>
    %1778 = arith.mulf %1539, %1777 : vector<1x128xf32>
    %1779 = arith.addf %1776, %1778 : vector<1x128xf32>
    %1780 = arith.mulf %1149, %1779 : vector<1x128xf32>
    %1781 = arith.addf %1768, %1780 : vector<1x128xf32>
    %1782 = vector.broadcast %1596 : f32 to vector<1x128xf32>
    %1783 = arith.mulf %1533, %1782 : vector<1x128xf32>
    %1784 = vector.broadcast %1597 : f32 to vector<1x128xf32>
    %1785 = arith.mulf %1535, %1784 : vector<1x128xf32>
    %1786 = arith.addf %1783, %1785 : vector<1x128xf32>
    %1787 = vector.broadcast %1598 : f32 to vector<1x128xf32>
    %1788 = arith.mulf %1537, %1787 : vector<1x128xf32>
    %1789 = arith.addf %1786, %1788 : vector<1x128xf32>
    %1790 = vector.broadcast %1599 : f32 to vector<1x128xf32>
    %1791 = arith.mulf %1539, %1790 : vector<1x128xf32>
    %1792 = arith.addf %1789, %1791 : vector<1x128xf32>
    %1793 = arith.mulf %1200, %1792 : vector<1x128xf32>
    %1794 = arith.addf %1781, %1793 : vector<1x128xf32>
    %1795 = vector.broadcast %1600 : f32 to vector<1x128xf32>
    %1796 = arith.mulf %1533, %1795 : vector<1x128xf32>
    %1797 = vector.broadcast %1601 : f32 to vector<1x128xf32>
    %1798 = arith.mulf %1535, %1797 : vector<1x128xf32>
    %1799 = arith.addf %1796, %1798 : vector<1x128xf32>
    %1800 = vector.broadcast %1602 : f32 to vector<1x128xf32>
    %1801 = arith.mulf %1537, %1800 : vector<1x128xf32>
    %1802 = arith.addf %1799, %1801 : vector<1x128xf32>
    %1803 = vector.broadcast %1603 : f32 to vector<1x128xf32>
    %1804 = arith.mulf %1539, %1803 : vector<1x128xf32>
    %1805 = arith.addf %1802, %1804 : vector<1x128xf32>
    %1806 = arith.mulf %1251, %1805 : vector<1x128xf32>
    %1807 = arith.addf %1794, %1806 : vector<1x128xf32>
    %1808 = arith.mulf %1376, %1654 : vector<1x128xf32>
    %1809 = arith.mulf %1427, %1705 : vector<1x128xf32>
    %1810 = arith.addf %1808, %1809 : vector<1x128xf32>
    %1811 = arith.mulf %1478, %1756 : vector<1x128xf32>
    %1812 = arith.addf %1810, %1811 : vector<1x128xf32>
    %1813 = arith.mulf %1529, %1807 : vector<1x128xf32>
    %1814 = arith.addf %1812, %1813 : vector<1x128xf32>
    %1815 = vector.shape_cast %1814 : vector<1x128xf32> to vector<1x1x128xf32>
    %c0_32 = arith.constant 0 : index
    %c0_33 = arith.constant 0 : index
    %c0_34 = arith.constant 0 : index
    %1816 = vector.load %arg3[%c0_32, %c0_33, %c0_34] : memref<1x1x128xf32, #tpu.memory_space<vmem>>, vector<1x1x128xf32>
    tpu.vector_store %arg3[%c0_32, %c0_33, %c0_34], %1815 {strides = array<i32>} : memref<1x1x128xf32, #tpu.memory_space<vmem>>, vector<1x1x128xf32>,
    return
  }
  func.func @transform_0(%arg0: i32) -> i32 {
    %c0_i32 = arith.constant 0 : i32
    %c0_i32_0 = arith.constant 0 : i32
    return %c0_i32 : i32
  }
  func.func @transform_1(%arg0: i32) -> (i32, i32, i32, i32) {
    %c0_i32 = arith.constant 0 : i32
    %c0_i32_0 = arith.constant 0 : i32
    %c0_i32_1 = arith.constant 0 : i32
    %c0_i32_2 = arith.constant 0 : i32
    return %c0_i32, %c0_i32_0, %arg0, %c0_i32_1 : i32, i32, i32, i32
  }
  func.func @transform_2(%arg0: i32) -> (i32, i32, i32) {
    %c0_i32 = arith.constant 0 : i32
    %c0_i32_0 = arith.constant 0 : i32
    %c0_i32_1 = arith.constant 0 : i32
    return %arg0, %c0_i32, %c0_i32_0 : i32, i32, i32
  }
}

</mosaic_0001>

<llo_original>
// kernel: mps_forward.1
$region0: #{mps_forward.1}
  #allocation0 [shape = 'u32[]', space=smem, size = 0x4, offset = 0x4, fixed_abs, tag = 'smem constant byte address 0x4 - core index']
  #allocation1 [shape = 'u32[144,128]{1,0:T(1,128)}', space=vmem, size = 0x12000, scoped, tag = 'internal scratch']
  %s0 = inlined_call_operand.vmem [shape: f32[512], index: 0, kind: input, shape index: {}]
  %s1 = inlined_call_operand.vmem [shape: f32[8,4,1,128], index: 1, kind: input, shape index: {}]
  %s2 = inlined_call_operand.vmem [shape: f32[1,1,128], index: 2, kind: output, shape index: {}]
  %s3 = sld [smem:[#allocation0]]
  $region22: #{mps_forward.1} parent=0
    _
  %s5 = ssub.s32 1, %s3
  %s6 = scalar_select 0, %s5, %s3
  $region1: #{mps_forward.1} parent=0
    #allocation2 [shape = 'u8[2048]{0}', space=smem, size = 0x800, scoped, tag = 'input window, operand 0, single buffered']
    #allocation3 [shape = 's32[1]{0}', space=sflag, size = 0x4, scoped, tag = 'scoped memory for mps_forward.1']
    %7 = vsyncpa [#allocation3], 0
    // Predicated region
    $region2: #{mps_forward.1} parent=1 // pred_check
      _
    $region3: #{mps_forward.1} parent=1 // pred_check_branch
      %9 = sbr.rel (0) target = $region5
    $region4: #{mps_forward.1} parent=1 // pred_region
      %s11 = ssub.s32 64, 64
      %12 = vsyncadd [#allocation3], %s11
      %s14 = sshll.u32 %s0, 4
      %s15 = int_to_ptr.vmem [resolvable:$true] %s14
      %17 = dma.vmem_to_smem %s15, 64, [#allocation2], [#allocation3]
    $region5: #{mps_forward.1} parent=1 // pred_fallthru
      _
    // Predicated region
    $region6: #{mps_forward.1} parent=1 // pred_check
      _
    $region7: #{mps_forward.1} parent=1 // pred_check_branch
      %19 = sbr.rel (0) target = $region9
    $region8: #{mps_forward.1} parent=1 // pred_region
      _
    $region9: #{mps_forward.1} parent=1 // pred_fallthru
      _
    // Predicated region
    $region10: #{mps_forward.1} parent=1 // pred_check
      _
    $region11: #{mps_forward.1} parent=1 // pred_check_branch
      %21 = sbr.rel (0) target = $region13
    $region12: #{mps_forward.1} parent=1 // pred_region
      %22 = dma.done [#allocation3], 64
    $region13: #{mps_forward.1} parent=1 // pred_fallthru
      _
    %23 = sfence
    %v24 = vld [vmem:[%s1] sm:$0x1]
    %v25 = vld [vmem:[%s1 + $0x1] sm:$0x1]
    %v26 = vld [vmem:[%s1 + $0x2] sm:$0x1]
    %v27 = vld [vmem:[%s1 + $0x3] sm:$0x1]
    %s28 = sld [smem:[#allocation2]]
    %s29 = sld [smem:[#allocation2 + $0x1]]
    %s30 = sld [smem:[#allocation2 + $0x2]]
    %s31 = sld [smem:[#allocation2 + $0x3]]
    %s32 = sld [smem:[#allocation2 + $0x4]]
    %s33 = sld [smem:[#allocation2 + $0x5]]
    %s34 = sld [smem:[#allocation2 + $0x6]]
    %s35 = sld [smem:[#allocation2 + $0x7]]
    %s36 = sld [smem:[#allocation2 + $0x8]]
    %s37 = sld [smem:[#allocation2 + $0x9]]
    %s38 = sld [smem:[#allocation2 + $0xa]]
    %s39 = sld [smem:[#allocation2 + $0xb]]
    %s40 = sld [smem:[#allocation2 + $0xc]]
    %s41 = sld [smem:[#allocation2 + $0xd]]
    %s42 = sld [smem:[#allocation2 + $0xe]]
    %s43 = sld [smem:[#allocation2 + $0xf]]
    %v44 = vstv %s28
    %v45 = vmul.f32 %v24, %v44
    %v46 = vstv %s29
    %v47 = vmul.f32 %v25, %v46
    %v48 = vadd.f32 %v45, %v47
    %v49 = vstv %s30
    %v50 = vmul.f32 %v26, %v49
    %v51 = vadd.f32 %v48, %v50
    %v52 = vstv %s31
    %v53 = vmul.f32 %v27, %v52
    %v54 = vadd.f32 %v51, %v53
    %v55 = vstv %s32
    %v56 = vmul.f32 %v24, %v55
    %v57 = vstv %s33
    %v58 = vmul.f32 %v25, %v57
    %v59 = vadd.f32 %v56, %v58
    %v60 = vstv %s34
    %v61 = vmul.f32 %v26, %v60
    %v62 = vadd.f32 %v59, %v61
    %v63 = vstv %s35
    %v64 = vmul.f32 %v27, %v63
    %v65 = vadd.f32 %v62, %v64
    %v66 = vstv %s36
    %v67 = vmul.f32 %v24, %v66
    %v68 = vstv %s37
    %v69 = vmul.f32 %v25, %v68
    %v70 = vadd.f32 %v67, %v69
    %v71 = vstv %s38
    %v72 = vmul.f32 %v26, %v71
    %v73 = vadd.f32 %v70, %v72
    %v74 = vstv %s39
    %v75 = vmul.f32 %v27, %v74
    %v76 = vadd.f32 %v73, %v75
    %v77 = vstv %s40
    %v78 = vmul.f32 %v24, %v77
    %v79 = vstv %s41
    %v80 = vmul.f32 %v25, %v79
    %v81 = vadd.f32 %v78, %v80
    %v82 = vstv %s42
    %v83 = vmul.f32 %v26, %v82
    %v84 = vadd.f32 %v81, %v83
    %v85 = vstv %s43
    %v86 = vmul.f32 %v27, %v85
    %v87 = vadd.f32 %v84, %v86
    %s88 = scalar_lea.vmem %s1, 28
    %v89 = vld [vmem:[%s88] sm:$0x1]
    %v90 = vld [vmem:[%s88 + $0x1] sm:$0x1]
    %v91 = vld [vmem:[%s88 + $0x2] sm:$0x1]
    %v92 = vld [vmem:[%s88 + $0x3] sm:$0x1]
    %s93 = sld [smem:[#allocation2 + $0x1c0]]
    %s94 = sld [smem:[#allocation2 + $0x1c1]]
    %s95 = sld [smem:[#allocation2 + $0x1c2]]
    %s96 = sld [smem:[#allocation2 + $0x1c3]]
    %s97 = sld [smem:[#allocation2 + $0x1d0]]
    %s98 = sld [smem:[#allocation2 + $0x1d1]]
    %s99 = sld [smem:[#allocation2 + $0x1d2]]
    %s100 = sld [smem:[#allocation2 + $0x1d3]]
    %s101 = sld [smem:[#allocation2 + $0x1e0]]
    %s102 = sld [smem:[#allocation2 + $0x1e1]]
    %s103 = sld [smem:[#allocation2 + $0x1e2]]
    %s104 = sld [smem:[#allocation2 + $0x1e3]]
    %s105 = sld [smem:[#allocation2 + $0x1f0]]
    %s106 = sld [smem:[#allocation2 + $0x1f1]]
    %s107 = sld [smem:[#allocation2 + $0x1f2]]
    %s108 = sld [smem:[#allocation2 + $0x1f3]]
    %v109 = vstv %s93
    %v110 = vmul.f32 %v89, %v109
    %v111 = vstv %s94
    %v112 = vmul.f32 %v90, %v111
    %v113 = vadd.f32 %v110, %v112
    %v114 = vstv %s95
    %v115 = vmul.f32 %v91, %v114
    %v116 = vadd.f32 %v113, %v115
    %v117 = vstv %s96
    %v118 = vmul.f32 %v92, %v117
    %v119 = vadd.f32 %v116, %v118
    %v120 = vstv %s97
    %v121 = vmul.f32 %v89, %v120
    %v122 = vstv %s98
    %v123 = vmul.f32 %v90, %v122
    %v124 = vadd.f32 %v121, %v123
    %v125 = vstv %s99
    %v126 = vmul.f32 %v91, %v125
    %v127 = vadd.f32 %v124, %v126
    %v128 = vstv %s100
    %v129 = vmul.f32 %v92, %v128
    %v130 = vadd.f32 %v127, %v129
    %v131 = vstv %s101
    %v132 = vmul.f32 %v89, %v131
    %v133 = vstv %s102
    %v134 = vmul.f32 %v90, %v133
    %v135 = vadd.f32 %v132, %v134
    %v136 = vstv %s103
    %v137 = vmul.f32 %v91, %v136
    %v138 = vadd.f32 %v135, %v137
    %v139 = vstv %s104
    %v140 = vmul.f32 %v92, %v139
    %v141 = vadd.f32 %v138, %v140
    %v142 = vstv %s105
    %v143 = vmul.f32 %v89, %v142
    %v144 = vstv %s106
    %v145 = vmul.f32 %v90, %v144
    %v146 = vadd.f32 %v143, %v145
    %v147 = vstv %s107
    %v148 = vmul.f32 %v91, %v147
    %v149 = vadd.f32 %v146, %v148
    %v150 = vstv %s108
    %v151 = vmul.f32 %v92, %v150
    %v152 = vadd.f32 %v149, %v151
    %s153 = scalar_lea.vmem %s1, 4
    %v154 = vld [vmem:[%s153] sm:$0x1]
    %v155 = vld [vmem:[%s153 + $0x1] sm:$0x1]
    %v156 = vld [vmem:[%s153 + $0x2] sm:$0x1]
    %v157 = vld [vmem:[%s153 + $0x3] sm:$0x1]
    %s158 = sld [smem:[#allocation2 + $0x40]]
    %s159 = sld [smem:[#allocation2 + $0x41]]
    %s160 = sld [smem:[#allocation2 + $0x42]]
    %s161 = sld [smem:[#allocation2 + $0x43]]
    %s162 = sld [smem:[#allocation2 + $0x44]]
    %s163 = sld [smem:[#allocation2 + $0x45]]
    %s164 = sld [smem:[#allocation2 + $0x46]]
    %s165 = sld [smem:[#allocation2 + $0x47]]
    %s166 = sld [smem:[#allocation2 + $0x48]]
    %s167 = sld [smem:[#allocation2 + $0x49]]
    %s168 = sld [smem:[#allocation2 + $0x4a]]
    %s169 = sld [smem:[#allocation2 + $0x4b]]
    %s170 = sld [smem:[#allocation2 + $0x4c]]
    %s171 = sld [smem:[#allocation2 + $0x4d]]
    %s172 = sld [smem:[#allocation2 + $0x4e]]
    %s173 = sld [smem:[#allocation2 + $0x4f]]
    %s174 = sld [smem:[#allocation2 + $0x50]]
    %s175 = sld [smem:[#allocation2 + $0x51]]
    %s176 = sld [smem:[#allocation2 + $0x52]]
    %s177 = sld [smem:[#allocation2 + $0x53]]
    %s178 = sld [smem:[#allocation2 + $0x54]]
    %s179 = sld [smem:[#allocation2 + $0x55]]
    %s180 = sld [smem:[#allocation2 + $0x56]]
    %s181 = sld [smem:[#allocation2 + $0x57]]
    %s182 = sld [smem:[#allocation2 + $0x58]]
    %s183 = sld [smem:[#allocation2 + $0x59]]
    %s184 = sld [smem:[#allocation2 + $0x5a]]
    %s185 = sld [smem:[#allocation2 + $0x5b]]
    %s186 = sld [smem:[#allocation2 + $0x5c]]
    %s187 = sld [smem:[#allocation2 + $0x5d]]
    %s188 = sld [smem:[#allocation2 + $0x5e]]
    %s189 = sld [smem:[#allocation2 + $0x5f]]
    %s190 = sld [smem:[#allocation2 + $0x60]]
    %s191 = sld [smem:[#allocation2 + $0x61]]
    %s192 = sld [smem:[#allocation2 + $0x62]]
    %s193 = sld [smem:[#allocation2 + $0x63]]
    %s194 = sld [smem:[#allocation2 + $0x64]]
    %s195 = sld [smem:[#allocation2 + $0x65]]
    %s196 = sld [smem:[#allocation2 + $0x66]]
    %s197 = sld [smem:[#allocation2 + $0x67]]
    %s198 = sld [smem:[#allocation2 + $0x68]]
    %s199 = sld [smem:[#allocation2 + $0x69]]
    %s200 = sld [smem:[#allocation2 + $0x6a]]
    %s201 = sld [smem:[#allocation2 + $0x6b]]
    %s202 = sld [smem:[#allocation2 + $0x6c]]
    %s203 = sld [smem:[#allocation2 + $0x6d]]
    %s204 = sld [smem:[#allocation2 + $0x6e]]
    %s205 = sld [smem:[#allocation2 + $0x6f]]
    %s206 = sld [smem:[#allocation2 + $0x70]]
    %s207 = sld [smem:[#allocation2 + $0x71]]
    %s208 = sld [smem:[#allocation2 + $0x72]]
    %s209 = sld [smem:[#allocation2 + $0x73]]
    %s210 = sld [smem:[#allocation2 + $0x74]]
    %s211 = sld [smem:[#allocation2 + $0x75]]
    %s212 = sld [smem:[#allocation2 + $0x76]]
    %s213 = sld [smem:[#allocation2 + $0x77]]
    %s214 = sld [smem:[#allocation2 + $0x78]]
    %s215 = sld [smem:[#allocation2 + $0x79]]
    %s216 = sld [smem:[#allocation2 + $0x7a]]
    %s217 = sld [smem:[#allocation2 + $0x7b]]
    %s218 = sld [smem:[#allocation2 + $0x7c]]
    %s219 = sld [smem:[#allocation2 + $0x7d]]
    %s220 = sld [smem:[#allocation2 + $0x7e]]
    %s221 = sld [smem:[#allocation2 + $0x7f]]
    %v222 = vstv %s158
    %v223 = vmul.f32 %v154, %v222
    %v224 = vstv %s159
    %v225 = vmul.f32 %v155, %v224
    %v226 = vadd.f32 %v223, %v225
    %v227 = vstv %s160
    %v228 = vmul.f32 %v156, %v227
    %v229 = vadd.f32 %v226, %v228
    %v230 = vstv %s161
    %v231 = vmul.f32 %v157, %v230
    %v232 = vadd.f32 %v229, %v231
    %v233 = vmul.f32 %v54, %v232
    %v234 = vstv %s174
    %v235 = vmul.f32 %v154, %v234
    %v236 = vstv %s175
    %v237 = vmul.f32 %v155, %v236
    %v238 = vadd.f32 %v235, %v237
    %v239 = vstv %s176
    %v240 = vmul.f32 %v156, %v239
    %v241 = vadd.f32 %v238, %v240
    %v242 = vstv %s177
    %v243 = vmul.f32 %v157, %v242
    %v244 = vadd.f32 %v241, %v243
    %v245 = vmul.f32 %v65, %v244
    %v246 = vadd.f32 %v233, %v245
    %v247 = vstv %s190
    %v248 = vmul.f32 %v154, %v247
    %v249 = vstv %s191
    %v250 = vmul.f32 %v155, %v249
    %v251 = vadd.f32 %v248, %v250
    %v252 = vstv %s192
    %v253 = vmul.f32 %v156, %v252
    %v254 = vadd.f32 %v251, %v253
    %v255 = vstv %s193
    %v256 = vmul.f32 %v157, %v255
    %v257 = vadd.f32 %v254, %v256
    %v258 = vmul.f32 %v76, %v257
    %v259 = vadd.f32 %v246, %v258
    %v260 = vstv %s206
    %v261 = vmul.f32 %v154, %v260
    %v262 = vstv %s207
    %v263 = vmul.f32 %v155, %v262
    %v264 = vadd.f32 %v261, %v263
    %v265 = vstv %s208
    %v266 = vmul.f32 %v156, %v265
    %v267 = vadd.f32 %v264, %v266
    %v268 = vstv %s209
    %v269 = vmul.f32 %v157, %v268
    %v270 = vadd.f32 %v267, %v269
    %v271 = vmul.f32 %v87, %v270
    %v272 = vadd.f32 %v259, %v271
    %v273 = vstv %s162
    %v274 = vmul.f32 %v154, %v273
    %v275 = vstv %s163
    %v276 = vmul.f32 %v155, %v275
    %v277 = vadd.f32 %v274, %v276
    %v278 = vstv %s164
    %v279 = vmul.f32 %v156, %v278
    %v280 = vadd.f32 %v277, %v279
    %v281 = vstv %s165
    %v282 = vmul.f32 %v157, %v281
    %v283 = vadd.f32 %v280, %v282
    %v284 = vmul.f32 %v54, %v283
    %v285 = vstv %s178
    %v286 = vmul.f32 %v154, %v285
    %v287 = vstv %s179
    %v288 = vmul.f32 %v155, %v287
    %v289 = vadd.f32 %v286, %v288
    %v290 = vstv %s180
    %v291 = vmul.f32 %v156, %v290
    %v292 = vadd.f32 %v289, %v291
    %v293 = vstv %s181
    %v294 = vmul.f32 %v157, %v293
    %v295 = vadd.f32 %v292, %v294
    %v296 = vmul.f32 %v65, %v295
    %v297 = vadd.f32 %v284, %v296
    %v298 = vstv %s194
    %v299 = vmul.f32 %v154, %v298
    %v300 = vstv %s195
    %v301 = vmul.f32 %v155, %v300
    %v302 = vadd.f32 %v299, %v301
    %v303 = vstv %s196
    %v304 = vmul.f32 %v156, %v303
    %v305 = vadd.f32 %v302, %v304
    %v306 = vstv %s197
    %v307 = vmul.f32 %v157, %v306
    %v308 = vadd.f32 %v305, %v307
    %v309 = vmul.f32 %v76, %v308
    %v310 = vadd.f32 %v297, %v309
    %v311 = vstv %s210
    %v312 = vmul.f32 %v154, %v311
    %v313 = vstv %s211
    %v314 = vmul.f32 %v155, %v313
    %v315 = vadd.f32 %v312, %v314
    %v316 = vstv %s212
    %v317 = vmul.f32 %v156, %v316
    %v318 = vadd.f32 %v315, %v317
    %v319 = vstv %s213
    %v320 = vmul.f32 %v157, %v319
    %v321 = vadd.f32 %v318, %v320
    %v322 = vmul.f32 %v87, %v321
    %v323 = vadd.f32 %v310, %v322
    %v324 = vstv %s166
    %v325 = vmul.f32 %v154, %v324
    %v326 = vstv %s167
    %v327 = vmul.f32 %v155, %v326
    %v328 = vadd.f32 %v325, %v327
    %v329 = vstv %s168
    %v330 = vmul.f32 %v156, %v329
    %v331 = vadd.f32 %v328, %v330
    %v332 = vstv %s169
    %v333 = vmul.f32 %v157, %v332
    %v334 = vadd.f32 %v331, %v333
    %v335 = vmul.f32 %v54, %v334
    %v336 = vstv %s182
    %v337 = vmul.f32 %v154, %v336
    %v338 = vstv %s183
    %v339 = vmul.f32 %v155, %v338
    %v340 = vadd.f32 %v337, %v339
    %v341 = vstv %s184
    %v342 = vmul.f32 %v156, %v341
    %v343 = vadd.f32 %v340, %v342
    %v344 = vstv %s185
    %v345 = vmul.f32 %v157, %v344
    %v346 = vadd.f32 %v343, %v345
    %v347 = vmul.f32 %v65, %v346
    %v348 = vadd.f32 %v335, %v347
    %v349 = vstv %s198
    %v350 = vmul.f32 %v154, %v349
    %v351 = vstv %s199
    %v352 = vmul.f32 %v155, %v351
    %v353 = vadd.f32 %v350, %v352
    %v354 = vstv %s200
    %v355 = vmul.f32 %v156, %v354
    %v356 = vadd.f32 %v353, %v355
    %v357 = vstv %s201
    %v358 = vmul.f32 %v157, %v357
    %v359 = vadd.f32 %v356, %v358
    %v360 = vmul.f32 %v76, %v359
    %v361 = vadd.f32 %v348, %v360
    %v362 = vstv %s214
    %v363 = vmul.f32 %v154, %v362
    %v364 = vstv %s215
    %v365 = vmul.f32 %v155, %v364
    %v366 = vadd.f32 %v363, %v365
    %v367 = vstv %s216
    %v368 = vmul.f32 %v156, %v367
    %v369 = vadd.f32 %v366, %v368
    %v370 = vstv %s217
    %v371 = vmul.f32 %v157, %v370
    %v372 = vadd.f32 %v369, %v371
    %v373 = vmul.f32 %v87, %v372
    %v374 = vadd.f32 %v361, %v373
    %v375 = vstv %s170
    %v376 = vmul.f32 %v154, %v375
    %v377 = vstv %s171
    %v378 = vmul.f32 %v155, %v377
    %v379 = vadd.f32 %v376, %v378
    %v380 = vstv %s172
    %v381 = vmul.f32 %v156, %v380
    %v382 = vadd.f32 %v379, %v381
    %v383 = vstv %s173
    %v384 = vmul.f32 %v157, %v383
    %v385 = vadd.f32 %v382, %v384
    %v386 = vmul.f32 %v54, %v385
    %v387 = vstv %s186
    %v388 = vmul.f32 %v154, %v387
    %v389 = vstv %s187
    %v390 = vmul.f32 %v155, %v389
    %v391 = vadd.f32 %v388, %v390
    %v392 = vstv %s188
    %v393 = vmul.f32 %v156, %v392
    %v394 = vadd.f32 %v391, %v393
    %v395 = vstv %s189
    %v396 = vmul.f32 %v157, %v395
    %v397 = vadd.f32 %v394, %v396
    %v398 = vmul.f32 %v65, %v397
    %v399 = vadd.f32 %v386, %v398
    %v400 = vstv %s202
    %v401 = vmul.f32 %v154, %v400
    %v402 = vstv %s203
    %v403 = vmul.f32 %v155, %v402
    %v404 = vadd.f32 %v401, %v403
    %v405 = vstv %s204
    %v406 = vmul.f32 %v156, %v405
    %v407 = vadd.f32 %v404, %v406
    %v408 = vstv %s205
    %v409 = vmul.f32 %v157, %v408
    %v410 = vadd.f32 %v407, %v409
    %v411 = vmul.f32 %v76, %v410
    %v412 = vadd.f32 %v399, %v411
    %v413 = vstv %s218
    %v414 = vmul.f32 %v154, %v413
    %v415 = vstv %s219
    %v416 = vmul.f32 %v155, %v415
    %v417 = vadd.f32 %v414, %v416
    %v418 = vstv %s220
    %v419 = vmul.f32 %v156, %v418
    %v420 = vadd.f32 %v417, %v419
    %v421 = vstv %s221
    %v422 = vmul.f32 %v157, %v421
    %v423 = vadd.f32 %v420, %v422
    %v424 = vmul.f32 %v87, %v423
    %v425 = vadd.f32 %v412, %v424
    %s426 = scalar_lea.vmem %s1, 24
    %v427 = vld [vmem:[%s426] sm:$0x1]
    %v428 = vld [vmem:[%s426 + $0x1] sm:$0x1]
    %v429 = vld [vmem:[%s426 + $0x2] sm:$0x1]
    %v430 = vld [vmem:[%s426 + $0x3] sm:$0x1]
    %s431 = sld [smem:[#allocation2 + $0x180]]
    %s432 = sld [smem:[#allocation2 + $0x181]]
    %s433 = sld [smem:[#allocation2 + $0x182]]
    %s434 = sld [smem:[#allocation2 + $0x183]]
    %s435 = sld [smem:[#allocation2 + $0x184]]
    %s436 = sld [smem:[#allocation2 + $0x185]]
    %s437 = sld [smem:[#allocation2 + $0x186]]
    %s438 = sld [smem:[#allocation2 + $0x187]]
    %s439 = sld [smem:[#allocation2 + $0x188]]
    %s440 = sld [smem:[#allocation2 + $0x189]]
    %s441 = sld [smem:[#allocation2 + $0x18a]]
    %s442 = sld [smem:[#allocation2 + $0x18b]]
    %s443 = sld [smem:[#allocation2 + $0x18c]]
    %s444 = sld [smem:[#allocation2 + $0x18d]]
    %s445 = sld [smem:[#allocation2 + $0x18e]]
    %s446 = sld [smem:[#allocation2 + $0x18f]]
    %s447 = sld [smem:[#allocation2 + $0x190]]
    %s448 = sld [smem:[#allocation2 + $0x191]]
    %s449 = sld [smem:[#allocation2 + $0x192]]
    %s450 = sld [smem:[#allocation2 + $0x193]]
    %s451 = sld [smem:[#allocation2 + $0x194]]
    %s452 = sld [smem:[#allocation2 + $0x195]]
    %s453 = sld [smem:[#allocation2 + $0x196]]
    %s454 = sld [smem:[#allocation2 + $0x197]]
    %s455 = sld [smem:[#allocation2 + $0x198]]
    %s456 = sld [smem:[#allocation2 + $0x199]]
    %s457 = sld [smem:[#allocation2 + $0x19a]]
    %s458 = sld [smem:[#allocation2 + $0x19b]]
    %s459 = sld [smem:[#allocation2 + $0x19c]]
    %s460 = sld [smem:[#allocation2 + $0x19d]]
    %s461 = sld [smem:[#allocation2 + $0x19e]]
    %s462 = sld [smem:[#allocation2 + $0x19f]]
    %s463 = sld [smem:[#allocation2 + $0x1a0]]
    %s464 = sld [smem:[#allocation2 + $0x1a1]]
    %s465 = sld [smem:[#allocation2 + $0x1a2]]
    %s466 = sld [smem:[#allocation2 + $0x1a3]]
    %s467 = sld [smem:[#allocation2 + $0x1a4]]
    %s468 = sld [smem:[#allocation2 + $0x1a5]]
    %s469 = sld [smem:[#allocation2 + $0x1a6]]
    %s470 = sld [smem:[#allocation2 + $0x1a7]]
    %s471 = sld [smem:[#allocation2 + $0x1a8]]
    %s472 = sld [smem:[#allocation2 + $0x1a9]]
    %s473 = sld [smem:[#allocation2 + $0x1aa]]
    %s474 = sld [smem:[#allocation2 + $0x1ab]]
    %s475 = sld [smem:[#allocation2 + $0x1ac]]
    %s476 = sld [smem:[#allocation2 + $0x1ad]]
    %s477 = sld [smem:[#allocation2 + $0x1ae]]
    %s478 = sld [smem:[#allocation2 + $0x1af]]
    %s479 = sld [smem:[#allocation2 + $0x1b0]]
    %s480 = sld [smem:[#allocation2 + $0x1b1]]
    %s481 = sld [smem:[#allocation2 + $0x1b2]]
    %s482 = sld [smem:[#allocation2 + $0x1b3]]
    %s483 = sld [smem:[#allocation2 + $0x1b4]]
    %s484 = sld [smem:[#allocation2 + $0x1b5]]
    %s485 = sld [smem:[#allocation2 + $0x1b6]]
    %s486 = sld [smem:[#allocation2 + $0x1b7]]
    %s487 = sld [smem:[#allocation2 + $0x1b8]]
    %s488 = sld [smem:[#allocation2 + $0x1b9]]
    %s489 = sld [smem:[#allocation2 + $0x1ba]]
    %s490 = sld [smem:[#allocation2 + $0x1bb]]
    %s491 = sld [smem:[#allocation2 + $0x1bc]]
    %s492 = sld [smem:[#allocation2 + $0x1bd]]
    %s493 = sld [smem:[#allocation2 + $0x1be]]
    %s494 = sld [smem:[#allocation2 + $0x1bf]]
    %v495 = vstv %s431
    %v496 = vmul.f32 %v427, %v495
    %v497 = vstv %s432
    %v498 = vmul.f32 %v428, %v497
    %v499 = vadd.f32 %v496, %v498
    %v500 = vstv %s433
    %v501 = vmul.f32 %v429, %v500
    %v502 = vadd.f32 %v499, %v501
    %v503 = vstv %s434
    %v504 = vmul.f32 %v430, %v503
    %v505 = vadd.f32 %v502, %v504
    %v506 = vmul.f32 %v119, %v505
    %v507 = vstv %s435
    %v508 = vmul.f32 %v427, %v507
    %v509 = vstv %s436
    %v510 = vmul.f32 %v428, %v509
    %v511 = vadd.f32 %v508, %v510
    %v512 = vstv %s437
    %v513 = vmul.f32 %v429, %v512
    %v514 = vadd.f32 %v511, %v513
    %v515 = vstv %s438
    %v516 = vmul.f32 %v430, %v515
    %v517 = vadd.f32 %v514, %v516
    %v518 = vmul.f32 %v130, %v517
    %v519 = vadd.f32 %v506, %v518
    %v520 = vstv %s439
    %v521 = vmul.f32 %v427, %v520
    %v522 = vstv %s440
    %v523 = vmul.f32 %v428, %v522
    %v524 = vadd.f32 %v521, %v523
    %v525 = vstv %s441
    %v526 = vmul.f32 %v429, %v525
    %v527 = vadd.f32 %v524, %v526
    %v528 = vstv %s442
    %v529 = vmul.f32 %v430, %v528
    %v530 = vadd.f32 %v527, %v529
    %v531 = vmul.f32 %v141, %v530
    %v532 = vadd.f32 %v519, %v531
    %v533 = vstv %s443
    %v534 = vmul.f32 %v427, %v533
    %v535 = vstv %s444
    %v536 = vmul.f32 %v428, %v535
    %v537 = vadd.f32 %v534, %v536
    %v538 = vstv %s445
    %v539 = vmul.f32 %v429, %v538
    %v540 = vadd.f32 %v537, %v539
    %v541 = vstv %s446
    %v542 = vmul.f32 %v430, %v541
    %v543 = vadd.f32 %v540, %v542
    %v544 = vmul.f32 %v152, %v543
    %v545 = vadd.f32 %v532, %v544
    %v546 = vstv %s447
    %v547 = vmul.f32 %v427, %v546
    %v548 = vstv %s448
    %v549 = vmul.f32 %v428, %v548
    %v550 = vadd.f32 %v547, %v549
    %v551 = vstv %s449
    %v552 = vmul.f32 %v429, %v551
    %v553 = vadd.f32 %v550, %v552
    %v554 = vstv %s450
    %v555 = vmul.f32 %v430, %v554
    %v556 = vadd.f32 %v553, %v555
    %v557 = vmul.f32 %v119, %v556
    %v558 = vstv %s451
    %v559 = vmul.f32 %v427, %v558
    %v560 = vstv %s452
    %v561 = vmul.f32 %v428, %v560
    %v562 = vadd.f32 %v559, %v561
    %v563 = vstv %s453
    %v564 = vmul.f32 %v429, %v563
    %v565 = vadd.f32 %v562, %v564
    %v566 = vstv %s454
    %v567 = vmul.f32 %v430, %v566
    %v568 = vadd.f32 %v565, %v567
    %v569 = vmul.f32 %v130, %v568
    %v570 = vadd.f32 %v557, %v569
    %v571 = vstv %s455
    %v572 = vmul.f32 %v427, %v571
    %v573 = vstv %s456
    %v574 = vmul.f32 %v428, %v573
    %v575 = vadd.f32 %v572, %v574
    %v576 = vstv %s457
    %v577 = vmul.f32 %v429, %v576
    %v578 = vadd.f32 %v575, %v577
    %v579 = vstv %s458
    %v580 = vmul.f32 %v430, %v579
    %v581 = vadd.f32 %v578, %v580
    %v582 = vmul.f32 %v141, %v581
    %v583 = vadd.f32 %v570, %v582
    %v584 = vstv %s459
    %v585 = vmul.f32 %v427, %v584
    %v586 = vstv %s460
    %v587 = vmul.f32 %v428, %v586
    %v588 = vadd.f32 %v585, %v587
    %v589 = vstv %s461
    %v590 = vmul.f32 %v429, %v589
    %v591 = vadd.f32 %v588, %v590
    %v592 = vstv %s462
    %v593 = vmul.f32 %v430, %v592
    %v594 = vadd.f32 %v591, %v593
    %v595 = vmul.f32 %v152, %v594
    %v596 = vadd.f32 %v583, %v595
    %v597 = vstv %s463
    %v598 = vmul.f32 %v427, %v597
    %v599 = vstv %s464
    %v600 = vmul.f32 %v428, %v599
    %v601 = vadd.f32 %v598, %v600
    %v602 = vstv %s465
    %v603 = vmul.f32 %v429, %v602
    %v604 = vadd.f32 %v601, %v603
    %v605 = vstv %s466
    %v606 = vmul.f32 %v430, %v605
    %v607 = vadd.f32 %v604, %v606
    %v608 = vmul.f32 %v119, %v607
    %v609 = vstv %s467
    %v610 = vmul.f32 %v427, %v609
    %v611 = vstv %s468
    %v612 = vmul.f32 %v428, %v611
    %v613 = vadd.f32 %v610, %v612
    %v614 = vstv %s469
    %v615 = vmul.f32 %v429, %v614
    %v616 = vadd.f32 %v613, %v615
    %v617 = vstv %s470
    %v618 = vmul.f32 %v430, %v617
    %v619 = vadd.f32 %v616, %v618
    %v620 = vmul.f32 %v130, %v619
    %v621 = vadd.f32 %v608, %v620
    %v622 = vstv %s471
    %v623 = vmul.f32 %v427, %v622
    %v624 = vstv %s472
    %v625 = vmul.f32 %v428, %v624
    %v626 = vadd.f32 %v623, %v625
    %v627 = vstv %s473
    %v628 = vmul.f32 %v429, %v627
    %v629 = vadd.f32 %v626, %v628
    %v630 = vstv %s474
    %v631 = vmul.f32 %v430, %v630
    %v632 = vadd.f32 %v629, %v631
    %v633 = vmul.f32 %v141, %v632
    %v634 = vadd.f32 %v621, %v633
    %v635 = vstv %s475
    %v636 = vmul.f32 %v427, %v635
    %v637 = vstv %s476
    %v638 = vmul.f32 %v428, %v637
    %v639 = vadd.f32 %v636, %v638
    %v640 = vstv %s477
    %v641 = vmul.f32 %v429, %v640
    %v642 = vadd.f32 %v639, %v641
    %v643 = vstv %s478
    %v644 = vmul.f32 %v430, %v643
    %v645 = vadd.f32 %v642, %v644
    %v646 = vmul.f32 %v152, %v645
    %v647 = vadd.f32 %v634, %v646
    %v648 = vstv %s479
    %v649 = vmul.f32 %v427, %v648
    %v650 = vstv %s480
    %v651 = vmul.f32 %v428, %v650
    %v652 = vadd.f32 %v649, %v651
    %v653 = vstv %s481
    %v654 = vmul.f32 %v429, %v653
    %v655 = vadd.f32 %v652, %v654
    %v656 = vstv %s482
    %v657 = vmul.f32 %v430, %v656
    %v658 = vadd.f32 %v655, %v657
    %v659 = vmul.f32 %v119, %v658
    %v660 = vstv %s483
    %v661 = vmul.f32 %v427, %v660
    %v662 = vstv %s484
    %v663 = vmul.f32 %v428, %v662
    %v664 = vadd.f32 %v661, %v663
    %v665 = vstv %s485
    %v666 = vmul.f32 %v429, %v665
    %v667 = vadd.f32 %v664, %v666
    %v668 = vstv %s486
    %v669 = vmul.f32 %v430, %v668
    %v670 = vadd.f32 %v667, %v669
    %v671 = vmul.f32 %v130, %v670
    %v672 = vadd.f32 %v659, %v671
    %v673 = vstv %s487
    %v674 = vmul.f32 %v427, %v673
    %v675 = vstv %s488
    %v676 = vmul.f32 %v428, %v675
    %v677 = vadd.f32 %v674, %v676
    %v678 = vstv %s489
    %v679 = vmul.f32 %v429, %v678
    %v680 = vadd.f32 %v677, %v679
    %v681 = vstv %s490
    %v682 = vmul.f32 %v430, %v681
    %v683 = vadd.f32 %v680, %v682
    %v684 = vmul.f32 %v141, %v683
    %v685 = vadd.f32 %v672, %v684
    %v686 = vstv %s491
    %v687 = vmul.f32 %v427, %v686
    %v688 = vstv %s492
    %v689 = vmul.f32 %v428, %v688
    %v690 = vadd.f32 %v687, %v689
    %v691 = vstv %s493
    %v692 = vmul.f32 %v429, %v691
    %v693 = vadd.f32 %v690, %v692
    %v694 = vstv %s494
    %v695 = vmul.f32 %v430, %v694
    %v696 = vadd.f32 %v693, %v695
    %v697 = vmul.f32 %v152, %v696
    %v698 = vadd.f32 %v685, %v697
    %s699 = scalar_lea.vmem %s1, 8
    %v700 = vld [vmem:[%s699] sm:$0x1]
    %v701 = vld [vmem:[%s699 + $0x1] sm:$0x1]
    %v702 = vld [vmem:[%s699 + $0x2] sm:$0x1]
    %v703 = vld [vmem:[%s699 + $0x3] sm:$0x1]
    %s704 = sld [smem:[#allocation2 + $0x80]]
    %s705 = sld [smem:[#allocation2 + $0x81]]
    %s706 = sld [smem:[#allocation2 + $0x82]]
    %s707 = sld [smem:[#allocation2 + $0x83]]
    %s708 = sld [smem:[#allocation2 + $0x84]]
    %s709 = sld [smem:[#allocation2 + $0x85]]
    %s710 = sld [smem:[#allocation2 + $0x86]]
    %s711 = sld [smem:[#allocation2 + $0x87]]
    %s712 = sld [smem:[#allocation2 + $0x88]]
    %s713 = sld [smem:[#allocation2 + $0x89]]
    %s714 = sld [smem:[#allocation2 + $0x8a]]
    %s715 = sld [smem:[#allocation2 + $0x8b]]
    %s716 = sld [smem:[#allocation2 + $0x8c]]
    %s717 = sld [smem:[#allocation2 + $0x8d]]
    %s718 = sld [smem:[#allocation2 + $0x8e]]
    %s719 = sld [smem:[#allocation2 + $0x8f]]
    %s720 = sld [smem:[#allocation2 + $0x90]]
    %s721 = sld [smem:[#allocation2 + $0x91]]
    %s722 = sld [smem:[#allocation2 + $0x92]]
    %s723 = sld [smem:[#allocation2 + $0x93]]
    %s724 = sld [smem:[#allocation2 + $0x94]]
    %s725 = sld [smem:[#allocation2 + $0x95]]
    %s726 = sld [smem:[#allocation2 + $0x96]]
    %s727 = sld [smem:[#allocation2 + $0x97]]
    %s728 = sld [smem:[#allocation2 + $0x98]]
    %s729 = sld [smem:[#allocation2 + $0x99]]
    %s730 = sld [smem:[#allocation2 + $0x9a]]
    %s731 = sld [smem:[#allocation2 + $0x9b]]
    %s732 = sld [smem:[#allocation2 + $0x9c]]
    %s733 = sld [smem:[#allocation2 + $0x9d]]
    %s734 = sld [smem:[#allocation2 + $0x9e]]
    %s735 = sld [smem:[#allocation2 + $0x9f]]
    %s736 = sld [smem:[#allocation2 + $0xa0]]
    %s737 = sld [smem:[#allocation2 + $0xa1]]
    %s738 = sld [smem:[#allocation2 + $0xa2]]
    %s739 = sld [smem:[#allocation2 + $0xa3]]
    %s740 = sld [smem:[#allocation2 + $0xa4]]
    %s741 = sld [smem:[#allocation2 + $0xa5]]
    %s742 = sld [smem:[#allocation2 + $0xa6]]
    %s743 = sld [smem:[#allocation2 + $0xa7]]
    %s744 = sld [smem:[#allocation2 + $0xa8]]
    %s745 = sld [smem:[#allocation2 + $0xa9]]
    %s746 = sld [smem:[#allocation2 + $0xaa]]
    %s747 = sld [smem:[#allocation2 + $0xab]]
    %s748 = sld [smem:[#allocation2 + $0xac]]
    %s749 = sld [smem:[#allocation2 + $0xad]]
    %s750 = sld [smem:[#allocation2 + $0xae]]
    %s751 = sld [smem:[#allocation2 + $0xaf]]
    %s752 = sld [smem:[#allocation2 + $0xb0]]
    %s753 = sld [smem:[#allocation2 + $0xb1]]
    %s754 = sld [smem:[#allocation2 + $0xb2]]
    %s755 = sld [smem:[#allocation2 + $0xb3]]
    %s756 = sld [smem:[#allocation2 + $0xb4]]
    %s757 = sld [smem:[#allocation2 + $0xb5]]
    %s758 = sld [smem:[#allocation2 + $0xb6]]
    %s759 = sld [smem:[#allocation2 + $0xb7]]
    %s760 = sld [smem:[#allocation2 + $0xb8]]
    %s761 = sld [smem:[#allocation2 + $0xb9]]
    %s762 = sld [smem:[#allocation2 + $0xba]]
    %s763 = sld [smem:[#allocation2 + $0xbb]]
    %s764 = sld [smem:[#allocation2 + $0xbc]]
    %s765 = sld [smem:[#allocation2 + $0xbd]]
    %s766 = sld [smem:[#allocation2 + $0xbe]]
    %s767 = sld [smem:[#allocation2 + $0xbf]]
    %v768 = vstv %s704
    %v769 = vmul.f32 %v700, %v768
    %v770 = vstv %s705
    %v771 = vmul.f32 %v701, %v770
    %v772 = vadd.f32 %v769, %v771
    %v773 = vstv %s706
    %v774 = vmul.f32 %v702, %v773
    %v775 = vadd.f32 %v772, %v774
    %v776 = vstv %s707
    %v777 = vmul.f32 %v703, %v776
    %v778 = vadd.f32 %v775, %v777
    %v779 = vmul.f32 %v272, %v778
    %v780 = vstv %s720
    %v781 = vmul.f32 %v700, %v780
    %v782 = vstv %s721
    %v783 = vmul.f32 %v701, %v782
    %v784 = vadd.f32 %v781, %v783
    %v785 = vstv %s722
    %v786 = vmul.f32 %v702, %v785
    %v787 = vadd.f32 %v784, %v786
    %v788 = vstv %s723
    %v789 = vmul.f32 %v703, %v788
    %v790 = vadd.f32 %v787, %v789
    %v791 = vmul.f32 %v323, %v790
    %v792 = vadd.f32 %v779, %v791
    %v793 = vstv %s736
    %v794 = vmul.f32 %v700, %v793
    %v795 = vstv %s737
    %v796 = vmul.f32 %v701, %v795
    %v797 = vadd.f32 %v794, %v796
    %v798 = vstv %s738
    %v799 = vmul.f32 %v702, %v798
    %v800 = vadd.f32 %v797, %v799
    %v801 = vstv %s739
    %v802 = vmul.f32 %v703, %v801
    %v803 = vadd.f32 %v800, %v802
    %v804 = vmul.f32 %v374, %v803
    %v805 = vadd.f32 %v792, %v804
    %v806 = vstv %s752
    %v807 = vmul.f32 %v700, %v806
    %v808 = vstv %s753
    %v809 = vmul.f32 %v701, %v808
    %v810 = vadd.f32 %v807, %v809
    %v811 = vstv %s754
    %v812 = vmul.f32 %v702, %v811
    %v813 = vadd.f32 %v810, %v812
    %v814 = vstv %s755
    %v815 = vmul.f32 %v703, %v814
    %v816 = vadd.f32 %v813, %v815
    %v817 = vmul.f32 %v425, %v816
    %v818 = vadd.f32 %v805, %v817
    %v819 = vstv %s708
    %v820 = vmul.f32 %v700, %v819
    %v821 = vstv %s709
    %v822 = vmul.f32 %v701, %v821
    %v823 = vadd.f32 %v820, %v822
    %v824 = vstv %s710
    %v825 = vmul.f32 %v702, %v824
    %v826 = vadd.f32 %v823, %v825
    %v827 = vstv %s711
    %v828 = vmul.f32 %v703, %v827
    %v829 = vadd.f32 %v826, %v828
    %v830 = vmul.f32 %v272, %v829
    %v831 = vstv %s724
    %v832 = vmul.f32 %v700, %v831
    %v833 = vstv %s725
    %v834 = vmul.f32 %v701, %v833
    %v835 = vadd.f32 %v832, %v834
    %v836 = vstv %s726
    %v837 = vmul.f32 %v702, %v836
    %v838 = vadd.f32 %v835, %v837
    %v839 = vstv %s727
    %v840 = vmul.f32 %v703, %v839
    %v841 = vadd.f32 %v838, %v840
    %v842 = vmul.f32 %v323, %v841
    %v843 = vadd.f32 %v830, %v842
    %v844 = vstv %s740
    %v845 = vmul.f32 %v700, %v844
    %v846 = vstv %s741
    %v847 = vmul.f32 %v701, %v846
    %v848 = vadd.f32 %v845, %v847
    %v849 = vstv %s742
    %v850 = vmul.f32 %v702, %v849
    %v851 = vadd.f32 %v848, %v850
    %v852 = vstv %s743
    %v853 = vmul.f32 %v703, %v852
    %v854 = vadd.f32 %v851, %v853
    %v855 = vmul.f32 %v374, %v854
    %v856 = vadd.f32 %v843, %v855
    %v857 = vstv %s756
    %v858 = vmul.f32 %v700, %v857
    %v859 = vstv %s757
    %v860 = vmul.f32 %v701, %v859
    %v861 = vadd.f32 %v858, %v860
    %v862 = vstv %s758
    %v863 = vmul.f32 %v702, %v862
    %v864 = vadd.f32 %v861, %v863
    %v865 = vstv %s759
    %v866 = vmul.f32 %v703, %v865
    %v867 = vadd.f32 %v864, %v866
    %v868 = vmul.f32 %v425, %v867
    %v869 = vadd.f32 %v856, %v868
    %v870 = vstv %s712
    %v871 = vmul.f32 %v700, %v870
    %v872 = vstv %s713
    %v873 = vmul.f32 %v701, %v872
    %v874 = vadd.f32 %v871, %v873
    %v875 = vstv %s714
    %v876 = vmul.f32 %v702, %v875
    %v877 = vadd.f32 %v874, %v876
    %v878 = vstv %s715
    %v879 = vmul.f32 %v703, %v878
    %v880 = vadd.f32 %v877, %v879
    %v881 = vmul.f32 %v272, %v880
    %v882 = vstv %s728
    %v883 = vmul.f32 %v700, %v882
    %v884 = vstv %s729
    %v885 = vmul.f32 %v701, %v884
    %v886 = vadd.f32 %v883, %v885
    %v887 = vstv %s730
    %v888 = vmul.f32 %v702, %v887
    %v889 = vadd.f32 %v886, %v888
    %v890 = vstv %s731
    %v891 = vmul.f32 %v703, %v890
    %v892 = vadd.f32 %v889, %v891
    %v893 = vmul.f32 %v323, %v892
    %v894 = vadd.f32 %v881, %v893
    %v895 = vstv %s744
    %v896 = vmul.f32 %v700, %v895
    %v897 = vstv %s745
    %v898 = vmul.f32 %v701, %v897
    %v899 = vadd.f32 %v896, %v898
    %v900 = vstv %s746
    %v901 = vmul.f32 %v702, %v900
    %v902 = vadd.f32 %v899, %v901
    %v903 = vstv %s747
    %v904 = vmul.f32 %v703, %v903
    %v905 = vadd.f32 %v902, %v904
    %v906 = vmul.f32 %v374, %v905
    %v907 = vadd.f32 %v894, %v906
    %v908 = vstv %s760
    %v909 = vmul.f32 %v700, %v908
    %v910 = vstv %s761
    %v911 = vmul.f32 %v701, %v910
    %v912 = vadd.f32 %v909, %v911
    %v913 = vstv %s762
    %v914 = vmul.f32 %v702, %v913
    %v915 = vadd.f32 %v912, %v914
    %v916 = vstv %s763
    %v917 = vmul.f32 %v703, %v916
    %v918 = vadd.f32 %v915, %v917
    %v919 = vmul.f32 %v425, %v918
    %v920 = vadd.f32 %v907, %v919
    %v921 = vstv %s716
    %v922 = vmul.f32 %v700, %v921
    %v923 = vstv %s717
    %v924 = vmul.f32 %v701, %v923
    %v925 = vadd.f32 %v922, %v924
    %v926 = vstv %s718
    %v927 = vmul.f32 %v702, %v926
    %v928 = vadd.f32 %v925, %v927
    %v929 = vstv %s719
    %v930 = vmul.f32 %v703, %v929
    %v931 = vadd.f32 %v928, %v930
    %v932 = vmul.f32 %v272, %v931
    %v933 = vstv %s732
    %v934 = vmul.f32 %v700, %v933
    %v935 = vstv %s733
    %v936 = vmul.f32 %v701, %v935
    %v937 = vadd.f32 %v934, %v936
    %v938 = vstv %s734
    %v939 = vmul.f32 %v702, %v938
    %v940 = vadd.f32 %v937, %v939
    %v941 = vstv %s735
    %v942 = vmul.f32 %v703, %v941
    %v943 = vadd.f32 %v940, %v942
    %v944 = vmul.f32 %v323, %v943
    %v945 = vadd.f32 %v932, %v944
    %v946 = vstv %s748
    %v947 = vmul.f32 %v700, %v946
    %v948 = vstv %s749
    %v949 = vmul.f32 %v701, %v948
    %v950 = vadd.f32 %v947, %v949
    %v951 = vstv %s750
    %v952 = vmul.f32 %v702, %v951
    %v953 = vadd.f32 %v950, %v952
    %v954 = vstv %s751
    %v955 = vmul.f32 %v703, %v954
    %v956 = vadd.f32 %v953, %v955
    %v957 = vmul.f32 %v374, %v956
    %v958 = vadd.f32 %v945, %v957
    %v959 = vstv %s764
    %v960 = vmul.f32 %v700, %v959
    %v961 = vstv %s765
    %v962 = vmul.f32 %v701, %v961
    %v963 = vadd.f32 %v960, %v962
    %v964 = vstv %s766
    %v965 = vmul.f32 %v702, %v964
    %v966 = vadd.f32 %v963, %v965
    %v967 = vstv %s767
    %v968 = vmul.f32 %v703, %v967
    %v969 = vadd.f32 %v966, %v968
    %v970 = vmul.f32 %v425, %v969
    %v971 = vadd.f32 %v958, %v970
    %s972 = scalar_lea.vmem %s1, 20
    %v973 = vld [vmem:[%s972] sm:$0x1]
    %v974 = vld [vmem:[%s972 + $0x1] sm:$0x1]
    %v975 = vld [vmem:[%s972 + $0x2] sm:$0x1]
    %v976 = vld [vmem:[%s972 + $0x3] sm:$0x1]
    %s977 = sld [smem:[#allocation2 + $0x140]]
    %s978 = sld [smem:[#allocation2 + $0x141]]
    %s979 = sld [smem:[#allocation2 + $0x142]]
    %s980 = sld [smem:[#allocation2 + $0x143]]
    %s981 = sld [smem:[#allocation2 + $0x144]]
    %s982 = sld [smem:[#allocation2 + $0x145]]
    %s983 = sld [smem:[#allocation2 + $0x146]]
    %s984 = sld [smem:[#allocation2 + $0x147]]
    %s985 = sld [smem:[#allocation2 + $0x148]]
    %s986 = sld [smem:[#allocation2 + $0x149]]
    %s987 = sld [smem:[#allocation2 + $0x14a]]
    %s988 = sld [smem:[#allocation2 + $0x14b]]
    %s989 = sld [smem:[#allocation2 + $0x14c]]
    %s990 = sld [smem:[#allocation2 + $0x14d]]
    %s991 = sld [smem:[#allocation2 + $0x14e]]
    %s992 = sld [smem:[#allocation2 + $0x14f]]
    %s993 = sld [smem:[#allocation2 + $0x150]]
    %s994 = sld [smem:[#allocation2 + $0x151]]
    %s995 = sld [smem:[#allocation2 + $0x152]]
    %s996 = sld [smem:[#allocation2 + $0x153]]
    %s997 = sld [smem:[#allocation2 + $0x154]]
    %s998 = sld [smem:[#allocation2 + $0x155]]
    %s999 = sld [smem:[#allocation2 + $0x156]]
    %s1000 = sld [smem:[#allocation2 + $0x157]]
    %s1001 = sld [smem:[#allocation2 + $0x158]]
    %s1002 = sld [smem:[#allocation2 + $0x159]]
    %s1003 = sld [smem:[#allocation2 + $0x15a]]
    %s1004 = sld [smem:[#allocation2 + $0x15b]]
    %s1005 = sld [smem:[#allocation2 + $0x15c]]
    %s1006 = sld [smem:[#allocation2 + $0x15d]]
    %s1007 = sld [smem:[#allocation2 + $0x15e]]
    %s1008 = sld [smem:[#allocation2 + $0x15f]]
    %s1009 = sld [smem:[#allocation2 + $0x160]]
    %s1010 = sld [smem:[#allocation2 + $0x161]]
    %s1011 = sld [smem:[#allocation2 + $0x162]]
    %s1012 = sld [smem:[#allocation2 + $0x163]]
    %s1013 = sld [smem:[#allocation2 + $0x164]]
    %s1014 = sld [smem:[#allocation2 + $0x165]]
    %s1015 = sld [smem:[#allocation2 + $0x166]]
    %s1016 = sld [smem:[#allocation2 + $0x167]]
    %s1017 = sld [smem:[#allocation2 + $0x168]]
    %s1018 = sld [smem:[#allocation2 + $0x169]]
    %s1019 = sld [smem:[#allocation2 + $0x16a]]
    %s1020 = sld [smem:[#allocation2 + $0x16b]]
    %s1021 = sld [smem:[#allocation2 + $0x16c]]
    %s1022 = sld [smem:[#allocation2 + $0x16d]]
    %s1023 = sld [smem:[#allocation2 + $0x16e]]
    %s1024 = sld [smem:[#allocation2 + $0x16f]]
    %s1025 = sld [smem:[#allocation2 + $0x170]]
    %s1026 = sld [smem:[#allocation2 + $0x171]]
    %s1027 = sld [smem:[#allocation2 + $0x172]]
    %s1028 = sld [smem:[#allocation2 + $0x173]]
    %s1029 = sld [smem:[#allocation2 + $0x174]]
    %s1030 = sld [smem:[#allocation2 + $0x175]]
    %s1031 = sld [smem:[#allocation2 + $0x176]]
    %s1032 = sld [smem:[#allocation2 + $0x177]]
    %s1033 = sld [smem:[#allocation2 + $0x178]]
    %s1034 = sld [smem:[#allocation2 + $0x179]]
    %s1035 = sld [smem:[#allocation2 + $0x17a]]
    %s1036 = sld [smem:[#allocation2 + $0x17b]]
    %s1037 = sld [smem:[#allocation2 + $0x17c]]
    %s1038 = sld [smem:[#allocation2 + $0x17d]]
    %s1039 = sld [smem:[#allocation2 + $0x17e]]
    %s1040 = sld [smem:[#allocation2 + $0x17f]]
    %v1041 = vstv %s977
    %v1042 = vmul.f32 %v973, %v1041
    %v1043 = vstv %s978
    %v1044 = vmul.f32 %v974, %v1043
    %v1045 = vadd.f32 %v1042, %v1044
    %v1046 = vstv %s979
    %v1047 = vmul.f32 %v975, %v1046
    %v1048 = vadd.f32 %v1045, %v1047
    %v1049 = vstv %s980
    %v1050 = vmul.f32 %v976, %v1049
    %v1051 = vadd.f32 %v1048, %v1050
    %v1052 = vmul.f32 %v545, %v1051
    %v1053 = vstv %s981
    %v1054 = vmul.f32 %v973, %v1053
    %v1055 = vstv %s982
    %v1056 = vmul.f32 %v974, %v1055
    %v1057 = vadd.f32 %v1054, %v1056
    %v1058 = vstv %s983
    %v1059 = vmul.f32 %v975, %v1058
    %v1060 = vadd.f32 %v1057, %v1059
    %v1061 = vstv %s984
    %v1062 = vmul.f32 %v976, %v1061
    %v1063 = vadd.f32 %v1060, %v1062
    %v1064 = vmul.f32 %v596, %v1063
    %v1065 = vadd.f32 %v1052, %v1064
    %v1066 = vstv %s985
    %v1067 = vmul.f32 %v973, %v1066
    %v1068 = vstv %s986
    %v1069 = vmul.f32 %v974, %v1068
    %v1070 = vadd.f32 %v1067, %v1069
    %v1071 = vstv %s987
    %v1072 = vmul.f32 %v975, %v1071
    %v1073 = vadd.f32 %v1070, %v1072
    %v1074 = vstv %s988
    %v1075 = vmul.f32 %v976, %v1074
    %v1076 = vadd.f32 %v1073, %v1075
    %v1077 = vmul.f32 %v647, %v1076
    %v1078 = vadd.f32 %v1065, %v1077
    %v1079 = vstv %s989
    %v1080 = vmul.f32 %v973, %v1079
    %v1081 = vstv %s990
    %v1082 = vmul.f32 %v974, %v1081
    %v1083 = vadd.f32 %v1080, %v1082
    %v1084 = vstv %s991
    %v1085 = vmul.f32 %v975, %v1084
    %v1086 = vadd.f32 %v1083, %v1085
    %v1087 = vstv %s992
    %v1088 = vmul.f32 %v976, %v1087
    %v1089 = vadd.f32 %v1086, %v1088
    %v1090 = vmul.f32 %v698, %v1089
    %v1091 = vadd.f32 %v1078, %v1090
    %v1092 = vstv %s993
    %v1093 = vmul.f32 %v973, %v1092
    %v1094 = vstv %s994
    %v1095 = vmul.f32 %v974, %v1094
    %v1096 = vadd.f32 %v1093, %v1095
    %v1097 = vstv %s995
    %v1098 = vmul.f32 %v975, %v1097
    %v1099 = vadd.f32 %v1096, %v1098
    %v1100 = vstv %s996
    %v1101 = vmul.f32 %v976, %v1100
    %v1102 = vadd.f32 %v1099, %v1101
    %v1103 = vmul.f32 %v545, %v1102
    %v1104 = vstv %s997
    %v1105 = vmul.f32 %v973, %v1104
    %v1106 = vstv %s998
    %v1107 = vmul.f32 %v974, %v1106
    %v1108 = vadd.f32 %v1105, %v1107
    %v1109 = vstv %s999
    %v1110 = vmul.f32 %v975, %v1109
    %v1111 = vadd.f32 %v1108, %v1110
    %v1112 = vstv %s1000
    %v1113 = vmul.f32 %v976, %v1112
    %v1114 = vadd.f32 %v1111, %v1113
    %v1115 = vmul.f32 %v596, %v1114
    %v1116 = vadd.f32 %v1103, %v1115
    %v1117 = vstv %s1001
    %v1118 = vmul.f32 %v973, %v1117
    %v1119 = vstv %s1002
    %v1120 = vmul.f32 %v974, %v1119
    %v1121 = vadd.f32 %v1118, %v1120
    %v1122 = vstv %s1003
    %v1123 = vmul.f32 %v975, %v1122
    %v1124 = vadd.f32 %v1121, %v1123
    %v1125 = vstv %s1004
    %v1126 = vmul.f32 %v976, %v1125
    %v1127 = vadd.f32 %v1124, %v1126
    %v1128 = vmul.f32 %v647, %v1127
    %v1129 = vadd.f32 %v1116, %v1128
    %v1130 = vstv %s1005
    %v1131 = vmul.f32 %v973, %v1130
    %v1132 = vstv %s1006
    %v1133 = vmul.f32 %v974, %v1132
    %v1134 = vadd.f32 %v1131, %v1133
    %v1135 = vstv %s1007
    %v1136 = vmul.f32 %v975, %v1135
    %v1137 = vadd.f32 %v1134, %v1136
    %v1138 = vstv %s1008
    %v1139 = vmul.f32 %v976, %v1138
    %v1140 = vadd.f32 %v1137, %v1139
    %v1141 = vmul.f32 %v698, %v1140
    %v1142 = vadd.f32 %v1129, %v1141
    %v1143 = vstv %s1009
    %v1144 = vmul.f32 %v973, %v1143
    %v1145 = vstv %s1010
    %v1146 = vmul.f32 %v974, %v1145
    %v1147 = vadd.f32 %v1144, %v1146
    %v1148 = vstv %s1011
    %v1149 = vmul.f32 %v975, %v1148
    %v1150 = vadd.f32 %v1147, %v1149
    %v1151 = vstv %s1012
    %v1152 = vmul.f32 %v976, %v1151
    %v1153 = vadd.f32 %v1150, %v1152
    %v1154 = vmul.f32 %v545, %v1153
    %v1155 = vstv %s1013
    %v1156 = vmul.f32 %v973, %v1155
    %v1157 = vstv %s1014
    %v1158 = vmul.f32 %v974, %v1157
    %v1159 = vadd.f32 %v1156, %v1158
    %v1160 = vstv %s1015
    %v1161 = vmul.f32 %v975, %v1160
    %v1162 = vadd.f32 %v1159, %v1161
    %v1163 = vstv %s1016
    %v1164 = vmul.f32 %v976, %v1163
    %v1165 = vadd.f32 %v1162, %v1164
    %v1166 = vmul.f32 %v596, %v1165
    %v1167 = vadd.f32 %v1154, %v1166
    %v1168 = vstv %s1017
    %v1169 = vmul.f32 %v973, %v1168
    %v1170 = vstv %s1018
    %v1171 = vmul.f32 %v974, %v1170
    %v1172 = vadd.f32 %v1169, %v1171
    %v1173 = vstv %s1019
    %v1174 = vmul.f32 %v975, %v1173
    %v1175 = vadd.f32 %v1172, %v1174
    %v1176 = vstv %s1020
    %v1177 = vmul.f32 %v976, %v1176
    %v1178 = vadd.f32 %v1175, %v1177
    %v1179 = vmul.f32 %v647, %v1178
    %v1180 = vadd.f32 %v1167, %v1179
    %v1181 = vstv %s1021
    %v1182 = vmul.f32 %v973, %v1181
    %v1183 = vstv %s1022
    %v1184 = vmul.f32 %v974, %v1183
    %v1185 = vadd.f32 %v1182, %v1184
    %v1186 = vstv %s1023
    %v1187 = vmul.f32 %v975, %v1186
    %v1188 = vadd.f32 %v1185, %v1187
    %v1189 = vstv %s1024
    %v1190 = vmul.f32 %v976, %v1189
    %v1191 = vadd.f32 %v1188, %v1190
    %v1192 = vmul.f32 %v698, %v1191
    %v1193 = vadd.f32 %v1180, %v1192
    %v1194 = vstv %s1025
    %v1195 = vmul.f32 %v973, %v1194
    %v1196 = vstv %s1026
    %v1197 = vmul.f32 %v974, %v1196
    %v1198 = vadd.f32 %v1195, %v1197
    %v1199 = vstv %s1027
    %v1200 = vmul.f32 %v975, %v1199
    %v1201 = vadd.f32 %v1198, %v1200
    %v1202 = vstv %s1028
    %v1203 = vmul.f32 %v976, %v1202
    %v1204 = vadd.f32 %v1201, %v1203
    %v1205 = vmul.f32 %v545, %v1204
    %v1206 = vstv %s1029
    %v1207 = vmul.f32 %v973, %v1206
    %v1208 = vstv %s1030
    %v1209 = vmul.f32 %v974, %v1208
    %v1210 = vadd.f32 %v1207, %v1209
    %v1211 = vstv %s1031
    %v1212 = vmul.f32 %v975, %v1211
    %v1213 = vadd.f32 %v1210, %v1212
    %v1214 = vstv %s1032
    %v1215 = vmul.f32 %v976, %v1214
    %v1216 = vadd.f32 %v1213, %v1215
    %v1217 = vmul.f32 %v596, %v1216
    %v1218 = vadd.f32 %v1205, %v1217
    %v1219 = vstv %s1033
    %v1220 = vmul.f32 %v973, %v1219
    %v1221 = vstv %s1034
    %v1222 = vmul.f32 %v974, %v1221
    %v1223 = vadd.f32 %v1220, %v1222
    %v1224 = vstv %s1035
    %v1225 = vmul.f32 %v975, %v1224
    %v1226 = vadd.f32 %v1223, %v1225
    %v1227 = vstv %s1036
    %v1228 = vmul.f32 %v976, %v1227
    %v1229 = vadd.f32 %v1226, %v1228
    %v1230 = vmul.f32 %v647, %v1229
    %v1231 = vadd.f32 %v1218, %v1230
    %v1232 = vstv %s1037
    %v1233 = vmul.f32 %v973, %v1232
    %v1234 = vstv %s1038
    %v1235 = vmul.f32 %v974, %v1234
    %v1236 = vadd.f32 %v1233, %v1235
    %v1237 = vstv %s1039
    %v1238 = vmul.f32 %v975, %v1237
    %v1239 = vadd.f32 %v1236, %v1238
    %v1240 = vstv %s1040
    %v1241 = vmul.f32 %v976, %v1240
    %v1242 = vadd.f32 %v1239, %v1241
    %v1243 = vmul.f32 %v698, %v1242
    %v1244 = vadd.f32 %v1231, %v1243
    %s1245 = scalar_lea.vmem %s1, 12
    %v1246 = vld [vmem:[%s1245] sm:$0x1]
    %v1247 = vld [vmem:[%s1245 + $0x1] sm:$0x1]
    %v1248 = vld [vmem:[%s1245 + $0x2] sm:$0x1]
    %v1249 = vld [vmem:[%s1245 + $0x3] sm:$0x1]
    %s1250 = sld [smem:[#allocation2 + $0xc0]]
    %s1251 = sld [smem:[#allocation2 + $0xc1]]
    %s1252 = sld [smem:[#allocation2 + $0xc2]]
    %s1253 = sld [smem:[#allocation2 + $0xc3]]
    %s1254 = sld [smem:[#allocation2 + $0xc4]]
    %s1255 = sld [smem:[#allocation2 + $0xc5]]
    %s1256 = sld [smem:[#allocation2 + $0xc6]]
    %s1257 = sld [smem:[#allocation2 + $0xc7]]
    %s1258 = sld [smem:[#allocation2 + $0xc8]]
    %s1259 = sld [smem:[#allocation2 + $0xc9]]
    %s1260 = sld [smem:[#allocation2 + $0xca]]
    %s1261 = sld [smem:[#allocation2 + $0xcb]]
    %s1262 = sld [smem:[#allocation2 + $0xcc]]
    %s1263 = sld [smem:[#allocation2 + $0xcd]]
    %s1264 = sld [smem:[#allocation2 + $0xce]]
    %s1265 = sld [smem:[#allocation2 + $0xcf]]
    %s1266 = sld [smem:[#allocation2 + $0xd0]]
    %s1267 = sld [smem:[#allocation2 + $0xd1]]
    %s1268 = sld [smem:[#allocation2 + $0xd2]]
    %s1269 = sld [smem:[#allocation2 + $0xd3]]
    %s1270 = sld [smem:[#allocation2 + $0xd4]]
    %s1271 = sld [smem:[#allocation2 + $0xd5]]
    %s1272 = sld [smem:[#allocation2 + $0xd6]]
    %s1273 = sld [smem:[#allocation2 + $0xd7]]
    %s1274 = sld [smem:[#allocation2 + $0xd8]]
    %s1275 = sld [smem:[#allocation2 + $0xd9]]
    %s1276 = sld [smem:[#allocation2 + $0xda]]
    %s1277 = sld [smem:[#allocation2 + $0xdb]]
    %s1278 = sld [smem:[#allocation2 + $0xdc]]
    %s1279 = sld [smem:[#allocation2 + $0xdd]]
    %s1280 = sld [smem:[#allocation2 + $0xde]]
    %s1281 = sld [smem:[#allocation2 + $0xdf]]
    %s1282 = sld [smem:[#allocation2 + $0xe0]]
    %s1283 = sld [smem:[#allocation2 + $0xe1]]
    %s1284 = sld [smem:[#allocation2 + $0xe2]]
    %s1285 = sld [smem:[#allocation2 + $0xe3]]
    %s1286 = sld [smem:[#allocation2 + $0xe4]]
    %s1287 = sld [smem:[#allocation2 + $0xe5]]
    %s1288 = sld [smem:[#allocation2 + $0xe6]]
    %s1289 = sld [smem:[#allocation2 + $0xe7]]
    %s1290 = sld [smem:[#allocation2 + $0xe8]]
    %s1291 = sld [smem:[#allocation2 + $0xe9]]
    %s1292 = sld [smem:[#allocation2 + $0xea]]
    %s1293 = sld [smem:[#allocation2 + $0xeb]]
    %s1294 = sld [smem:[#allocation2 + $0xec]]
    %s1295 = sld [smem:[#allocation2 + $0xed]]
    %s1296 = sld [smem:[#allocation2 + $0xee]]
    %s1297 = sld [smem:[#allocation2 + $0xef]]
    %s1298 = sld [smem:[#allocation2 + $0xf0]]
    %s1299 = sld [smem:[#allocation2 + $0xf1]]
    %s1300 = sld [smem:[#allocation2 + $0xf2]]
    %s1301 = sld [smem:[#allocation2 + $0xf3]]
    %s1302 = sld [smem:[#allocation2 + $0xf4]]
    %s1303 = sld [smem:[#allocation2 + $0xf5]]
    %s1304 = sld [smem:[#allocation2 + $0xf6]]
    %s1305 = sld [smem:[#allocation2 + $0xf7]]
    %s1306 = sld [smem:[#allocation2 + $0xf8]]
    %s1307 = sld [smem:[#allocation2 + $0xf9]]
    %s1308 = sld [smem:[#allocation2 + $0xfa]]
    %s1309 = sld [smem:[#allocation2 + $0xfb]]
    %s1310 = sld [smem:[#allocation2 + $0xfc]]
    %s1311 = sld [smem:[#allocation2 + $0xfd]]
    %s1312 = sld [smem:[#allocation2 + $0xfe]]
    %s1313 = sld [smem:[#allocation2 + $0xff]]
    %v1314 = vstv %s1250
    %v1315 = vmul.f32 %v1246, %v1314
    %v1316 = vstv %s1251
    %v1317 = vmul.f32 %v1247, %v1316
    %v1318 = vadd.f32 %v1315, %v1317
    %v1319 = vstv %s1252
    %v1320 = vmul.f32 %v1248, %v1319
    %v1321 = vadd.f32 %v1318, %v1320
    %v1322 = vstv %s1253
    %v1323 = vmul.f32 %v1249, %v1322
    %v1324 = vadd.f32 %v1321, %v1323
    %v1325 = vmul.f32 %v818, %v1324
    %v1326 = vstv %s1266
    %v1327 = vmul.f32 %v1246, %v1326
    %v1328 = vstv %s1267
    %v1329 = vmul.f32 %v1247, %v1328
    %v1330 = vadd.f32 %v1327, %v1329
    %v1331 = vstv %s1268
    %v1332 = vmul.f32 %v1248, %v1331
    %v1333 = vadd.f32 %v1330, %v1332
    %v1334 = vstv %s1269
    %v1335 = vmul.f32 %v1249, %v1334
    %v1336 = vadd.f32 %v1333, %v1335
    %v1337 = vmul.f32 %v869, %v1336
    %v1338 = vadd.f32 %v1325, %v1337
    %v1339 = vstv %s1282
    %v1340 = vmul.f32 %v1246, %v1339
    %v1341 = vstv %s1283
    %v1342 = vmul.f32 %v1247, %v1341
    %v1343 = vadd.f32 %v1340, %v1342
    %v1344 = vstv %s1284
    %v1345 = vmul.f32 %v1248, %v1344
    %v1346 = vadd.f32 %v1343, %v1345
    %v1347 = vstv %s1285
    %v1348 = vmul.f32 %v1249, %v1347
    %v1349 = vadd.f32 %v1346, %v1348
    %v1350 = vmul.f32 %v920, %v1349
    %v1351 = vadd.f32 %v1338, %v1350
    %v1352 = vstv %s1298
    %v1353 = vmul.f32 %v1246, %v1352
    %v1354 = vstv %s1299
    %v1355 = vmul.f32 %v1247, %v1354
    %v1356 = vadd.f32 %v1353, %v1355
    %v1357 = vstv %s1300
    %v1358 = vmul.f32 %v1248, %v1357
    %v1359 = vadd.f32 %v1356, %v1358
    %v1360 = vstv %s1301
    %v1361 = vmul.f32 %v1249, %v1360
    %v1362 = vadd.f32 %v1359, %v1361
    %v1363 = vmul.f32 %v971, %v1362
    %v1364 = vadd.f32 %v1351, %v1363
    %v1365 = vstv %s1254
    %v1366 = vmul.f32 %v1246, %v1365
    %v1367 = vstv %s1255
    %v1368 = vmul.f32 %v1247, %v1367
    %v1369 = vadd.f32 %v1366, %v1368
    %v1370 = vstv %s1256
    %v1371 = vmul.f32 %v1248, %v1370
    %v1372 = vadd.f32 %v1369, %v1371
    %v1373 = vstv %s1257
    %v1374 = vmul.f32 %v1249, %v1373
    %v1375 = vadd.f32 %v1372, %v1374
    %v1376 = vmul.f32 %v818, %v1375
    %v1377 = vstv %s1270
    %v1378 = vmul.f32 %v1246, %v1377
    %v1379 = vstv %s1271
    %v1380 = vmul.f32 %v1247, %v1379
    %v1381 = vadd.f32 %v1378, %v1380
    %v1382 = vstv %s1272
    %v1383 = vmul.f32 %v1248, %v1382
    %v1384 = vadd.f32 %v1381, %v1383
    %v1385 = vstv %s1273
    %v1386 = vmul.f32 %v1249, %v1385
    %v1387 = vadd.f32 %v1384, %v1386
    %v1388 = vmul.f32 %v869, %v1387
    %v1389 = vadd.f32 %v1376, %v1388
    %v1390 = vstv %s1286
    %v1391 = vmul.f32 %v1246, %v1390
    %v1392 = vstv %s1287
    %v1393 = vmul.f32 %v1247, %v1392
    %v1394 = vadd.f32 %v1391, %v1393
    %v1395 = vstv %s1288
    %v1396 = vmul.f32 %v1248, %v1395
    %v1397 = vadd.f32 %v1394, %v1396
    %v1398 = vstv %s1289
    %v1399 = vmul.f32 %v1249, %v1398
    %v1400 = vadd.f32 %v1397, %v1399
    %v1401 = vmul.f32 %v920, %v1400
    %v1402 = vadd.f32 %v1389, %v1401
    %v1403 = vstv %s1302
    %v1404 = vmul.f32 %v1246, %v1403
    %v1405 = vstv %s1303
    %v1406 = vmul.f32 %v1247, %v1405
    %v1407 = vadd.f32 %v1404, %v1406
    %v1408 = vstv %s1304
    %v1409 = vmul.f32 %v1248, %v1408
    %v1410 = vadd.f32 %v1407, %v1409
    %v1411 = vstv %s1305
    %v1412 = vmul.f32 %v1249, %v1411
    %v1413 = vadd.f32 %v1410, %v1412
    %v1414 = vmul.f32 %v971, %v1413
    %v1415 = vadd.f32 %v1402, %v1414
    %v1416 = vstv %s1258
    %v1417 = vmul.f32 %v1246, %v1416
    %v1418 = vstv %s1259
    %v1419 = vmul.f32 %v1247, %v1418
    %v1420 = vadd.f32 %v1417, %v1419
    %v1421 = vstv %s1260
    %v1422 = vmul.f32 %v1248, %v1421
    %v1423 = vadd.f32 %v1420, %v1422
    %v1424 = vstv %s1261
    %v1425 = vmul.f32 %v1249, %v1424
    %v1426 = vadd.f32 %v1423, %v1425
    %v1427 = vmul.f32 %v818, %v1426
    %v1428 = vstv %s1274
    %v1429 = vmul.f32 %v1246, %v1428
    %v1430 = vstv %s1275
    %v1431 = vmul.f32 %v1247, %v1430
    %v1432 = vadd.f32 %v1429, %v1431
    %v1433 = vstv %s1276
    %v1434 = vmul.f32 %v1248, %v1433
    %v1435 = vadd.f32 %v1432, %v1434
    %v1436 = vstv %s1277
    %v1437 = vmul.f32 %v1249, %v1436
    %v1438 = vadd.f32 %v1435, %v1437
    %v1439 = vmul.f32 %v869, %v1438
    %v1440 = vadd.f32 %v1427, %v1439
    %v1441 = vstv %s1290
    %v1442 = vmul.f32 %v1246, %v1441
    %v1443 = vstv %s1291
    %v1444 = vmul.f32 %v1247, %v1443
    %v1445 = vadd.f32 %v1442, %v1444
    %v1446 = vstv %s1292
    %v1447 = vmul.f32 %v1248, %v1446
    %v1448 = vadd.f32 %v1445, %v1447
    %v1449 = vstv %s1293
    %v1450 = vmul.f32 %v1249, %v1449
    %v1451 = vadd.f32 %v1448, %v1450
    %v1452 = vmul.f32 %v920, %v1451
    %v1453 = vadd.f32 %v1440, %v1452
    %v1454 = vstv %s1306
    %v1455 = vmul.f32 %v1246, %v1454
    %v1456 = vstv %s1307
    %v1457 = vmul.f32 %v1247, %v1456
    %v1458 = vadd.f32 %v1455, %v1457
    %v1459 = vstv %s1308
    %v1460 = vmul.f32 %v1248, %v1459
    %v1461 = vadd.f32 %v1458, %v1460
    %v1462 = vstv %s1309
    %v1463 = vmul.f32 %v1249, %v1462
    %v1464 = vadd.f32 %v1461, %v1463
    %v1465 = vmul.f32 %v971, %v1464
    %v1466 = vadd.f32 %v1453, %v1465
    %v1467 = vstv %s1262
    %v1468 = vmul.f32 %v1246, %v1467
    %v1469 = vstv %s1263
    %v1470 = vmul.f32 %v1247, %v1469
    %v1471 = vadd.f32 %v1468, %v1470
    %v1472 = vstv %s1264
    %v1473 = vmul.f32 %v1248, %v1472
    %v1474 = vadd.f32 %v1471, %v1473
    %v1475 = vstv %s1265
    %v1476 = vmul.f32 %v1249, %v1475
    %v1477 = vadd.f32 %v1474, %v1476
    %v1478 = vmul.f32 %v818, %v1477
    %v1479 = vstv %s1278
    %v1480 = vmul.f32 %v1246, %v1479
    %v1481 = vstv %s1279
    %v1482 = vmul.f32 %v1247, %v1481
    %v1483 = vadd.f32 %v1480, %v1482
    %v1484 = vstv %s1280
    %v1485 = vmul.f32 %v1248, %v1484
    %v1486 = vadd.f32 %v1483, %v1485
    %v1487 = vstv %s1281
    %v1488 = vmul.f32 %v1249, %v1487
    %v1489 = vadd.f32 %v1486, %v1488
    %v1490 = vmul.f32 %v869, %v1489
    %v1491 = vadd.f32 %v1478, %v1490
    %v1492 = vstv %s1294
    %v1493 = vmul.f32 %v1246, %v1492
    %v1494 = vstv %s1295
    %v1495 = vmul.f32 %v1247, %v1494
    %v1496 = vadd.f32 %v1493, %v1495
    %v1497 = vstv %s1296
    %v1498 = vmul.f32 %v1248, %v1497
    %v1499 = vadd.f32 %v1496, %v1498
    %v1500 = vstv %s1297
    %v1501 = vmul.f32 %v1249, %v1500
    %v1502 = vadd.f32 %v1499, %v1501
    %v1503 = vmul.f32 %v920, %v1502
    %v1504 = vadd.f32 %v1491, %v1503
    %v1505 = vstv %s1310
    %v1506 = vmul.f32 %v1246, %v1505
    %v1507 = vstv %s1311
    %v1508 = vmul.f32 %v1247, %v1507
    %v1509 = vadd.f32 %v1506, %v1508
    %v1510 = vstv %s1312
    %v1511 = vmul.f32 %v1248, %v1510
    %v1512 = vadd.f32 %v1509, %v1511
    %v1513 = vstv %s1313
    %v1514 = vmul.f32 %v1249, %v1513
    %v1515 = vadd.f32 %v1512, %v1514
    %v1516 = vmul.f32 %v971, %v1515
    %v1517 = vadd.f32 %v1504, %v1516
    %s1518 = scalar_lea.vmem %s1, 16
    %v1519 = vld [vmem:[%s1518] sm:$0x1]
    %v1520 = vld [vmem:[%s1518 + $0x1] sm:$0x1]
    %v1521 = vld [vmem:[%s1518 + $0x2] sm:$0x1]
    %v1522 = vld [vmem:[%s1518 + $0x3] sm:$0x1]
    %s1523 = sld [smem:[#allocation2 + $0x100]]
    %s1524 = sld [smem:[#allocation2 + $0x101]]
    %s1525 = sld [smem:[#allocation2 + $0x102]]
    %s1526 = sld [smem:[#allocation2 + $0x103]]
    %s1527 = sld [smem:[#allocation2 + $0x104]]
    %s1528 = sld [smem:[#allocation2 + $0x105]]
    %s1529 = sld [smem:[#allocation2 + $0x106]]
    %s1530 = sld [smem:[#allocation2 + $0x107]]
    %s1531 = sld [smem:[#allocation2 + $0x108]]
    %s1532 = sld [smem:[#allocation2 + $0x109]]
    %s1533 = sld [smem:[#allocation2 + $0x10a]]
    %s1534 = sld [smem:[#allocation2 + $0x10b]]
    %s1535 = sld [smem:[#allocation2 + $0x10c]]
    %s1536 = sld [smem:[#allocation2 + $0x10d]]
    %s1537 = sld [smem:[#allocation2 + $0x10e]]
    %s1538 = sld [smem:[#allocation2 + $0x10f]]
    %s1539 = sld [smem:[#allocation2 + $0x110]]
    %s1540 = sld [smem:[#allocation2 + $0x111]]
    %s1541 = sld [smem:[#allocation2 + $0x112]]
    %s1542 = sld [smem:[#allocation2 + $0x113]]
    %s1543 = sld [smem:[#allocation2 + $0x114]]
    %s1544 = sld [smem:[#allocation2 + $0x115]]
    %s1545 = sld [smem:[#allocation2 + $0x116]]
    %s1546 = sld [smem:[#allocation2 + $0x117]]
    %s1547 = sld [smem:[#allocation2 + $0x118]]
    %s1548 = sld [smem:[#allocation2 + $0x119]]
    %s1549 = sld [smem:[#allocation2 + $0x11a]]
    %s1550 = sld [smem:[#allocation2 + $0x11b]]
    %s1551 = sld [smem:[#allocation2 + $0x11c]]
    %s1552 = sld [smem:[#allocation2 + $0x11d]]
    %s1553 = sld [smem:[#allocation2 + $0x11e]]
    %s1554 = sld [smem:[#allocation2 + $0x11f]]
    %s1555 = sld [smem:[#allocation2 + $0x120]]
    %s1556 = sld [smem:[#allocation2 + $0x121]]
    %s1557 = sld [smem:[#allocation2 + $0x122]]
    %s1558 = sld [smem:[#allocation2 + $0x123]]
    %s1559 = sld [smem:[#allocation2 + $0x124]]
    %s1560 = sld [smem:[#allocation2 + $0x125]]
    %s1561 = sld [smem:[#allocation2 + $0x126]]
    %s1562 = sld [smem:[#allocation2 + $0x127]]
    %s1563 = sld [smem:[#allocation2 + $0x128]]
    %s1564 = sld [smem:[#allocation2 + $0x129]]
    %s1565 = sld [smem:[#allocation2 + $0x12a]]
    %s1566 = sld [smem:[#allocation2 + $0x12b]]
    %s1567 = sld [smem:[#allocation2 + $0x12c]]
    %s1568 = sld [smem:[#allocation2 + $0x12d]]
    %s1569 = sld [smem:[#allocation2 + $0x12e]]
    %s1570 = sld [smem:[#allocation2 + $0x12f]]
    %s1571 = sld [smem:[#allocation2 + $0x130]]
    %s1572 = sld [smem:[#allocation2 + $0x131]]
    %s1573 = sld [smem:[#allocation2 + $0x132]]
    %s1574 = sld [smem:[#allocation2 + $0x133]]
    %s1575 = sld [smem:[#allocation2 + $0x134]]
    %s1576 = sld [smem:[#allocation2 + $0x135]]
    %s1577 = sld [smem:[#allocation2 + $0x136]]
    %s1578 = sld [smem:[#allocation2 + $0x137]]
    %s1579 = sld [smem:[#allocation2 + $0x138]]
    %s1580 = sld [smem:[#allocation2 + $0x139]]
    %s1581 = sld [smem:[#allocation2 + $0x13a]]
    %s1582 = sld [smem:[#allocation2 + $0x13b]]
    %s1583 = sld [smem:[#allocation2 + $0x13c]]
    %s1584 = sld [smem:[#allocation2 + $0x13d]]
    %s1585 = sld [smem:[#allocation2 + $0x13e]]
    %s1586 = sld [smem:[#allocation2 + $0x13f]]
    %v1587 = vstv %s1523
    %v1588 = vmul.f32 %v1519, %v1587
    %v1589 = vstv %s1524
    %v1590 = vmul.f32 %v1520, %v1589
    %v1591 = vadd.f32 %v1588, %v1590
    %v1592 = vstv %s1525
    %v1593 = vmul.f32 %v1521, %v1592
    %v1594 = vadd.f32 %v1591, %v1593
    %v1595 = vstv %s1526
    %v1596 = vmul.f32 %v1522, %v1595
    %v1597 = vadd.f32 %v1594, %v1596
    %v1598 = vmul.f32 %v1091, %v1597
    %v1599 = vstv %s1527
    %v1600 = vmul.f32 %v1519, %v1599
    %v1601 = vstv %s1528
    %v1602 = vmul.f32 %v1520, %v1601
    %v1603 = vadd.f32 %v1600, %v1602
    %v1604 = vstv %s1529
    %v1605 = vmul.f32 %v1521, %v1604
    %v1606 = vadd.f32 %v1603, %v1605
    %v1607 = vstv %s1530
    %v1608 = vmul.f32 %v1522, %v1607
    %v1609 = vadd.f32 %v1606, %v1608
    %v1610 = vmul.f32 %v1142, %v1609
    %v1611 = vadd.f32 %v1598, %v1610
    %v1612 = vstv %s1531
    %v1613 = vmul.f32 %v1519, %v1612
    %v1614 = vstv %s1532
    %v1615 = vmul.f32 %v1520, %v1614
    %v1616 = vadd.f32 %v1613, %v1615
    %v1617 = vstv %s1533
    %v1618 = vmul.f32 %v1521, %v1617
    %v1619 = vadd.f32 %v1616, %v1618
    %v1620 = vstv %s1534
    %v1621 = vmul.f32 %v1522, %v1620
    %v1622 = vadd.f32 %v1619, %v1621
    %v1623 = vmul.f32 %v1193, %v1622
    %v1624 = vadd.f32 %v1611, %v1623
    %v1625 = vstv %s1535
    %v1626 = vmul.f32 %v1519, %v1625
    %v1627 = vstv %s1536
    %v1628 = vmul.f32 %v1520, %v1627
    %v1629 = vadd.f32 %v1626, %v1628
    %v1630 = vstv %s1537
    %v1631 = vmul.f32 %v1521, %v1630
    %v1632 = vadd.f32 %v1629, %v1631
    %v1633 = vstv %s1538
    %v1634 = vmul.f32 %v1522, %v1633
    %v1635 = vadd.f32 %v1632, %v1634
    %v1636 = vmul.f32 %v1244, %v1635
    %v1637 = vadd.f32 %v1624, %v1636
    %v1638 = vstv %s1539
    %v1639 = vmul.f32 %v1519, %v1638
    %v1640 = vstv %s1540
    %v1641 = vmul.f32 %v1520, %v1640
    %v1642 = vadd.f32 %v1639, %v1641
    %v1643 = vstv %s1541
    %v1644 = vmul.f32 %v1521, %v1643
    %v1645 = vadd.f32 %v1642, %v1644
    %v1646 = vstv %s1542
    %v1647 = vmul.f32 %v1522, %v1646
    %v1648 = vadd.f32 %v1645, %v1647
    %v1649 = vmul.f32 %v1091, %v1648
    %v1650 = vstv %s1543
    %v1651 = vmul.f32 %v1519, %v1650
    %v1652 = vstv %s1544
    %v1653 = vmul.f32 %v1520, %v1652
    %v1654 = vadd.f32 %v1651, %v1653
    %v1655 = vstv %s1545
    %v1656 = vmul.f32 %v1521, %v1655
    %v1657 = vadd.f32 %v1654, %v1656
    %v1658 = vstv %s1546
    %v1659 = vmul.f32 %v1522, %v1658
    %v1660 = vadd.f32 %v1657, %v1659
    %v1661 = vmul.f32 %v1142, %v1660
    %v1662 = vadd.f32 %v1649, %v1661
    %v1663 = vstv %s1547
    %v1664 = vmul.f32 %v1519, %v1663
    %v1665 = vstv %s1548
    %v1666 = vmul.f32 %v1520, %v1665
    %v1667 = vadd.f32 %v1664, %v1666
    %v1668 = vstv %s1549
    %v1669 = vmul.f32 %v1521, %v1668
    %v1670 = vadd.f32 %v1667, %v1669
    %v1671 = vstv %s1550
    %v1672 = vmul.f32 %v1522, %v1671
    %v1673 = vadd.f32 %v1670, %v1672
    %v1674 = vmul.f32 %v1193, %v1673
    %v1675 = vadd.f32 %v1662, %v1674
    %v1676 = vstv %s1551
    %v1677 = vmul.f32 %v1519, %v1676
    %v1678 = vstv %s1552
    %v1679 = vmul.f32 %v1520, %v1678
    %v1680 = vadd.f32 %v1677, %v1679
    %v1681 = vstv %s1553
    %v1682 = vmul.f32 %v1521, %v1681
    %v1683 = vadd.f32 %v1680, %v1682
    %v1684 = vstv %s1554
    %v1685 = vmul.f32 %v1522, %v1684
    %v1686 = vadd.f32 %v1683, %v1685
    %v1687 = vmul.f32 %v1244, %v1686
    %v1688 = vadd.f32 %v1675, %v1687
    %v1689 = vstv %s1555
    %v1690 = vmul.f32 %v1519, %v1689
    %v1691 = vstv %s1556
    %v1692 = vmul.f32 %v1520, %v1691
    %v1693 = vadd.f32 %v1690, %v1692
    %v1694 = vstv %s1557
    %v1695 = vmul.f32 %v1521, %v1694
    %v1696 = vadd.f32 %v1693, %v1695
    %v1697 = vstv %s1558
    %v1698 = vmul.f32 %v1522, %v1697
    %v1699 = vadd.f32 %v1696, %v1698
    %v1700 = vmul.f32 %v1091, %v1699
    %v1701 = vstv %s1559
    %v1702 = vmul.f32 %v1519, %v1701
    %v1703 = vstv %s1560
    %v1704 = vmul.f32 %v1520, %v1703
    %v1705 = vadd.f32 %v1702, %v1704
    %v1706 = vstv %s1561
    %v1707 = vmul.f32 %v1521, %v1706
    %v1708 = vadd.f32 %v1705, %v1707
    %v1709 = vstv %s1562
    %v1710 = vmul.f32 %v1522, %v1709
    %v1711 = vadd.f32 %v1708, %v1710
    %v1712 = vmul.f32 %v1142, %v1711
    %v1713 = vadd.f32 %v1700, %v1712
    %v1714 = vstv %s1563
    %v1715 = vmul.f32 %v1519, %v1714
    %v1716 = vstv %s1564
    %v1717 = vmul.f32 %v1520, %v1716
    %v1718 = vadd.f32 %v1715, %v1717
    %v1719 = vstv %s1565
    %v1720 = vmul.f32 %v1521, %v1719
    %v1721 = vadd.f32 %v1718, %v1720
    %v1722 = vstv %s1566
    %v1723 = vmul.f32 %v1522, %v1722
    %v1724 = vadd.f32 %v1721, %v1723
    %v1725 = vmul.f32 %v1193, %v1724
    %v1726 = vadd.f32 %v1713, %v1725
    %v1727 = vstv %s1567
    %v1728 = vmul.f32 %v1519, %v1727
    %v1729 = vstv %s1568
    %v1730 = vmul.f32 %v1520, %v1729
    %v1731 = vadd.f32 %v1728, %v1730
    %v1732 = vstv %s1569
    %v1733 = vmul.f32 %v1521, %v1732
    %v1734 = vadd.f32 %v1731, %v1733
    %v1735 = vstv %s1570
    %v1736 = vmul.f32 %v1522, %v1735
    %v1737 = vadd.f32 %v1734, %v1736
    %v1738 = vmul.f32 %v1244, %v1737
    %v1739 = vadd.f32 %v1726, %v1738
    %v1740 = vstv %s1571
    %v1741 = vmul.f32 %v1519, %v1740
    %v1742 = vstv %s1572
    %v1743 = vmul.f32 %v1520, %v1742
    %v1744 = vadd.f32 %v1741, %v1743
    %v1745 = vstv %s1573
    %v1746 = vmul.f32 %v1521, %v1745
    %v1747 = vadd.f32 %v1744, %v1746
    %v1748 = vstv %s1574
    %v1749 = vmul.f32 %v1522, %v1748
    %v1750 = vadd.f32 %v1747, %v1749
    %v1751 = vmul.f32 %v1091, %v1750
    %v1752 = vstv %s1575
    %v1753 = vmul.f32 %v1519, %v1752
    %v1754 = vstv %s1576
    %v1755 = vmul.f32 %v1520, %v1754
    %v1756 = vadd.f32 %v1753, %v1755
    %v1757 = vstv %s1577
    %v1758 = vmul.f32 %v1521, %v1757
    %v1759 = vadd.f32 %v1756, %v1758
    %v1760 = vstv %s1578
    %v1761 = vmul.f32 %v1522, %v1760
    %v1762 = vadd.f32 %v1759, %v1761
    %v1763 = vmul.f32 %v1142, %v1762
    %v1764 = vadd.f32 %v1751, %v1763
    %v1765 = vstv %s1579
    %v1766 = vmul.f32 %v1519, %v1765
    %v1767 = vstv %s1580
    %v1768 = vmul.f32 %v1520, %v1767
    %v1769 = vadd.f32 %v1766, %v1768
    %v1770 = vstv %s1581
    %v1771 = vmul.f32 %v1521, %v1770
    %v1772 = vadd.f32 %v1769, %v1771
    %v1773 = vstv %s1582
    %v1774 = vmul.f32 %v1522, %v1773
    %v1775 = vadd.f32 %v1772, %v1774
    %v1776 = vmul.f32 %v1193, %v1775
    %v1777 = vadd.f32 %v1764, %v1776
    %v1778 = vstv %s1583
    %v1779 = vmul.f32 %v1519, %v1778
    %v1780 = vstv %s1584
    %v1781 = vmul.f32 %v1520, %v1780
    %v1782 = vadd.f32 %v1779, %v1781
    %v1783 = vstv %s1585
    %v1784 = vmul.f32 %v1521, %v1783
    %v1785 = vadd.f32 %v1782, %v1784
    %v1786 = vstv %s1586
    %v1787 = vmul.f32 %v1522, %v1786
    %v1788 = vadd.f32 %v1785, %v1787
    %v1789 = vmul.f32 %v1244, %v1788
    %v1790 = vadd.f32 %v1777, %v1789
    %v1791 = vmul.f32 %v1364, %v1637
    %v1792 = vmul.f32 %v1415, %v1688
    %v1793 = vadd.f32 %v1791, %v1792
    %v1794 = vmul.f32 %v1466, %v1739
    %v1795 = vadd.f32 %v1793, %v1794
    %v1796 = vmul.f32 %v1517, %v1790
    %v1797 = vadd.f32 %v1795, %v1796
    %1798 = vst [vmem:[%s2] sm:$0x1] %v1797
    // Predicated region
    $region14: #{mps_forward.1} parent=1 // pred_check
      _
    $region15: #{mps_forward.1} parent=1 // pred_check_branch
      %1800 = sbr.rel (0) target = $region17
    $region16: #{mps_forward.1} parent=1 // pred_region
      _
    $region17: #{mps_forward.1} parent=1 // pred_fallthru
      _
    // Predicated region
    $region18: #{mps_forward.1} parent=1 // pred_check
      _
    $region19: #{mps_forward.1} parent=1 // pred_check_branch
      %1802 = sbr.rel (0) target = $region21
    $region20: #{mps_forward.1} parent=1 // pred_region
      _
    $region21: #{mps_forward.1} parent=1 // pred_fallthru
      _
    %1803 = vsyncpa [#allocation3], 1

</llo_original>
